<compile_context>
chip_gen: v7x
topology: tpu7x:2x2x1
jax: 0.10.0
libtpu: 0.0.40
codegen_flags: <defaults>
</compile_context>

<pallas_src>
import functools

import jax
import jax.numpy as jnp
from jax import lax
from jax.experimental import pallas as pl
from jax.experimental.pallas import tpu as pltpu

LANE = 128
SUBLANE = 8
# Per double-buffered gx time-chunk budget (sized so it also fits v7x 64 MiB VMEM).
_GX_VMEM_BUDGET = 24 * 1024 * 1024


def _round_up(n, m):
    return (n + m - 1) // m * m


def _preferred_batch_tile():
    """Per-generation MXU-filling batch tile (128-wide MXU on v5e, 256 on v6e/v7x)."""
    try:
        kind = jax.devices()[0].device_kind.lower()
    except Exception:
        kind = ""
    return 128 if "v5" in kind else 256


def _choose_batch_tile(batch):
    pref = _preferred_batch_tile()
    bt = min(pref, _round_up(batch, SUBLANE))
    # Prefer >=2 batch tiles (feeds both TensorCores on v7x), but never trade
    # the tile below 128 rows.
    while (_round_up(batch, bt) // bt < 2 and bt >= 2 * LANE
           and (bt // 2) % SUBLANE == 0):
        bt //= 2
    return bt


def _choose_s_chunk(seq_len, bt, hidden_pad, itemsize):
    """Largest time chunk that (double-buffered) fits the gx budget and divides S."""
    per_step = bt * 3 * hidden_pad * itemsize
    max_steps = max(1, _GX_VMEM_BUDGET // (2 * per_step))
    sc = min(seq_len, max_steps)
    while seq_len % sc != 0:
        sc -= 1
    return sc


def gru_recurrence_kernel(gx_ref, whh_ref, bhn_ref, wfc_ref, bfc_ref, out_ref,
                          h_ref, *, s_chunk, hidden_pad, batch_tile,
                          num_chains, unroll):
    """One (batch tile, time chunk) of the GRU recurrence + final Linear.

    gx_ref  : (SC, BT, 3*Hp)  precomputed x-projection (+ b_ih, + b_hh for r,z)
    whh_ref : (Hp, 3*Hp)      hidden->hidden weights (transposed, gate-padded)
    bhn_ref : (1, Hp)         hidden bias of the n gate (stays inside r*(...))
    wfc_ref : (Hp, Op)        final Linear weights (transposed, padded)
    bfc_ref : (1, Op)         final Linear bias (padded)
    out_ref : (BT, Op)        written only at the last time chunk
    h_ref   : (BT, Hp) f32    hidden state carried across time chunks (scratch)
    """
    Hp = hidden_pad
    CT = batch_tile // num_chains
    f32 = jnp.float32
    s_idx = pl.program_id(1)

    @pl.when(s_idx == 0)
    def _init():
        h_ref[...] = jnp.zeros_like(h_ref)

    # Hoist weight load + bias broadcast out of the time loop (JAX does not
    # CSE broadcast_in_dim inside loops).
    whh = whh_ref[...]
    bhn = jnp.broadcast_to(bhn_ref[...].astype(f32), (CT, Hp))

    def step(t, hs):
        gx_t = gx_ref[t]                                        # (BT, 3Hp)
        new_hs = []
        # num_chains independent recurrence chains per step: chain c's VPU/EUP
        # gate math overlaps the other chain's MXU pass (latency hiding).
        for c in range(num_chains):
            h_prev = hs[c]                                      # (CT, Hp) f32
            gx = gx_t[c * CT:(c + 1) * CT, :].astype(f32)
            gh = jnp.dot(h_prev.astype(whh.dtype), whh,
                         preferred_element_type=f32)
            # PyTorch GRU gate order r, z, n; gates lane-aligned at 0/Hp/2Hp.
            r = jax.nn.sigmoid(gx[:, 0:Hp] + gh[:, 0:Hp])
            z = jax.nn.sigmoid(gx[:, Hp:2 * Hp] + gh[:, Hp:2 * Hp])
            n = jnp.tanh(gx[:, 2 * Hp:3 * Hp] + r * (gh[:, 2 * Hp:3 * Hp] + bhn))
            new_hs.append((1.0 - z) * n + z * h_prev)
        return tuple(new_hs)

    hs0 = tuple(h_ref[c * CT:(c + 1) * CT, :] for c in range(num_chains))
    hs = lax.fori_loop(0, s_chunk, step, hs0, unroll=unroll)

    # Persist hidden state for the next time chunk.
    for c in range(num_chains):
        h_ref[c * CT:(c + 1) * CT, :] = hs[c]

    @pl.when(s_idx == pl.num_programs(1) - 1)
    def _finalize():
        # Final Linear kept in-kernel (avoids an HBM round-trip of h_last).
        # For very large Hp on v7x one could instead emit h_last and run the
        # FC in XLA to free the resident (Hp, Op) block.
        wfc = wfc_ref[...]
        bfc = bfc_ref[...].astype(f32)
        for c in range(num_chains):
            y = jnp.dot(hs[c].astype(wfc.dtype), wfc,
                        preferred_element_type=f32) + bfc
            out_ref[c * CT:(c + 1) * CT, :] = y.astype(out_ref.dtype)


def _pad_gates(w, H, Hp):
    """(rows, 3H) -> (rows, 3Hp): each gate slab placed lane-aligned at g*Hp."""
    rows = w.shape[0]
    out = jnp.zeros((rows, 3 * Hp), w.dtype)
    for g in range(3):
        out = out.at[:, g * Hp:g * Hp + H].set(w[:, g * H:(g + 1) * H])
    return out


def gru_model_forward(x, params, *, matmul_dtype=jnp.bfloat16, batch_tile=None):
    """x: (B, S, I) float32.  Returns (B, output_size) float32.

    matmul_dtype controls only the MXU operands (gx slab, W_hh, W_fc, h cast
    right before the dot); all gate math is f32.
    """
    B, S, I = x.shape
    H = params["w_hh_T"].shape[0]
    O = params["w_fc_T"].shape[1]
    f32 = jnp.float32
    mm_dt = jnp.dtype(matmul_dtype)

    Hp = _round_up(H, LANE)
    Op = _round_up(O, LANE)
    BT = batch_tile if batch_tile is not None else _choose_batch_tile(B)
    Bp = _round_up(B, BT)
    ntiles = Bp // BT
    num_chains = 2 if (BT >= 16 and BT % 16 == 0) else 1
    SC = _choose_s_chunk(S, BT, Hp, mm_dt.itemsize)
    n_s_chunks = S // SC
    unroll = True if SC <= 32 else 8

    # ---- layout plumbing: gate-padded, lane-aligned weights ---------------
    w_ih_p = _pad_gates(params["w_ih_T"].astype(f32), H, Hp)              # (I, 3Hp)
    w_hh_p = jnp.zeros((Hp, 3 * Hp), f32).at[:H, :].set(
        _pad_gates(params["w_hh_T"].astype(f32), H, Hp)).astype(mm_dt)    # (Hp, 3Hp)

    b_ih = params["b_ih"].reshape(3 * H).astype(f32)
    b_hh = params["b_hh"].reshape(3 * H).astype(f32)
    # Merge b_ih + b_hh for the r and z gates into the precomputed gx; the
    # n-gate hidden bias must stay inside r*(W_hn h + b_hn) (PyTorch formula).
    b_pre = jnp.zeros((3 * Hp,), f32)
    b_pre = b_pre.at[0 * Hp:0 * Hp + H].set(b_ih[0:H] + b_hh[0:H])
    b_pre = b_pre.at[1 * Hp:1 * Hp + H].set(b_ih[H:2 * H] + b_hh[H:2 * H])
    b_pre = b_pre.at[2 * Hp:2 * Hp + H].set(b_ih[2 * H:3 * H])
    b_hn = jnp.zeros((1, Hp), f32).at[0, :H].set(b_hh[2 * H:3 * H])

    w_fc_p = jnp.zeros((Hp, Op), f32).at[:H, :O].set(
        params["w_fc_T"].astype(f32)).astype(mm_dt)
    b_fc_p = jnp.zeros((1, Op), f32).at[0, :O].set(
        params["b_fc"].reshape(O).astype(f32))

    # ---- hoisted input projection: one big matmul, no time dependence -----
    x_p = jnp.zeros((Bp, S, I), f32).at[:B].set(x.astype(f32))
    gx = jnp.einsum("bsi,ij->bsj", x_p, w_ih_p,
                    preferred_element_type=f32) + b_pre                    # (Bp, S, 3Hp)
    # Pre-tile so each grid step's gx block is one contiguous HBM read.
    gx = gx.reshape(ntiles, BT, S, 3 * Hp).transpose(0, 2, 1, 3).astype(mm_dt)

    kernel = functools.partial(
        gru_recurrence_kernel, s_chunk=SC, hidden_pad=Hp, batch_tile=BT,
        num_chains=num_chains, unroll=unroll)

    # VMEM limit derived from the actual block sizes (not a fixed constant).
    gx_blk = SC * BT * 3 * Hp * mm_dt.itemsize
    w_blk = (Hp * 3 * Hp + Hp * Op) * mm_dt.itemsize + (Hp + Op) * 4
    out_blk = BT * Op * 4
    scratch_bytes = BT * Hp * 4
    vmem_limit = int(min(max(2 * gx_blk + 2 * w_blk + 2 * out_blk
                             + scratch_bytes + (2 << 20), 8 << 20), 128 << 20))

    flops = 2 * Bp * S * Hp * (3 * Hp) + 2 * Bp * Hp * Op
    transcendentals = 3 * Bp * S * Hp
    bytes_accessed = (gx.size * mm_dt.itemsize
                      + (w_hh_p.size + w_fc_p.size) * mm_dt.itemsize
                      + (b_hn.size + b_fc_p.size + Bp * Op) * 4)

    def call(single_buffer_weights):
        # Constant-index weight blocks: single-buffer to avoid wasting VMEM on
        # a second buffer that is never used.
        wkw = ({"pipeline_mode": pl.Buffered(1)}
               if single_buffer_weights else {})
        grid_spec = pltpu.PrefetchScalarGridSpec(
            num_scalar_prefetch=0,
            grid=(ntiles, n_s_chunks),
            in_specs=[
                pl.BlockSpec((None, SC, BT, 3 * Hp),
                             lambda b, s: (b, s, 0, 0)),                  # gx chunk
                pl.BlockSpec((Hp, 3 * Hp), lambda b, s: (0, 0), **wkw),   # W_hh^T
                pl.BlockSpec((1, Hp), lambda b, s: (0, 0), **wkw),        # b_hn
                pl.BlockSpec((Hp, Op), lambda b, s: (0, 0), **wkw),       # W_fc^T
                pl.BlockSpec((1, Op), lambda b, s: (0, 0), **wkw),        # b_fc
            ],
            out_specs=pl.BlockSpec((BT, Op), lambda b, s: (b, 0)),
            scratch_shapes=[pltpu.VMEM((BT, Hp), jnp.float32)],
        )
        return pl.pallas_call(
            kernel,
            out_shape=jax.ShapeDtypeStruct((Bp, Op), f32),
            grid_spec=grid_spec,
            compiler_params=pltpu.CompilerParams(
                dimension_semantics=("parallel", "arbitrary"),
                vmem_limit_bytes=vmem_limit,
            ),
            cost_estimate=pl.CostEstimate(flops=int(flops),
                                          transcendentals=int(transcendentals),
                                          bytes_accessed=int(bytes_accessed)),
        )(gx, w_hh_p, b_hn, w_fc_p, b_fc_p)

    try:
        out = call(single_buffer_weights=True)
    except Exception:
        # Fallback for JAX versions without BlockSpec.pipeline_mode support.
        out = call(single_buffer_weights=False)

    return out[:B, :O]


def init_params(key, input_size, hidden_size, output_size):
    """Deterministic init mirroring PyTorch's U(-1/sqrt(H), 1/sqrt(H))."""
    k = 1.0 / jnp.sqrt(hidden_size)
    keys = jax.random.split(key, 6)
    u = lambda kk, shape: jax.random.uniform(kk, shape, jnp.float32, -k, k)
    return {
        "w_ih_T": u(keys[0], (input_size, 3 * hidden_size)),
        "w_hh_T": u(keys[1], (hidden_size, 3 * hidden_size)),
        "b_ih": u(keys[2], (1, 3 * hidden_size)),
        "b_hh": u(keys[3], (1, 3 * hidden_size)),
        "w_fc_T": u(keys[4], (hidden_size, output_size)),
        "b_fc": u(keys[5], (1, output_size)),
    }


def gru_model_reference(x, params):
    """Pure-JAX f32 reference (same math as PyTorch GRU + Linear)."""
    B, S, I = x.shape
    H = params["w_hh_T"].shape[0]

    def step(h, x_t):
        gx = x_t @ params["w_ih_T"] + params["b_ih"]
        gh = h @ params["w_hh_T"] + params["b_hh"]
        r = jax.nn.sigmoid(gx[:, 0:H] + gh[:, 0:H])
        z = jax.nn.sigmoid(gx[:, H:2 * H] + gh[:, H:2 * H])
        n = jnp.tanh(gx[:, 2 * H:3 * H] + r * gh[:, 2 * H:3 * H])
        return (1.0 - z) * n + z * h, None

    h0 = jnp.zeros((B, H), jnp.float32)
    h_last, _ = jax.lax.scan(step, h0, jnp.transpose(x, (1, 0, 2)))
    return h_last @ params["w_fc_T"] + params["b_fc"]


if __name__ == "__main__":
    batch, seq, input_size, hidden_size, output_size = 2, 8, 16, 32, 1

    key = jax.random.PRNGKey(0)
    k_x, k_p = jax.random.split(key)
    x = jax.random.normal(k_x, (batch, seq, input_size), jnp.float32)
    params = init_params(k_p, input_size, hidden_size, output_size)

    ref = gru_model_reference(x, params)

    # Exact-math path (f32 MXU operands) -> tight tolerance.
    out_f32 = jax.block_until_ready(
        gru_model_forward(x, params, matmul_dtype=jnp.float32))
    assert out_f32.shape == (batch, output_size)
    assert jnp.allclose(out_f32, ref, atol=1e-5, rtol=1e-5), (
        f"f32 path max abs err = {jnp.max(jnp.abs(out_f32 - ref))}")

    # Default path (bf16 MXU operands, f32 gate math) -> relaxed tolerance.
    out_bf16 = jax.block_until_ready(gru_model_forward(x, params))
    assert out_bf16.shape == (batch, output_size)
    assert jnp.allclose(out_bf16, ref, atol=5e-2, rtol=5e-2), (
        f"bf16 path max abs err = {jnp.max(jnp.abs(out_bf16 - ref))}")

    print("KERNEL_OK")
</pallas_src>

<mosaic_0001>
module attributes {stable_mosaic.version = 11 : i64} {
  func.func @gru_recurrence_kernel(%arg0: i32, %arg1: i32, %arg2: memref<1x8x8x384xf32, #tpu.memory_space<vmem>>, %arg3: memref<128x384xf32, #tpu.memory_space<vmem>>, %arg4: memref<1x128xf32, #tpu.memory_space<vmem>>, %arg5: memref<128x128xf32, #tpu.memory_space<vmem>>, %arg6: memref<1x128xf32, #tpu.memory_space<vmem>>, %arg7: memref<8x128xf32, #tpu.memory_space<vmem>>, %arg8: memref<8x128xf32, #tpu.memory_space<vmem>>) attributes {dimension_semantics = [#tpu.dimension_semantics<parallel>, #tpu.dimension_semantics<arbitrary>], iteration_bounds = array<i64: 1, 1>, scalar_prefetch = 0 : i64, scratch_operands = 1 : i64, tpu.core_type = #tpu.core_type<tc>, window_params = [{transform_indices = @transform_0, window_bounds = array<i64: 1, 8, 8, 384>}, {pipeline_mode = #tpu.pipeline_mode<synchronous>, transform_indices = @transform_1, window_bounds = array<i64: 128, 384>}, {pipeline_mode = #tpu.pipeline_mode<synchronous>, transform_indices = @transform_2, window_bounds = array<i64: 1, 128>}, {pipeline_mode = #tpu.pipeline_mode<synchronous>, transform_indices = @transform_3, window_bounds = array<i64: 128, 128>}, {pipeline_mode = #tpu.pipeline_mode<synchronous>, transform_indices = @transform_4, window_bounds = array<i64: 1, 128>}, {transform_indices = @transform_5, window_bounds = array<i64: 8, 128>}]} {
    %c0_i32 = arith.constant 0 : i32
    %0 = arith.cmpi eq, %arg1, %c0_i32 : i32
    %1 = arith.extui %0 : i1 to i32
    %c0_i32_0 = arith.constant 0 : i32
    %2 = arith.cmpi ne, %1, %c0_i32_0 : i32
    scf.if %2 {
      %cst_66 = arith.constant 0.000000e+00 : f32
      %260 = vector.broadcast %cst_66 : f32 to vector<8x128xf32>
      %c0_67 = arith.constant 0 : index
      %c0_68 = arith.constant 0 : index
      %261 = vector.load %arg8[%c0_67, %c0_68] : memref<8x128xf32, #tpu.memory_space<vmem>>, vector<8x128xf32>
      tpu.vector_store %arg8[%c0_67, %c0_68], %260 {strides = array<i32>} : memref<8x128xf32, #tpu.memory_space<vmem>>, vector<8x128xf32>,
    } else {
    }
    %c0 = arith.constant 0 : index
    %c0_1 = arith.constant 0 : index
    %3 = vector.load %arg3[%c0, %c0_1] : memref<128x384xf32, #tpu.memory_space<vmem>>, vector<128x384xf32>
    %c0_2 = arith.constant 0 : index
    %c0_3 = arith.constant 0 : index
    %4 = vector.load %arg4[%c0_2, %c0_3] : memref<1x128xf32, #tpu.memory_space<vmem>>, vector<1x128xf32>
    %5 = vector.shape_cast %4 : vector<1x128xf32> to vector<1x128xf32>
    %6 = vector.broadcast %5 : vector<1x128xf32> to vector<8x128xf32>
    %c0_4 = arith.constant 0 : index
    %c0_5 = arith.constant 0 : index
    %7 = vector.load %arg8[%c0_4, %c0_5] : memref<8x128xf32, #tpu.memory_space<vmem>>, vector<8x128xf32>
    %c0_i32_6 = arith.constant 0 : i32
    %c0_7 = arith.constant 0 : index
    %8 = arith.index_cast %c0_i32_6 : i32 to index
    %c0_8 = arith.constant 0 : index
    %c0_9 = arith.constant 0 : index
    %9 = vector.load %arg2[%c0_7, %8, %c0_8, %c0_9] : memref<1x8x8x384xf32, #tpu.memory_space<vmem>>, vector<1x1x8x384xf32>
    %10 = vector.shape_cast %9 : vector<1x1x8x384xf32> to vector<8x384xf32>
    %cst = arith.constant dense<0.000000e+00> : vector<8x384xf32>
    %11 = tpu.matmul %7, %3, %cst {dimension_numbers = #tpu.dot_dimension_numbers<[1], [0], [0], [1], [0, 0, 1, 1], [], []>} : vector<8x128xf32>, vector<128x384xf32>, vector<8x384xf32> -> vector<8x384xf32>
    %12 = vector.extract_strided_slice %10 {offsets = [0, 0], sizes = [8, 128], strides = [1, 1]} : vector<8x384xf32> to vector<8x128xf32>
    %13 = vector.extract_strided_slice %11 {offsets = [0, 0], sizes = [8, 128], strides = [1, 1]} : vector<8x384xf32> to vector<8x128xf32>
    %14 = arith.addf %12, %13 : vector<8x128xf32>
    %15 = arith.negf %14 : vector<8x128xf32>
    %16 = math.exp %15 : vector<8x128xf32>
    %cst_10 = arith.constant 1.000000e+00 : f32
    %17 = vector.broadcast %cst_10 : f32 to vector<8x128xf32>
    %18 = arith.addf %17, %16 : vector<8x128xf32>
    %19 = arith.divf %17, %18 : vector<8x128xf32>
    %20 = vector.extract_strided_slice %10 {offsets = [0, 128], sizes = [8, 128], strides = [1, 1]} : vector<8x384xf32> to vector<8x128xf32>
    %21 = vector.extract_strided_slice %11 {offsets = [0, 128], sizes = [8, 128], strides = [1, 1]} : vector<8x384xf32> to vector<8x128xf32>
    %22 = arith.addf %20, %21 : vector<8x128xf32>
    %23 = arith.negf %22 : vector<8x128xf32>
    %24 = math.exp %23 : vector<8x128xf32>
    %cst_11 = arith.constant 1.000000e+00 : f32
    %25 = vector.broadcast %cst_11 : f32 to vector<8x128xf32>
    %26 = arith.addf %25, %24 : vector<8x128xf32>
    %27 = arith.divf %25, %26 : vector<8x128xf32>
    %28 = vector.extract_strided_slice %10 {offsets = [0, 256], sizes = [8, 128], strides = [1, 1]} : vector<8x384xf32> to vector<8x128xf32>
    %29 = vector.extract_strided_slice %11 {offsets = [0, 256], sizes = [8, 128], strides = [1, 1]} : vector<8x384xf32> to vector<8x128xf32>
    %30 = arith.addf %29, %6 : vector<8x128xf32>
    %31 = arith.mulf %19, %30 : vector<8x128xf32>
    %32 = arith.addf %28, %31 : vector<8x128xf32>
    %33 = math.tanh %32 : vector<8x128xf32>
    %cst_12 = arith.constant 1.000000e+00 : f32
    %34 = vector.broadcast %cst_12 : f32 to vector<8x128xf32>
    %35 = arith.subf %34, %27 : vector<8x128xf32>
    %36 = arith.mulf %35, %33 : vector<8x128xf32>
    %37 = arith.mulf %27, %7 : vector<8x128xf32>
    %38 = arith.addf %36, %37 : vector<8x128xf32>
    %c1_i32 = arith.constant 1 : i32
    %c0_13 = arith.constant 0 : index
    %39 = arith.index_cast %c1_i32 : i32 to index
    %c0_14 = arith.constant 0 : index
    %c0_15 = arith.constant 0 : index
    %40 = vector.load %arg2[%c0_13, %39, %c0_14, %c0_15] : memref<1x8x8x384xf32, #tpu.memory_space<vmem>>, vector<1x1x8x384xf32>
    %41 = vector.shape_cast %40 : vector<1x1x8x384xf32> to vector<8x384xf32>
    %cst_16 = arith.constant dense<0.000000e+00> : vector<8x384xf32>
    %42 = tpu.matmul %38, %3, %cst_16 {dimension_numbers = #tpu.dot_dimension_numbers<[1], [0], [0], [1], [0, 0, 1, 1], [], []>} : vector<8x128xf32>, vector<128x384xf32>, vector<8x384xf32> -> vector<8x384xf32>
    %43 = vector.extract_strided_slice %41 {offsets = [0, 0], sizes = [8, 128], strides = [1, 1]} : vector<8x384xf32> to vector<8x128xf32>
    %44 = vector.extract_strided_slice %42 {offsets = [0, 0], sizes = [8, 128], strides = [1, 1]} : vector<8x384xf32> to vector<8x128xf32>
    %45 = arith.addf %43, %44 : vector<8x128xf32>
    %46 = arith.negf %45 : vector<8x128xf32>
    %47 = math.exp %46 : vector<8x128xf32>
    %cst_17 = arith.constant 1.000000e+00 : f32
    %48 = vector.broadcast %cst_17 : f32 to vector<8x128xf32>
    %49 = arith.addf %48, %47 : vector<8x128xf32>
    %50 = arith.divf %48, %49 : vector<8x128xf32>
    %51 = vector.extract_strided_slice %41 {offsets = [0, 128], sizes = [8, 128], strides = [1, 1]} : vector<8x384xf32> to vector<8x128xf32>
    %52 = vector.extract_strided_slice %42 {offsets = [0, 128], sizes = [8, 128], strides = [1, 1]} : vector<8x384xf32> to vector<8x128xf32>
    %53 = arith.addf %51, %52 : vector<8x128xf32>
    %54 = arith.negf %53 : vector<8x128xf32>
    %55 = math.exp %54 : vector<8x128xf32>
    %cst_18 = arith.constant 1.000000e+00 : f32
    %56 = vector.broadcast %cst_18 : f32 to vector<8x128xf32>
    %57 = arith.addf %56, %55 : vector<8x128xf32>
    %58 = arith.divf %56, %57 : vector<8x128xf32>
    %59 = vector.extract_strided_slice %41 {offsets = [0, 256], sizes = [8, 128], strides = [1, 1]} : vector<8x384xf32> to vector<8x128xf32>
    %60 = vector.extract_strided_slice %42 {offsets = [0, 256], sizes = [8, 128], strides = [1, 1]} : vector<8x384xf32> to vector<8x128xf32>
    %61 = arith.addf %60, %6 : vector<8x128xf32>
    %62 = arith.mulf %50, %61 : vector<8x128xf32>
    %63 = arith.addf %59, %62 : vector<8x128xf32>
    %64 = math.tanh %63 : vector<8x128xf32>
    %cst_19 = arith.constant 1.000000e+00 : f32
    %65 = vector.broadcast %cst_19 : f32 to vector<8x128xf32>
    %66 = arith.subf %65, %58 : vector<8x128xf32>
    %67 = arith.mulf %66, %64 : vector<8x128xf32>
    %68 = arith.mulf %58, %38 : vector<8x128xf32>
    %69 = arith.addf %67, %68 : vector<8x128xf32>
    %c2_i32 = arith.constant 2 : i32
    %c0_20 = arith.constant 0 : index
    %70 = arith.index_cast %c2_i32 : i32 to index
    %c0_21 = arith.constant 0 : index
    %c0_22 = arith.constant 0 : index
    %71 = vector.load %arg2[%c0_20, %70, %c0_21, %c0_22] : memref<1x8x8x384xf32, #tpu.memory_space<vmem>>, vector<1x1x8x384xf32>
    %72 = vector.shape_cast %71 : vector<1x1x8x384xf32> to vector<8x384xf32>
    %cst_23 = arith.constant dense<0.000000e+00> : vector<8x384xf32>
    %73 = tpu.matmul %69, %3, %cst_23 {dimension_numbers = #tpu.dot_dimension_numbers<[1], [0], [0], [1], [0, 0, 1, 1], [], []>} : vector<8x128xf32>, vector<128x384xf32>, vector<8x384xf32> -> vector<8x384xf32>
    %74 = vector.extract_strided_slice %72 {offsets = [0, 0], sizes = [8, 128], strides = [1, 1]} : vector<8x384xf32> to vector<8x128xf32>
    %75 = vector.extract_strided_slice %73 {offsets = [0, 0], sizes = [8, 128], strides = [1, 1]} : vector<8x384xf32> to vector<8x128xf32>
    %76 = arith.addf %74, %75 : vector<8x128xf32>
    %77 = arith.negf %76 : vector<8x128xf32>
    %78 = math.exp %77 : vector<8x128xf32>
    %cst_24 = arith.constant 1.000000e+00 : f32
    %79 = vector.broadcast %cst_24 : f32 to vector<8x128xf32>
    %80 = arith.addf %79, %78 : vector<8x128xf32>
    %81 = arith.divf %79, %80 : vector<8x128xf32>
    %82 = vector.extract_strided_slice %72 {offsets = [0, 128], sizes = [8, 128], strides = [1, 1]} : vector<8x384xf32> to vector<8x128xf32>
    %83 = vector.extract_strided_slice %73 {offsets = [0, 128], sizes = [8, 128], strides = [1, 1]} : vector<8x384xf32> to vector<8x128xf32>
    %84 = arith.addf %82, %83 : vector<8x128xf32>
    %85 = arith.negf %84 : vector<8x128xf32>
    %86 = math.exp %85 : vector<8x128xf32>
    %cst_25 = arith.constant 1.000000e+00 : f32
    %87 = vector.broadcast %cst_25 : f32 to vector<8x128xf32>
    %88 = arith.addf %87, %86 : vector<8x128xf32>
    %89 = arith.divf %87, %88 : vector<8x128xf32>
    %90 = vector.extract_strided_slice %72 {offsets = [0, 256], sizes = [8, 128], strides = [1, 1]} : vector<8x384xf32> to vector<8x128xf32>
    %91 = vector.extract_strided_slice %73 {offsets = [0, 256], sizes = [8, 128], strides = [1, 1]} : vector<8x384xf32> to vector<8x128xf32>
    %92 = arith.addf %91, %6 : vector<8x128xf32>
    %93 = arith.mulf %81, %92 : vector<8x128xf32>
    %94 = arith.addf %90, %93 : vector<8x128xf32>
    %95 = math.tanh %94 : vector<8x128xf32>
    %cst_26 = arith.constant 1.000000e+00 : f32
    %96 = vector.broadcast %cst_26 : f32 to vector<8x128xf32>
    %97 = arith.subf %96, %89 : vector<8x128xf32>
    %98 = arith.mulf %97, %95 : vector<8x128xf32>
    %99 = arith.mulf %89, %69 : vector<8x128xf32>
    %100 = arith.addf %98, %99 : vector<8x128xf32>
    %c3_i32 = arith.constant 3 : i32
    %c0_27 = arith.constant 0 : index
    %101 = arith.index_cast %c3_i32 : i32 to index
    %c0_28 = arith.constant 0 : index
    %c0_29 = arith.constant 0 : index
    %102 = vector.load %arg2[%c0_27, %101, %c0_28, %c0_29] : memref<1x8x8x384xf32, #tpu.memory_space<vmem>>, vector<1x1x8x384xf32>
    %103 = vector.shape_cast %102 : vector<1x1x8x384xf32> to vector<8x384xf32>
    %cst_30 = arith.constant dense<0.000000e+00> : vector<8x384xf32>
    %104 = tpu.matmul %100, %3, %cst_30 {dimension_numbers = #tpu.dot_dimension_numbers<[1], [0], [0], [1], [0, 0, 1, 1], [], []>} : vector<8x128xf32>, vector<128x384xf32>, vector<8x384xf32> -> vector<8x384xf32>
    %105 = vector.extract_strided_slice %103 {offsets = [0, 0], sizes = [8, 128], strides = [1, 1]} : vector<8x384xf32> to vector<8x128xf32>
    %106 = vector.extract_strided_slice %104 {offsets = [0, 0], sizes = [8, 128], strides = [1, 1]} : vector<8x384xf32> to vector<8x128xf32>
    %107 = arith.addf %105, %106 : vector<8x128xf32>
    %108 = arith.negf %107 : vector<8x128xf32>
    %109 = math.exp %108 : vector<8x128xf32>
    %cst_31 = arith.constant 1.000000e+00 : f32
    %110 = vector.broadcast %cst_31 : f32 to vector<8x128xf32>
    %111 = arith.addf %110, %109 : vector<8x128xf32>
    %112 = arith.divf %110, %111 : vector<8x128xf32>
    %113 = vector.extract_strided_slice %103 {offsets = [0, 128], sizes = [8, 128], strides = [1, 1]} : vector<8x384xf32> to vector<8x128xf32>
    %114 = vector.extract_strided_slice %104 {offsets = [0, 128], sizes = [8, 128], strides = [1, 1]} : vector<8x384xf32> to vector<8x128xf32>
    %115 = arith.addf %113, %114 : vector<8x128xf32>
    %116 = arith.negf %115 : vector<8x128xf32>
    %117 = math.exp %116 : vector<8x128xf32>
    %cst_32 = arith.constant 1.000000e+00 : f32
    %118 = vector.broadcast %cst_32 : f32 to vector<8x128xf32>
    %119 = arith.addf %118, %117 : vector<8x128xf32>
    %120 = arith.divf %118, %119 : vector<8x128xf32>
    %121 = vector.extract_strided_slice %103 {offsets = [0, 256], sizes = [8, 128], strides = [1, 1]} : vector<8x384xf32> to vector<8x128xf32>
    %122 = vector.extract_strided_slice %104 {offsets = [0, 256], sizes = [8, 128], strides = [1, 1]} : vector<8x384xf32> to vector<8x128xf32>
    %123 = arith.addf %122, %6 : vector<8x128xf32>
    %124 = arith.mulf %112, %123 : vector<8x128xf32>
    %125 = arith.addf %121, %124 : vector<8x128xf32>
    %126 = math.tanh %125 : vector<8x128xf32>
    %cst_33 = arith.constant 1.000000e+00 : f32
    %127 = vector.broadcast %cst_33 : f32 to vector<8x128xf32>
    %128 = arith.subf %127, %120 : vector<8x128xf32>
    %129 = arith.mulf %128, %126 : vector<8x128xf32>
    %130 = arith.mulf %120, %100 : vector<8x128xf32>
    %131 = arith.addf %129, %130 : vector<8x128xf32>
    %c4_i32 = arith.constant 4 : i32
    %c0_34 = arith.constant 0 : index
    %132 = arith.index_cast %c4_i32 : i32 to index
    %c0_35 = arith.constant 0 : index
    %c0_36 = arith.constant 0 : index
    %133 = vector.load %arg2[%c0_34, %132, %c0_35, %c0_36] : memref<1x8x8x384xf32, #tpu.memory_space<vmem>>, vector<1x1x8x384xf32>
    %134 = vector.shape_cast %133 : vector<1x1x8x384xf32> to vector<8x384xf32>
    %cst_37 = arith.constant dense<0.000000e+00> : vector<8x384xf32>
    %135 = tpu.matmul %131, %3, %cst_37 {dimension_numbers = #tpu.dot_dimension_numbers<[1], [0], [0], [1], [0, 0, 1, 1], [], []>} : vector<8x128xf32>, vector<128x384xf32>, vector<8x384xf32> -> vector<8x384xf32>
    %136 = vector.extract_strided_slice %134 {offsets = [0, 0], sizes = [8, 128], strides = [1, 1]} : vector<8x384xf32> to vector<8x128xf32>
    %137 = vector.extract_strided_slice %135 {offsets = [0, 0], sizes = [8, 128], strides = [1, 1]} : vector<8x384xf32> to vector<8x128xf32>
    %138 = arith.addf %136, %137 : vector<8x128xf32>
    %139 = arith.negf %138 : vector<8x128xf32>
    %140 = math.exp %139 : vector<8x128xf32>
    %cst_38 = arith.constant 1.000000e+00 : f32
    %141 = vector.broadcast %cst_38 : f32 to vector<8x128xf32>
    %142 = arith.addf %141, %140 : vector<8x128xf32>
    %143 = arith.divf %141, %142 : vector<8x128xf32>
    %144 = vector.extract_strided_slice %134 {offsets = [0, 128], sizes = [8, 128], strides = [1, 1]} : vector<8x384xf32> to vector<8x128xf32>
    %145 = vector.extract_strided_slice %135 {offsets = [0, 128], sizes = [8, 128], strides = [1, 1]} : vector<8x384xf32> to vector<8x128xf32>
    %146 = arith.addf %144, %145 : vector<8x128xf32>
    %147 = arith.negf %146 : vector<8x128xf32>
    %148 = math.exp %147 : vector<8x128xf32>
    %cst_39 = arith.constant 1.000000e+00 : f32
    %149 = vector.broadcast %cst_39 : f32 to vector<8x128xf32>
    %150 = arith.addf %149, %148 : vector<8x128xf32>
    %151 = arith.divf %149, %150 : vector<8x128xf32>
    %152 = vector.extract_strided_slice %134 {offsets = [0, 256], sizes = [8, 128], strides = [1, 1]} : vector<8x384xf32> to vector<8x128xf32>
    %153 = vector.extract_strided_slice %135 {offsets = [0, 256], sizes = [8, 128], strides = [1, 1]} : vector<8x384xf32> to vector<8x128xf32>
    %154 = arith.addf %153, %6 : vector<8x128xf32>
    %155 = arith.mulf %143, %154 : vector<8x128xf32>
    %156 = arith.addf %152, %155 : vector<8x128xf32>
    %157 = math.tanh %156 : vector<8x128xf32>
    %cst_40 = arith.constant 1.000000e+00 : f32
    %158 = vector.broadcast %cst_40 : f32 to vector<8x128xf32>
    %159 = arith.subf %158, %151 : vector<8x128xf32>
    %160 = arith.mulf %159, %157 : vector<8x128xf32>
    %161 = arith.mulf %151, %131 : vector<8x128xf32>
    %162 = arith.addf %160, %161 : vector<8x128xf32>
    %c5_i32 = arith.constant 5 : i32
    %c0_41 = arith.constant 0 : index
    %163 = arith.index_cast %c5_i32 : i32 to index
    %c0_42 = arith.constant 0 : index
    %c0_43 = arith.constant 0 : index
    %164 = vector.load %arg2[%c0_41, %163, %c0_42, %c0_43] : memref<1x8x8x384xf32, #tpu.memory_space<vmem>>, vector<1x1x8x384xf32>
    %165 = vector.shape_cast %164 : vector<1x1x8x384xf32> to vector<8x384xf32>
    %cst_44 = arith.constant dense<0.000000e+00> : vector<8x384xf32>
    %166 = tpu.matmul %162, %3, %cst_44 {dimension_numbers = #tpu.dot_dimension_numbers<[1], [0], [0], [1], [0, 0, 1, 1], [], []>} : vector<8x128xf32>, vector<128x384xf32>, vector<8x384xf32> -> vector<8x384xf32>
    %167 = vector.extract_strided_slice %165 {offsets = [0, 0], sizes = [8, 128], strides = [1, 1]} : vector<8x384xf32> to vector<8x128xf32>
    %168 = vector.extract_strided_slice %166 {offsets = [0, 0], sizes = [8, 128], strides = [1, 1]} : vector<8x384xf32> to vector<8x128xf32>
    %169 = arith.addf %167, %168 : vector<8x128xf32>
    %170 = arith.negf %169 : vector<8x128xf32>
    %171 = math.exp %170 : vector<8x128xf32>
    %cst_45 = arith.constant 1.000000e+00 : f32
    %172 = vector.broadcast %cst_45 : f32 to vector<8x128xf32>
    %173 = arith.addf %172, %171 : vector<8x128xf32>
    %174 = arith.divf %172, %173 : vector<8x128xf32>
    %175 = vector.extract_strided_slice %165 {offsets = [0, 128], sizes = [8, 128], strides = [1, 1]} : vector<8x384xf32> to vector<8x128xf32>
    %176 = vector.extract_strided_slice %166 {offsets = [0, 128], sizes = [8, 128], strides = [1, 1]} : vector<8x384xf32> to vector<8x128xf32>
    %177 = arith.addf %175, %176 : vector<8x128xf32>
    %178 = arith.negf %177 : vector<8x128xf32>
    %179 = math.exp %178 : vector<8x128xf32>
    %cst_46 = arith.constant 1.000000e+00 : f32
    %180 = vector.broadcast %cst_46 : f32 to vector<8x128xf32>
    %181 = arith.addf %180, %179 : vector<8x128xf32>
    %182 = arith.divf %180, %181 : vector<8x128xf32>
    %183 = vector.extract_strided_slice %165 {offsets = [0, 256], sizes = [8, 128], strides = [1, 1]} : vector<8x384xf32> to vector<8x128xf32>
    %184 = vector.extract_strided_slice %166 {offsets = [0, 256], sizes = [8, 128], strides = [1, 1]} : vector<8x384xf32> to vector<8x128xf32>
    %185 = arith.addf %184, %6 : vector<8x128xf32>
    %186 = arith.mulf %174, %185 : vector<8x128xf32>
    %187 = arith.addf %183, %186 : vector<8x128xf32>
    %188 = math.tanh %187 : vector<8x128xf32>
    %cst_47 = arith.constant 1.000000e+00 : f32
    %189 = vector.broadcast %cst_47 : f32 to vector<8x128xf32>
    %190 = arith.subf %189, %182 : vector<8x128xf32>
    %191 = arith.mulf %190, %188 : vector<8x128xf32>
    %192 = arith.mulf %182, %162 : vector<8x128xf32>
    %193 = arith.addf %191, %192 : vector<8x128xf32>
    %c6_i32 = arith.constant 6 : i32
    %c0_48 = arith.constant 0 : index
    %194 = arith.index_cast %c6_i32 : i32 to index
    %c0_49 = arith.constant 0 : index
    %c0_50 = arith.constant 0 : index
    %195 = vector.load %arg2[%c0_48, %194, %c0_49, %c0_50] : memref<1x8x8x384xf32, #tpu.memory_space<vmem>>, vector<1x1x8x384xf32>
    %196 = vector.shape_cast %195 : vector<1x1x8x384xf32> to vector<8x384xf32>
    %cst_51 = arith.constant dense<0.000000e+00> : vector<8x384xf32>
    %197 = tpu.matmul %193, %3, %cst_51 {dimension_numbers = #tpu.dot_dimension_numbers<[1], [0], [0], [1], [0, 0, 1, 1], [], []>} : vector<8x128xf32>, vector<128x384xf32>, vector<8x384xf32> -> vector<8x384xf32>
    %198 = vector.extract_strided_slice %196 {offsets = [0, 0], sizes = [8, 128], strides = [1, 1]} : vector<8x384xf32> to vector<8x128xf32>
    %199 = vector.extract_strided_slice %197 {offsets = [0, 0], sizes = [8, 128], strides = [1, 1]} : vector<8x384xf32> to vector<8x128xf32>
    %200 = arith.addf %198, %199 : vector<8x128xf32>
    %201 = arith.negf %200 : vector<8x128xf32>
    %202 = math.exp %201 : vector<8x128xf32>
    %cst_52 = arith.constant 1.000000e+00 : f32
    %203 = vector.broadcast %cst_52 : f32 to vector<8x128xf32>
    %204 = arith.addf %203, %202 : vector<8x128xf32>
    %205 = arith.divf %203, %204 : vector<8x128xf32>
    %206 = vector.extract_strided_slice %196 {offsets = [0, 128], sizes = [8, 128], strides = [1, 1]} : vector<8x384xf32> to vector<8x128xf32>
    %207 = vector.extract_strided_slice %197 {offsets = [0, 128], sizes = [8, 128], strides = [1, 1]} : vector<8x384xf32> to vector<8x128xf32>
    %208 = arith.addf %206, %207 : vector<8x128xf32>
    %209 = arith.negf %208 : vector<8x128xf32>
    %210 = math.exp %209 : vector<8x128xf32>
    %cst_53 = arith.constant 1.000000e+00 : f32
    %211 = vector.broadcast %cst_53 : f32 to vector<8x128xf32>
    %212 = arith.addf %211, %210 : vector<8x128xf32>
    %213 = arith.divf %211, %212 : vector<8x128xf32>
    %214 = vector.extract_strided_slice %196 {offsets = [0, 256], sizes = [8, 128], strides = [1, 1]} : vector<8x384xf32> to vector<8x128xf32>
    %215 = vector.extract_strided_slice %197 {offsets = [0, 256], sizes = [8, 128], strides = [1, 1]} : vector<8x384xf32> to vector<8x128xf32>
    %216 = arith.addf %215, %6 : vector<8x128xf32>
    %217 = arith.mulf %205, %216 : vector<8x128xf32>
    %218 = arith.addf %214, %217 : vector<8x128xf32>
    %219 = math.tanh %218 : vector<8x128xf32>
    %cst_54 = arith.constant 1.000000e+00 : f32
    %220 = vector.broadcast %cst_54 : f32 to vector<8x128xf32>
    %221 = arith.subf %220, %213 : vector<8x128xf32>
    %222 = arith.mulf %221, %219 : vector<8x128xf32>
    %223 = arith.mulf %213, %193 : vector<8x128xf32>
    %224 = arith.addf %222, %223 : vector<8x128xf32>
    %c7_i32 = arith.constant 7 : i32
    %c0_55 = arith.constant 0 : index
    %225 = arith.index_cast %c7_i32 : i32 to index
    %c0_56 = arith.constant 0 : index
    %c0_57 = arith.constant 0 : index
    %226 = vector.load %arg2[%c0_55, %225, %c0_56, %c0_57] : memref<1x8x8x384xf32, #tpu.memory_space<vmem>>, vector<1x1x8x384xf32>
    %227 = vector.shape_cast %226 : vector<1x1x8x384xf32> to vector<8x384xf32>
    %cst_58 = arith.constant dense<0.000000e+00> : vector<8x384xf32>
    %228 = tpu.matmul %224, %3, %cst_58 {dimension_numbers = #tpu.dot_dimension_numbers<[1], [0], [0], [1], [0, 0, 1, 1], [], []>} : vector<8x128xf32>, vector<128x384xf32>, vector<8x384xf32> -> vector<8x384xf32>
    %229 = vector.extract_strided_slice %227 {offsets = [0, 0], sizes = [8, 128], strides = [1, 1]} : vector<8x384xf32> to vector<8x128xf32>
    %230 = vector.extract_strided_slice %228 {offsets = [0, 0], sizes = [8, 128], strides = [1, 1]} : vector<8x384xf32> to vector<8x128xf32>
    %231 = arith.addf %229, %230 : vector<8x128xf32>
    %232 = arith.negf %231 : vector<8x128xf32>
    %233 = math.exp %232 : vector<8x128xf32>
    %cst_59 = arith.constant 1.000000e+00 : f32
    %234 = vector.broadcast %cst_59 : f32 to vector<8x128xf32>
    %235 = arith.addf %234, %233 : vector<8x128xf32>
    %236 = arith.divf %234, %235 : vector<8x128xf32>
    %237 = vector.extract_strided_slice %227 {offsets = [0, 128], sizes = [8, 128], strides = [1, 1]} : vector<8x384xf32> to vector<8x128xf32>
    %238 = vector.extract_strided_slice %228 {offsets = [0, 128], sizes = [8, 128], strides = [1, 1]} : vector<8x384xf32> to vector<8x128xf32>
    %239 = arith.addf %237, %238 : vector<8x128xf32>
    %240 = arith.negf %239 : vector<8x128xf32>
    %241 = math.exp %240 : vector<8x128xf32>
    %cst_60 = arith.constant 1.000000e+00 : f32
    %242 = vector.broadcast %cst_60 : f32 to vector<8x128xf32>
    %243 = arith.addf %242, %241 : vector<8x128xf32>
    %244 = arith.divf %242, %243 : vector<8x128xf32>
    %245 = vector.extract_strided_slice %227 {offsets = [0, 256], sizes = [8, 128], strides = [1, 1]} : vector<8x384xf32> to vector<8x128xf32>
    %246 = vector.extract_strided_slice %228 {offsets = [0, 256], sizes = [8, 128], strides = [1, 1]} : vector<8x384xf32> to vector<8x128xf32>
    %247 = arith.addf %246, %6 : vector<8x128xf32>
    %248 = arith.mulf %236, %247 : vector<8x128xf32>
    %249 = arith.addf %245, %248 : vector<8x128xf32>
    %250 = math.tanh %249 : vector<8x128xf32>
    %cst_61 = arith.constant 1.000000e+00 : f32
    %251 = vector.broadcast %cst_61 : f32 to vector<8x128xf32>
    %252 = arith.subf %251, %244 : vector<8x128xf32>
    %253 = arith.mulf %252, %250 : vector<8x128xf32>
    %254 = arith.mulf %244, %224 : vector<8x128xf32>
    %255 = arith.addf %253, %254 : vector<8x128xf32>
    %c8_i32 = arith.constant 8 : i32
    %c0_62 = arith.constant 0 : index
    %c0_63 = arith.constant 0 : index
    %256 = vector.load %arg8[%c0_62, %c0_63] : memref<8x128xf32, #tpu.memory_space<vmem>>, vector<8x128xf32>
    tpu.vector_store %arg8[%c0_62, %c0_63], %255 {strides = array<i32>} : memref<8x128xf32, #tpu.memory_space<vmem>>, vector<8x128xf32>,
    %c0_i32_64 = arith.constant 0 : i32
    %257 = arith.cmpi eq, %arg1, %c0_i32_64 : i32
    %258 = arith.extui %257 : i1 to i32
    %c0_i32_65 = arith.constant 0 : i32
    %259 = arith.cmpi ne, %258, %c0_i32_65 : i32
    scf.if %259 {
      %c0_66 = arith.constant 0 : index
      %c0_67 = arith.constant 0 : index
      %260 = vector.load %arg5[%c0_66, %c0_67] : memref<128x128xf32, #tpu.memory_space<vmem>>, vector<128x128xf32>
      %c0_68 = arith.constant 0 : index
      %c0_69 = arith.constant 0 : index
      %261 = vector.load %arg6[%c0_68, %c0_69] : memref<1x128xf32, #tpu.memory_space<vmem>>, vector<1x128xf32>
      %cst_70 = arith.constant dense<0.000000e+00> : vector<8x128xf32>
      %262 = tpu.matmul %255, %260, %cst_70 {dimension_numbers = #tpu.dot_dimension_numbers<[1], [0], [0], [1], [0, 0, 1, 1], [], []>} : vector<8x128xf32>, vector<128x128xf32>, vector<8x128xf32> -> vector<8x128xf32>
      %263 = vector.broadcast %261 : vector<1x128xf32> to vector<8x128xf32>
      %264 = arith.addf %262, %263 : vector<8x128xf32>
      %c0_71 = arith.constant 0 : index
      %c0_72 = arith.constant 0 : index
      %265 = vector.load %arg7[%c0_71, %c0_72] : memref<8x128xf32, #tpu.memory_space<vmem>>, vector<8x128xf32>
      tpu.vector_store %arg7[%c0_71, %c0_72], %264 {strides = array<i32>} : memref<8x128xf32, #tpu.memory_space<vmem>>, vector<8x128xf32>,
    } else {
    }
    return
  }
  func.func @transform_0(%arg0: i32, %arg1: i32) -> (i32, i32, i32, i32) {
    %c0_i32 = arith.constant 0 : i32
    %c0_i32_0 = arith.constant 0 : i32
    %c0_i32_1 = arith.constant 0 : i32
    return %arg0, %arg1, %c0_i32, %c0_i32_0 : i32, i32, i32, i32
  }
  func.func @transform_1(%arg0: i32, %arg1: i32) -> (i32, i32) {
    %c0_i32 = arith.constant 0 : i32
    %c0_i32_0 = arith.constant 0 : i32
    %c0_i32_1 = arith.constant 0 : i32
    return %c0_i32, %c0_i32_0 : i32, i32
  }
  func.func @transform_2(%arg0: i32, %arg1: i32) -> (i32, i32) {
    %c0_i32 = arith.constant 0 : i32
    %c0_i32_0 = arith.constant 0 : i32
    %c0_i32_1 = arith.constant 0 : i32
    return %c0_i32, %c0_i32_0 : i32, i32
  }
  func.func @transform_3(%arg0: i32, %arg1: i32) -> (i32, i32) {
    %c0_i32 = arith.constant 0 : i32
    %c0_i32_0 = arith.constant 0 : i32
    %c0_i32_1 = arith.constant 0 : i32
    return %c0_i32, %c0_i32_0 : i32, i32
  }
  func.func @transform_4(%arg0: i32, %arg1: i32) -> (i32, i32) {
    %c0_i32 = arith.constant 0 : i32
    %c0_i32_0 = arith.constant 0 : i32
    %c0_i32_1 = arith.constant 0 : i32
    return %c0_i32, %c0_i32_0 : i32, i32
  }
  func.func @transform_5(%arg0: i32, %arg1: i32) -> (i32, i32) {
    %c0_i32 = arith.constant 0 : i32
    %c0_i32_0 = arith.constant 0 : i32
    return %arg0, %c0_i32 : i32, i32
  }
}

module attributes {stable_mosaic.version = 11 : i64} {
  func.func @gru_recurrence_kernel(%arg0: i32, %arg1: i32, %arg2: memref<1x8x8x384xf32, #tpu.memory_space<vmem>>, %arg3: memref<128x384xf32, #tpu.memory_space<vmem>>, %arg4: memref<1x128xf32, #tpu.memory_space<vmem>>, %arg5: memref<128x128xf32, #tpu.memory_space<vmem>>, %arg6: memref<1x128xf32, #tpu.memory_space<vmem>>, %arg7: memref<8x128xf32, #tpu.memory_space<vmem>>, %arg8: memref<8x128xf32, #tpu.memory_space<vmem>>) attributes {dimension_semantics = [#tpu.dimension_semantics<parallel>, #tpu.dimension_semantics<arbitrary>], iteration_bounds = array<i64: 1, 1>, scalar_prefetch = 0 : i64, scratch_operands = 1 : i64, tpu.core_type = #tpu.core_type<tc>, window_params = [{transform_indices = @transform_0, window_bounds = array<i64: 1, 8, 8, 384>}, {pipeline_mode = #tpu.pipeline_mode<synchronous>, transform_indices = @transform_1, window_bounds = array<i64: 128, 384>}, {pipeline_mode = #tpu.pipeline_mode<synchronous>, transform_indices = @transform_2, window_bounds = array<i64: 1, 128>}, {pipeline_mode = #tpu.pipeline_mode<synchronous>, transform_indices = @transform_3, window_bounds = array<i64: 128, 128>}, {pipeline_mode = #tpu.pipeline_mode<synchronous>, transform_indices = @transform_4, window_bounds = array<i64: 1, 128>}, {transform_indices = @transform_5, window_bounds = array<i64: 8, 128>}]} {
    %c0_i32 = arith.constant 0 : i32
    %0 = arith.cmpi eq, %arg1, %c0_i32 : i32
    %1 = arith.extui %0 : i1 to i32
    %c0_i32_0 = arith.constant 0 : i32
    %2 = arith.cmpi ne, %1, %c0_i32_0 : i32
    scf.if %2 {
      %cst_66 = arith.constant 0.000000e+00 : f32
      %260 = vector.broadcast %cst_66 : f32 to vector<8x128xf32>
      %c0_67 = arith.constant 0 : index
      %c0_68 = arith.constant 0 : index
      %261 = vector.load %arg8[%c0_67, %c0_68] : memref<8x128xf32, #tpu.memory_space<vmem>>, vector<8x128xf32>
      tpu.vector_store %arg8[%c0_67, %c0_68], %260 {strides = array<i32>} : memref<8x128xf32, #tpu.memory_space<vmem>>, vector<8x128xf32>,
    } else {
    }
    %c0 = arith.constant 0 : index
    %c0_1 = arith.constant 0 : index
    %3 = vector.load %arg3[%c0, %c0_1] : memref<128x384xf32, #tpu.memory_space<vmem>>, vector<128x384xf32>
    %c0_2 = arith.constant 0 : index
    %c0_3 = arith.constant 0 : index
    %4 = vector.load %arg4[%c0_2, %c0_3] : memref<1x128xf32, #tpu.memory_space<vmem>>, vector<1x128xf32>
    %5 = vector.shape_cast %4 : vector<1x128xf32> to vector<1x128xf32>
    %6 = vector.broadcast %5 : vector<1x128xf32> to vector<8x128xf32>
    %c0_4 = arith.constant 0 : index
    %c0_5 = arith.constant 0 : index
    %7 = vector.load %arg8[%c0_4, %c0_5] : memref<8x128xf32, #tpu.memory_space<vmem>>, vector<8x128xf32>
    %c0_i32_6 = arith.constant 0 : i32
    %c0_7 = arith.constant 0 : index
    %8 = arith.index_cast %c0_i32_6 : i32 to index
    %c0_8 = arith.constant 0 : index
    %c0_9 = arith.constant 0 : index
    %9 = vector.load %arg2[%c0_7, %8, %c0_8, %c0_9] : memref<1x8x8x384xf32, #tpu.memory_space<vmem>>, vector<1x1x8x384xf32>
    %10 = vector.shape_cast %9 : vector<1x1x8x384xf32> to vector<8x384xf32>
    %cst = arith.constant dense<0.000000e+00> : vector<8x384xf32>
    %11 = tpu.matmul %7, %3, %cst {dimension_numbers = #tpu.dot_dimension_numbers<[1], [0], [0], [1], [0, 0, 1, 1], [], []>} : vector<8x128xf32>, vector<128x384xf32>, vector<8x384xf32> -> vector<8x384xf32>
    %12 = vector.extract_strided_slice %10 {offsets = [0, 0], sizes = [8, 128], strides = [1, 1]} : vector<8x384xf32> to vector<8x128xf32>
    %13 = vector.extract_strided_slice %11 {offsets = [0, 0], sizes = [8, 128], strides = [1, 1]} : vector<8x384xf32> to vector<8x128xf32>
    %14 = arith.addf %12, %13 : vector<8x128xf32>
    %15 = arith.negf %14 : vector<8x128xf32>
    %16 = math.exp %15 : vector<8x128xf32>
    %cst_10 = arith.constant 1.000000e+00 : f32
    %17 = vector.broadcast %cst_10 : f32 to vector<8x128xf32>
    %18 = arith.addf %17, %16 : vector<8x128xf32>
    %19 = arith.divf %17, %18 : vector<8x128xf32>
    %20 = vector.extract_strided_slice %10 {offsets = [0, 128], sizes = [8, 128], strides = [1, 1]} : vector<8x384xf32> to vector<8x128xf32>
    %21 = vector.extract_strided_slice %11 {offsets = [0, 128], sizes = [8, 128], strides = [1, 1]} : vector<8x384xf32> to vector<8x128xf32>
    %22 = arith.addf %20, %21 : vector<8x128xf32>
    %23 = arith.negf %22 : vector<8x128xf32>
    %24 = math.exp %23 : vector<8x128xf32>
    %cst_11 = arith.constant 1.000000e+00 : f32
    %25 = vector.broadcast %cst_11 : f32 to vector<8x128xf32>
    %26 = arith.addf %25, %24 : vector<8x128xf32>
    %27 = arith.divf %25, %26 : vector<8x128xf32>
    %28 = vector.extract_strided_slice %10 {offsets = [0, 256], sizes = [8, 128], strides = [1, 1]} : vector<8x384xf32> to vector<8x128xf32>
    %29 = vector.extract_strided_slice %11 {offsets = [0, 256], sizes = [8, 128], strides = [1, 1]} : vector<8x384xf32> to vector<8x128xf32>
    %30 = arith.addf %29, %6 : vector<8x128xf32>
    %31 = arith.mulf %19, %30 : vector<8x128xf32>
    %32 = arith.addf %28, %31 : vector<8x128xf32>
    %33 = math.tanh %32 : vector<8x128xf32>
    %cst_12 = arith.constant 1.000000e+00 : f32
    %34 = vector.broadcast %cst_12 : f32 to vector<8x128xf32>
    %35 = arith.subf %34, %27 : vector<8x128xf32>
    %36 = arith.mulf %35, %33 : vector<8x128xf32>
    %37 = arith.mulf %27, %7 : vector<8x128xf32>
    %38 = arith.addf %36, %37 : vector<8x128xf32>
    %c1_i32 = arith.constant 1 : i32
    %c0_13 = arith.constant 0 : index
    %39 = arith.index_cast %c1_i32 : i32 to index
    %c0_14 = arith.constant 0 : index
    %c0_15 = arith.constant 0 : index
    %40 = vector.load %arg2[%c0_13, %39, %c0_14, %c0_15] : memref<1x8x8x384xf32, #tpu.memory_space<vmem>>, vector<1x1x8x384xf32>
    %41 = vector.shape_cast %40 : vector<1x1x8x384xf32> to vector<8x384xf32>
    %cst_16 = arith.constant dense<0.000000e+00> : vector<8x384xf32>
    %42 = tpu.matmul %38, %3, %cst_16 {dimension_numbers = #tpu.dot_dimension_numbers<[1], [0], [0], [1], [0, 0, 1, 1], [], []>} : vector<8x128xf32>, vector<128x384xf32>, vector<8x384xf32> -> vector<8x384xf32>
    %43 = vector.extract_strided_slice %41 {offsets = [0, 0], sizes = [8, 128], strides = [1, 1]} : vector<8x384xf32> to vector<8x128xf32>
    %44 = vector.extract_strided_slice %42 {offsets = [0, 0], sizes = [8, 128], strides = [1, 1]} : vector<8x384xf32> to vector<8x128xf32>
    %45 = arith.addf %43, %44 : vector<8x128xf32>
    %46 = arith.negf %45 : vector<8x128xf32>
    %47 = math.exp %46 : vector<8x128xf32>
    %cst_17 = arith.constant 1.000000e+00 : f32
    %48 = vector.broadcast %cst_17 : f32 to vector<8x128xf32>
    %49 = arith.addf %48, %47 : vector<8x128xf32>
    %50 = arith.divf %48, %49 : vector<8x128xf32>
    %51 = vector.extract_strided_slice %41 {offsets = [0, 128], sizes = [8, 128], strides = [1, 1]} : vector<8x384xf32> to vector<8x128xf32>
    %52 = vector.extract_strided_slice %42 {offsets = [0, 128], sizes = [8, 128], strides = [1, 1]} : vector<8x384xf32> to vector<8x128xf32>
    %53 = arith.addf %51, %52 : vector<8x128xf32>
    %54 = arith.negf %53 : vector<8x128xf32>
    %55 = math.exp %54 : vector<8x128xf32>
    %cst_18 = arith.constant 1.000000e+00 : f32
    %56 = vector.broadcast %cst_18 : f32 to vector<8x128xf32>
    %57 = arith.addf %56, %55 : vector<8x128xf32>
    %58 = arith.divf %56, %57 : vector<8x128xf32>
    %59 = vector.extract_strided_slice %41 {offsets = [0, 256], sizes = [8, 128], strides = [1, 1]} : vector<8x384xf32> to vector<8x128xf32>
    %60 = vector.extract_strided_slice %42 {offsets = [0, 256], sizes = [8, 128], strides = [1, 1]} : vector<8x384xf32> to vector<8x128xf32>
    %61 = arith.addf %60, %6 : vector<8x128xf32>
    %62 = arith.mulf %50, %61 : vector<8x128xf32>
    %63 = arith.addf %59, %62 : vector<8x128xf32>
    %64 = math.tanh %63 : vector<8x128xf32>
    %cst_19 = arith.constant 1.000000e+00 : f32
    %65 = vector.broadcast %cst_19 : f32 to vector<8x128xf32>
    %66 = arith.subf %65, %58 : vector<8x128xf32>
    %67 = arith.mulf %66, %64 : vector<8x128xf32>
    %68 = arith.mulf %58, %38 : vector<8x128xf32>
    %69 = arith.addf %67, %68 : vector<8x128xf32>
    %c2_i32 = arith.constant 2 : i32
    %c0_20 = arith.constant 0 : index
    %70 = arith.index_cast %c2_i32 : i32 to index
    %c0_21 = arith.constant 0 : index
    %c0_22 = arith.constant 0 : index
    %71 = vector.load %arg2[%c0_20, %70, %c0_21, %c0_22] : memref<1x8x8x384xf32, #tpu.memory_space<vmem>>, vector<1x1x8x384xf32>
    %72 = vector.shape_cast %71 : vector<1x1x8x384xf32> to vector<8x384xf32>
    %cst_23 = arith.constant dense<0.000000e+00> : vector<8x384xf32>
    %73 = tpu.matmul %69, %3, %cst_23 {dimension_numbers = #tpu.dot_dimension_numbers<[1], [0], [0], [1], [0, 0, 1, 1], [], []>} : vector<8x128xf32>, vector<128x384xf32>, vector<8x384xf32> -> vector<8x384xf32>
    %74 = vector.extract_strided_slice %72 {offsets = [0, 0], sizes = [8, 128], strides = [1, 1]} : vector<8x384xf32> to vector<8x128xf32>
    %75 = vector.extract_strided_slice %73 {offsets = [0, 0], sizes = [8, 128], strides = [1, 1]} : vector<8x384xf32> to vector<8x128xf32>
    %76 = arith.addf %74, %75 : vector<8x128xf32>
    %77 = arith.negf %76 : vector<8x128xf32>
    %78 = math.exp %77 : vector<8x128xf32>
    %cst_24 = arith.constant 1.000000e+00 : f32
    %79 = vector.broadcast %cst_24 : f32 to vector<8x128xf32>
    %80 = arith.addf %79, %78 : vector<8x128xf32>
    %81 = arith.divf %79, %80 : vector<8x128xf32>
    %82 = vector.extract_strided_slice %72 {offsets = [0, 128], sizes = [8, 128], strides = [1, 1]} : vector<8x384xf32> to vector<8x128xf32>
    %83 = vector.extract_strided_slice %73 {offsets = [0, 128], sizes = [8, 128], strides = [1, 1]} : vector<8x384xf32> to vector<8x128xf32>
    %84 = arith.addf %82, %83 : vector<8x128xf32>
    %85 = arith.negf %84 : vector<8x128xf32>
    %86 = math.exp %85 : vector<8x128xf32>
    %cst_25 = arith.constant 1.000000e+00 : f32
    %87 = vector.broadcast %cst_25 : f32 to vector<8x128xf32>
    %88 = arith.addf %87, %86 : vector<8x128xf32>
    %89 = arith.divf %87, %88 : vector<8x128xf32>
    %90 = vector.extract_strided_slice %72 {offsets = [0, 256], sizes = [8, 128], strides = [1, 1]} : vector<8x384xf32> to vector<8x128xf32>
    %91 = vector.extract_strided_slice %73 {offsets = [0, 256], sizes = [8, 128], strides = [1, 1]} : vector<8x384xf32> to vector<8x128xf32>
    %92 = arith.addf %91, %6 : vector<8x128xf32>
    %93 = arith.mulf %81, %92 : vector<8x128xf32>
    %94 = arith.addf %90, %93 : vector<8x128xf32>
    %95 = math.tanh %94 : vector<8x128xf32>
    %cst_26 = arith.constant 1.000000e+00 : f32
    %96 = vector.broadcast %cst_26 : f32 to vector<8x128xf32>
    %97 = arith.subf %96, %89 : vector<8x128xf32>
    %98 = arith.mulf %97, %95 : vector<8x128xf32>
    %99 = arith.mulf %89, %69 : vector<8x128xf32>
    %100 = arith.addf %98, %99 : vector<8x128xf32>
    %c3_i32 = arith.constant 3 : i32
    %c0_27 = arith.constant 0 : index
    %101 = arith.index_cast %c3_i32 : i32 to index
    %c0_28 = arith.constant 0 : index
    %c0_29 = arith.constant 0 : index
    %102 = vector.load %arg2[%c0_27, %101, %c0_28, %c0_29] : memref<1x8x8x384xf32, #tpu.memory_space<vmem>>, vector<1x1x8x384xf32>
    %103 = vector.shape_cast %102 : vector<1x1x8x384xf32> to vector<8x384xf32>
    %cst_30 = arith.constant dense<0.000000e+00> : vector<8x384xf32>
    %104 = tpu.matmul %100, %3, %cst_30 {dimension_numbers = #tpu.dot_dimension_numbers<[1], [0], [0], [1], [0, 0, 1, 1], [], []>} : vector<8x128xf32>, vector<128x384xf32>, vector<8x384xf32> -> vector<8x384xf32>
    %105 = vector.extract_strided_slice %103 {offsets = [0, 0], sizes = [8, 128], strides = [1, 1]} : vector<8x384xf32> to vector<8x128xf32>
    %106 = vector.extract_strided_slice %104 {offsets = [0, 0], sizes = [8, 128], strides = [1, 1]} : vector<8x384xf32> to vector<8x128xf32>
    %107 = arith.addf %105, %106 : vector<8x128xf32>
    %108 = arith.negf %107 : vector<8x128xf32>
    %109 = math.exp %108 : vector<8x128xf32>
    %cst_31 = arith.constant 1.000000e+00 : f32
    %110 = vector.broadcast %cst_31 : f32 to vector<8x128xf32>
    %111 = arith.addf %110, %109 : vector<8x128xf32>
    %112 = arith.divf %110, %111 : vector<8x128xf32>
    %113 = vector.extract_strided_slice %103 {offsets = [0, 128], sizes = [8, 128], strides = [1, 1]} : vector<8x384xf32> to vector<8x128xf32>
    %114 = vector.extract_strided_slice %104 {offsets = [0, 128], sizes = [8, 128], strides = [1, 1]} : vector<8x384xf32> to vector<8x128xf32>
    %115 = arith.addf %113, %114 : vector<8x128xf32>
    %116 = arith.negf %115 : vector<8x128xf32>
    %117 = math.exp %116 : vector<8x128xf32>
    %cst_32 = arith.constant 1.000000e+00 : f32
    %118 = vector.broadcast %cst_32 : f32 to vector<8x128xf32>
    %119 = arith.addf %118, %117 : vector<8x128xf32>
    %120 = arith.divf %118, %119 : vector<8x128xf32>
    %121 = vector.extract_strided_slice %103 {offsets = [0, 256], sizes = [8, 128], strides = [1, 1]} : vector<8x384xf32> to vector<8x128xf32>
    %122 = vector.extract_strided_slice %104 {offsets = [0, 256], sizes = [8, 128], strides = [1, 1]} : vector<8x384xf32> to vector<8x128xf32>
    %123 = arith.addf %122, %6 : vector<8x128xf32>
    %124 = arith.mulf %112, %123 : vector<8x128xf32>
    %125 = arith.addf %121, %124 : vector<8x128xf32>
    %126 = math.tanh %125 : vector<8x128xf32>
    %cst_33 = arith.constant 1.000000e+00 : f32
    %127 = vector.broadcast %cst_33 : f32 to vector<8x128xf32>
    %128 = arith.subf %127, %120 : vector<8x128xf32>
    %129 = arith.mulf %128, %126 : vector<8x128xf32>
    %130 = arith.mulf %120, %100 : vector<8x128xf32>
    %131 = arith.addf %129, %130 : vector<8x128xf32>
    %c4_i32 = arith.constant 4 : i32
    %c0_34 = arith.constant 0 : index
    %132 = arith.index_cast %c4_i32 : i32 to index
    %c0_35 = arith.constant 0 : index
    %c0_36 = arith.constant 0 : index
    %133 = vector.load %arg2[%c0_34, %132, %c0_35, %c0_36] : memref<1x8x8x384xf32, #tpu.memory_space<vmem>>, vector<1x1x8x384xf32>
    %134 = vector.shape_cast %133 : vector<1x1x8x384xf32> to vector<8x384xf32>
    %cst_37 = arith.constant dense<0.000000e+00> : vector<8x384xf32>
    %135 = tpu.matmul %131, %3, %cst_37 {dimension_numbers = #tpu.dot_dimension_numbers<[1], [0], [0], [1], [0, 0, 1, 1], [], []>} : vector<8x128xf32>, vector<128x384xf32>, vector<8x384xf32> -> vector<8x384xf32>
    %136 = vector.extract_strided_slice %134 {offsets = [0, 0], sizes = [8, 128], strides = [1, 1]} : vector<8x384xf32> to vector<8x128xf32>
    %137 = vector.extract_strided_slice %135 {offsets = [0, 0], sizes = [8, 128], strides = [1, 1]} : vector<8x384xf32> to vector<8x128xf32>
    %138 = arith.addf %136, %137 : vector<8x128xf32>
    %139 = arith.negf %138 : vector<8x128xf32>
    %140 = math.exp %139 : vector<8x128xf32>
    %cst_38 = arith.constant 1.000000e+00 : f32
    %141 = vector.broadcast %cst_38 : f32 to vector<8x128xf32>
    %142 = arith.addf %141, %140 : vector<8x128xf32>
    %143 = arith.divf %141, %142 : vector<8x128xf32>
    %144 = vector.extract_strided_slice %134 {offsets = [0, 128], sizes = [8, 128], strides = [1, 1]} : vector<8x384xf32> to vector<8x128xf32>
    %145 = vector.extract_strided_slice %135 {offsets = [0, 128], sizes = [8, 128], strides = [1, 1]} : vector<8x384xf32> to vector<8x128xf32>
    %146 = arith.addf %144, %145 : vector<8x128xf32>
    %147 = arith.negf %146 : vector<8x128xf32>
    %148 = math.exp %147 : vector<8x128xf32>
    %cst_39 = arith.constant 1.000000e+00 : f32
    %149 = vector.broadcast %cst_39 : f32 to vector<8x128xf32>
    %150 = arith.addf %149, %148 : vector<8x128xf32>
    %151 = arith.divf %149, %150 : vector<8x128xf32>
    %152 = vector.extract_strided_slice %134 {offsets = [0, 256], sizes = [8, 128], strides = [1, 1]} : vector<8x384xf32> to vector<8x128xf32>
    %153 = vector.extract_strided_slice %135 {offsets = [0, 256], sizes = [8, 128], strides = [1, 1]} : vector<8x384xf32> to vector<8x128xf32>
    %154 = arith.addf %153, %6 : vector<8x128xf32>
    %155 = arith.mulf %143, %154 : vector<8x128xf32>
    %156 = arith.addf %152, %155 : vector<8x128xf32>
    %157 = math.tanh %156 : vector<8x128xf32>
    %cst_40 = arith.constant 1.000000e+00 : f32
    %158 = vector.broadcast %cst_40 : f32 to vector<8x128xf32>
    %159 = arith.subf %158, %151 : vector<8x128xf32>
    %160 = arith.mulf %159, %157 : vector<8x128xf32>
    %161 = arith.mulf %151, %131 : vector<8x128xf32>
    %162 = arith.addf %160, %161 : vector<8x128xf32>
    %c5_i32 = arith.constant 5 : i32
    %c0_41 = arith.constant 0 : index
    %163 = arith.index_cast %c5_i32 : i32 to index
    %c0_42 = arith.constant 0 : index
    %c0_43 = arith.constant 0 : index
    %164 = vector.load %arg2[%c0_41, %163, %c0_42, %c0_43] : memref<1x8x8x384xf32, #tpu.memory_space<vmem>>, vector<1x1x8x384xf32>
    %165 = vector.shape_cast %164 : vector<1x1x8x384xf32> to vector<8x384xf32>
    %cst_44 = arith.constant dense<0.000000e+00> : vector<8x384xf32>
    %166 = tpu.matmul %162, %3, %cst_44 {dimension_numbers = #tpu.dot_dimension_numbers<[1], [0], [0], [1], [0, 0, 1, 1], [], []>} : vector<8x128xf32>, vector<128x384xf32>, vector<8x384xf32> -> vector<8x384xf32>
    %167 = vector.extract_strided_slice %165 {offsets = [0, 0], sizes = [8, 128], strides = [1, 1]} : vector<8x384xf32> to vector<8x128xf32>
    %168 = vector.extract_strided_slice %166 {offsets = [0, 0], sizes = [8, 128], strides = [1, 1]} : vector<8x384xf32> to vector<8x128xf32>
    %169 = arith.addf %167, %168 : vector<8x128xf32>
    %170 = arith.negf %169 : vector<8x128xf32>
    %171 = math.exp %170 : vector<8x128xf32>
    %cst_45 = arith.constant 1.000000e+00 : f32
    %172 = vector.broadcast %cst_45 : f32 to vector<8x128xf32>
    %173 = arith.addf %172, %171 : vector<8x128xf32>
    %174 = arith.divf %172, %173 : vector<8x128xf32>
    %175 = vector.extract_strided_slice %165 {offsets = [0, 128], sizes = [8, 128], strides = [1, 1]} : vector<8x384xf32> to vector<8x128xf32>
    %176 = vector.extract_strided_slice %166 {offsets = [0, 128], sizes = [8, 128], strides = [1, 1]} : vector<8x384xf32> to vector<8x128xf32>
    %177 = arith.addf %175, %176 : vector<8x128xf32>
    %178 = arith.negf %177 : vector<8x128xf32>
    %179 = math.exp %178 : vector<8x128xf32>
    %cst_46 = arith.constant 1.000000e+00 : f32
    %180 = vector.broadcast %cst_46 : f32 to vector<8x128xf32>
    %181 = arith.addf %180, %179 : vector<8x128xf32>
    %182 = arith.divf %180, %181 : vector<8x128xf32>
    %183 = vector.extract_strided_slice %165 {offsets = [0, 256], sizes = [8, 128], strides = [1, 1]} : vector<8x384xf32> to vector<8x128xf32>
    %184 = vector.extract_strided_slice %166 {offsets = [0, 256], sizes = [8, 128], strides = [1, 1]} : vector<8x384xf32> to vector<8x128xf32>
    %185 = arith.addf %184, %6 : vector<8x128xf32>
    %186 = arith.mulf %174, %185 : vector<8x128xf32>
    %187 = arith.addf %183, %186 : vector<8x128xf32>
    %188 = math.tanh %187 : vector<8x128xf32>
    %cst_47 = arith.constant 1.000000e+00 : f32
    %189 = vector.broadcast %cst_47 : f32 to vector<8x128xf32>
    %190 = arith.subf %189, %182 : vector<8x128xf32>
    %191 = arith.mulf %190, %188 : vector<8x128xf32>
    %192 = arith.mulf %182, %162 : vector<8x128xf32>
    %193 = arith.addf %191, %192 : vector<8x128xf32>
    %c6_i32 = arith.constant 6 : i32
    %c0_48 = arith.constant 0 : index
    %194 = arith.index_cast %c6_i32 : i32 to index
    %c0_49 = arith.constant 0 : index
    %c0_50 = arith.constant 0 : index
    %195 = vector.load %arg2[%c0_48, %194, %c0_49, %c0_50] : memref<1x8x8x384xf32, #tpu.memory_space<vmem>>, vector<1x1x8x384xf32>
    %196 = vector.shape_cast %195 : vector<1x1x8x384xf32> to vector<8x384xf32>
    %cst_51 = arith.constant dense<0.000000e+00> : vector<8x384xf32>
    %197 = tpu.matmul %193, %3, %cst_51 {dimension_numbers = #tpu.dot_dimension_numbers<[1], [0], [0], [1], [0, 0, 1, 1], [], []>} : vector<8x128xf32>, vector<128x384xf32>, vector<8x384xf32> -> vector<8x384xf32>
    %198 = vector.extract_strided_slice %196 {offsets = [0, 0], sizes = [8, 128], strides = [1, 1]} : vector<8x384xf32> to vector<8x128xf32>
    %199 = vector.extract_strided_slice %197 {offsets = [0, 0], sizes = [8, 128], strides = [1, 1]} : vector<8x384xf32> to vector<8x128xf32>
    %200 = arith.addf %198, %199 : vector<8x128xf32>
    %201 = arith.negf %200 : vector<8x128xf32>
    %202 = math.exp %201 : vector<8x128xf32>
    %cst_52 = arith.constant 1.000000e+00 : f32
    %203 = vector.broadcast %cst_52 : f32 to vector<8x128xf32>
    %204 = arith.addf %203, %202 : vector<8x128xf32>
    %205 = arith.divf %203, %204 : vector<8x128xf32>
    %206 = vector.extract_strided_slice %196 {offsets = [0, 128], sizes = [8, 128], strides = [1, 1]} : vector<8x384xf32> to vector<8x128xf32>
    %207 = vector.extract_strided_slice %197 {offsets = [0, 128], sizes = [8, 128], strides = [1, 1]} : vector<8x384xf32> to vector<8x128xf32>
    %208 = arith.addf %206, %207 : vector<8x128xf32>
    %209 = arith.negf %208 : vector<8x128xf32>
    %210 = math.exp %209 : vector<8x128xf32>
    %cst_53 = arith.constant 1.000000e+00 : f32
    %211 = vector.broadcast %cst_53 : f32 to vector<8x128xf32>
    %212 = arith.addf %211, %210 : vector<8x128xf32>
    %213 = arith.divf %211, %212 : vector<8x128xf32>
    %214 = vector.extract_strided_slice %196 {offsets = [0, 256], sizes = [8, 128], strides = [1, 1]} : vector<8x384xf32> to vector<8x128xf32>
    %215 = vector.extract_strided_slice %197 {offsets = [0, 256], sizes = [8, 128], strides = [1, 1]} : vector<8x384xf32> to vector<8x128xf32>
    %216 = arith.addf %215, %6 : vector<8x128xf32>
    %217 = arith.mulf %205, %216 : vector<8x128xf32>
    %218 = arith.addf %214, %217 : vector<8x128xf32>
    %219 = math.tanh %218 : vector<8x128xf32>
    %cst_54 = arith.constant 1.000000e+00 : f32
    %220 = vector.broadcast %cst_54 : f32 to vector<8x128xf32>
    %221 = arith.subf %220, %213 : vector<8x128xf32>
    %222 = arith.mulf %221, %219 : vector<8x128xf32>
    %223 = arith.mulf %213, %193 : vector<8x128xf32>
    %224 = arith.addf %222, %223 : vector<8x128xf32>
    %c7_i32 = arith.constant 7 : i32
    %c0_55 = arith.constant 0 : index
    %225 = arith.index_cast %c7_i32 : i32 to index
    %c0_56 = arith.constant 0 : index
    %c0_57 = arith.constant 0 : index
    %226 = vector.load %arg2[%c0_55, %225, %c0_56, %c0_57] : memref<1x8x8x384xf32, #tpu.memory_space<vmem>>, vector<1x1x8x384xf32>
    %227 = vector.shape_cast %226 : vector<1x1x8x384xf32> to vector<8x384xf32>
    %cst_58 = arith.constant dense<0.000000e+00> : vector<8x384xf32>
    %228 = tpu.matmul %224, %3, %cst_58 {dimension_numbers = #tpu.dot_dimension_numbers<[1], [0], [0], [1], [0, 0, 1, 1], [], []>} : vector<8x128xf32>, vector<128x384xf32>, vector<8x384xf32> -> vector<8x384xf32>
    %229 = vector.extract_strided_slice %227 {offsets = [0, 0], sizes = [8, 128], strides = [1, 1]} : vector<8x384xf32> to vector<8x128xf32>
    %230 = vector.extract_strided_slice %228 {offsets = [0, 0], sizes = [8, 128], strides = [1, 1]} : vector<8x384xf32> to vector<8x128xf32>
    %231 = arith.addf %229, %230 : vector<8x128xf32>
    %232 = arith.negf %231 : vector<8x128xf32>
    %233 = math.exp %232 : vector<8x128xf32>
    %cst_59 = arith.constant 1.000000e+00 : f32
    %234 = vector.broadcast %cst_59 : f32 to vector<8x128xf32>
    %235 = arith.addf %234, %233 : vector<8x128xf32>
    %236 = arith.divf %234, %235 : vector<8x128xf32>
    %237 = vector.extract_strided_slice %227 {offsets = [0, 128], sizes = [8, 128], strides = [1, 1]} : vector<8x384xf32> to vector<8x128xf32>
    %238 = vector.extract_strided_slice %228 {offsets = [0, 128], sizes = [8, 128], strides = [1, 1]} : vector<8x384xf32> to vector<8x128xf32>
    %239 = arith.addf %237, %238 : vector<8x128xf32>
    %240 = arith.negf %239 : vector<8x128xf32>
    %241 = math.exp %240 : vector<8x128xf32>
    %cst_60 = arith.constant 1.000000e+00 : f32
    %242 = vector.broadcast %cst_60 : f32 to vector<8x128xf32>
    %243 = arith.addf %242, %241 : vector<8x128xf32>
    %244 = arith.divf %242, %243 : vector<8x128xf32>
    %245 = vector.extract_strided_slice %227 {offsets = [0, 256], sizes = [8, 128], strides = [1, 1]} : vector<8x384xf32> to vector<8x128xf32>
    %246 = vector.extract_strided_slice %228 {offsets = [0, 256], sizes = [8, 128], strides = [1, 1]} : vector<8x384xf32> to vector<8x128xf32>
    %247 = arith.addf %246, %6 : vector<8x128xf32>
    %248 = arith.mulf %236, %247 : vector<8x128xf32>
    %249 = arith.addf %245, %248 : vector<8x128xf32>
    %250 = math.tanh %249 : vector<8x128xf32>
    %cst_61 = arith.constant 1.000000e+00 : f32
    %251 = vector.broadcast %cst_61 : f32 to vector<8x128xf32>
    %252 = arith.subf %251, %244 : vector<8x128xf32>
    %253 = arith.mulf %252, %250 : vector<8x128xf32>
    %254 = arith.mulf %244, %224 : vector<8x128xf32>
    %255 = arith.addf %253, %254 : vector<8x128xf32>
    %c8_i32 = arith.constant 8 : i32
    %c0_62 = arith.constant 0 : index
    %c0_63 = arith.constant 0 : index
    %256 = vector.load %arg8[%c0_62, %c0_63] : memref<8x128xf32, #tpu.memory_space<vmem>>, vector<8x128xf32>
    tpu.vector_store %arg8[%c0_62, %c0_63], %255 {strides = array<i32>} : memref<8x128xf32, #tpu.memory_space<vmem>>, vector<8x128xf32>,
    %c0_i32_64 = arith.constant 0 : i32
    %257 = arith.cmpi eq, %arg1, %c0_i32_64 : i32
    %258 = arith.extui %257 : i1 to i32
    %c0_i32_65 = arith.constant 0 : i32
    %259 = arith.cmpi ne, %258, %c0_i32_65 : i32
    scf.if %259 {
      %c0_66 = arith.constant 0 : index
      %c0_67 = arith.constant 0 : index
      %260 = vector.load %arg5[%c0_66, %c0_67] : memref<128x128xf32, #tpu.memory_space<vmem>>, vector<128x128xf32>
      %c0_68 = arith.constant 0 : index
      %c0_69 = arith.constant 0 : index
      %261 = vector.load %arg6[%c0_68, %c0_69] : memref<1x128xf32, #tpu.memory_space<vmem>>, vector<1x128xf32>
      %cst_70 = arith.constant dense<0.000000e+00> : vector<8x128xf32>
      %262 = tpu.matmul %255, %260, %cst_70 {dimension_numbers = #tpu.dot_dimension_numbers<[1], [0], [0], [1], [0, 0, 1, 1], [], []>} : vector<8x128xf32>, vector<128x128xf32>, vector<8x128xf32> -> vector<8x128xf32>
      %263 = vector.broadcast %261 : vector<1x128xf32> to vector<8x128xf32>
      %264 = arith.addf %262, %263 : vector<8x128xf32>
      %c0_71 = arith.constant 0 : index
      %c0_72 = arith.constant 0 : index
      %265 = vector.load %arg7[%c0_71, %c0_72] : memref<8x128xf32, #tpu.memory_space<vmem>>, vector<8x128xf32>
      tpu.vector_store %arg7[%c0_71, %c0_72], %264 {strides = array<i32>} : memref<8x128xf32, #tpu.memory_space<vmem>>, vector<8x128xf32>,
    } else {
    }
    return
  }
  func.func @transform_0(%arg0: i32, %arg1: i32) -> (i32, i32, i32, i32) {
    %c0_i32 = arith.constant 0 : i32
    %c0_i32_0 = arith.constant 0 : i32
    %c0_i32_1 = arith.constant 0 : i32
    return %arg0, %arg1, %c0_i32, %c0_i32_0 : i32, i32, i32, i32
  }
  func.func @transform_1(%arg0: i32, %arg1: i32) -> (i32, i32) {
    %c0_i32 = arith.constant 0 : i32
    %c0_i32_0 = arith.constant 0 : i32
    %c0_i32_1 = arith.constant 0 : i32
    return %c0_i32, %c0_i32_0 : i32, i32
  }
  func.func @transform_2(%arg0: i32, %arg1: i32) -> (i32, i32) {
    %c0_i32 = arith.constant 0 : i32
    %c0_i32_0 = arith.constant 0 : i32
    %c0_i32_1 = arith.constant 0 : i32
    return %c0_i32, %c0_i32_0 : i32, i32
  }
  func.func @transform_3(%arg0: i32, %arg1: i32) -> (i32, i32) {
    %c0_i32 = arith.constant 0 : i32
    %c0_i32_0 = arith.constant 0 : i32
    %c0_i32_1 = arith.constant 0 : i32
    return %c0_i32, %c0_i32_0 : i32, i32
  }
  func.func @transform_4(%arg0: i32, %arg1: i32) -> (i32, i32) {
    %c0_i32 = arith.constant 0 : i32
    %c0_i32_0 = arith.constant 0 : i32
    %c0_i32_1 = arith.constant 0 : i32
    return %c0_i32, %c0_i32_0 : i32, i32
  }
  func.func @transform_5(%arg0: i32, %arg1: i32) -> (i32, i32) {
    %c0_i32 = arith.constant 0 : i32
    %c0_i32_0 = arith.constant 0 : i32
    return %arg0, %c0_i32 : i32, i32
  }
}

</mosaic_0001>

<llo_original>
// kernel: tpu_custom_call.1
$region0: #{tpu_custom_call.1}
  #allocation0 [shape = 'u32[]', space=smem, size = 0x4, offset = 0x4, fixed_abs, tag = 'smem constant byte address 0x4 - core index']
  #allocation1 [shape = 'u32[144,128]{1,0:T(1,128)}', space=vmem, size = 0x12000, scoped, tag = 'internal scratch']
  #allocation2 [shape = 'f32[8,128]{1,0:T(8,128)}', space=vmem, size = 0x1000, scoped, tag = 'scratch operand']
  %s0 = inlined_call_operand.hbm [shape: f32[1,8,8,384], index: 0, kind: input, shape index: {}]
  %s1 = inlined_call_operand.hbm [shape: f32[128,384], index: 1, kind: input, shape index: {}]
  %s2 = inlined_call_operand.vmem [shape: f32[1,128], index: 2, kind: input, shape index: {}]
  %s3 = inlined_call_operand.hbm [shape: f32[128,128], index: 3, kind: input, shape index: {}]
  %s4 = inlined_call_operand.vmem [shape: f32[1,128], index: 4, kind: input, shape index: {}]
  %s5 = inlined_call_operand.hbm [shape: f32[8,128], index: 5, kind: output, shape index: {}]
  %s6 = sld [smem:[#allocation0]]
  $region50: #{tpu_custom_call.1} parent=0
    _
  %s8 = ssub.s32 1, %s6
  %s9 = scalar_select 0, %s8, %s6
  $region1: #{tpu_custom_call.1} parent=0
    #allocation3 [shape = 'u8[98304]{0}', space=vmem, size = 0x18000, scoped, tag = 'input window, operand 0, single buffered']
    #allocation4 [shape = 's32[1]{0}', space=sflag, size = 0x4, scoped, tag = 'scoped memory for tpu_custom_call.1']
    #allocation5 [shape = 's32[1]{0}', space=sflag, size = 0x4, scoped, tag = 'scoped memory for tpu_custom_call.1']
    #allocation6 [shape = 'u8[196608]{0}', space=vmem, size = 0x30000, scoped, tag = 'input window, operand 1, single buffered']
    #allocation7 [shape = 's32[1]{0}', space=sflag, size = 0x4, scoped, tag = 'scoped memory for tpu_custom_call.1']
    #allocation8 [shape = 'u8[65536]{0}', space=vmem, size = 0x10000, scoped, tag = 'input window, operand 3, single buffered']
    #allocation9 [shape = 'u8[4096]{0}', space=vmem, size = 0x1000, scoped, tag = 'output window, operand 0, single buffered']
    %10 = vsyncpa [#allocation4], 0
    %11 = vsyncpa [#allocation7], 0
    %12 = vsyncpa [#allocation5], 0
    // Predicated region
    $region2: #{tpu_custom_call.1} parent=1 // pred_check
      _
    $region3: #{tpu_custom_call.1} parent=1 // pred_check_branch
      %14 = sbr.rel (0) target = $region5
    $region4: #{tpu_custom_call.1} parent=1 // pred_region
      %s16 = ssub.s32 3072, 3072
      %17 = vsyncadd [#allocation4], %s16
      %s18 = sshll.u32 [#allocation3], 4
      %s19 = int_to_ptr.vmem [resolvable:$true] %s18
      %24 = dma.hbm_to_vmem [thread:$0]  %s0, 3072, %s19, [#allocation4], 384, 384, 24
    $region5: #{tpu_custom_call.1} parent=1 // pred_fallthru
      _
    // Predicated region
    $region6: #{tpu_custom_call.1} parent=1 // pred_check
      _
    $region7: #{tpu_custom_call.1} parent=1 // pred_check_branch
      %26 = sbr.rel (0) target = $region9
    $region8: #{tpu_custom_call.1} parent=1 // pred_region
      %s28 = ssub.s32 6144, 6144
      %29 = vsyncadd [#allocation7], %s28
      %s30 = sshll.u32 [#allocation6], 4
      %s31 = int_to_ptr.vmem [resolvable:$true] %s30
      %36 = dma.hbm_to_vmem [thread:$0]  %s1, 6144, %s31, [#allocation7], 384, 384, 24
    $region9: #{tpu_custom_call.1} parent=1 // pred_fallthru
      _
    // Predicated region
    $region10: #{tpu_custom_call.1} parent=1 // pred_check
      _
    $region11: #{tpu_custom_call.1} parent=1 // pred_check_branch
      %38 = sbr.rel (0) target = $region13
    $region12: #{tpu_custom_call.1} parent=1 // pred_region
      _
    $region13: #{tpu_custom_call.1} parent=1 // pred_fallthru
      _
    // Predicated region
    $region14: #{tpu_custom_call.1} parent=1 // pred_check
      _
    $region15: #{tpu_custom_call.1} parent=1 // pred_check_branch
      %40 = sbr.rel (0) target = $region17
    $region16: #{tpu_custom_call.1} parent=1 // pred_region
      %s42 = ssub.s32 2048, 2048
      %43 = vsyncadd [#allocation7], %s42
      %s44 = sshll.u32 [#allocation8], 4
      %s45 = int_to_ptr.vmem [resolvable:$true] %s44
      %50 = dma.hbm_to_vmem [thread:$0]  %s3, 2048, %s45, [#allocation7], 128, 128, 8
    $region17: #{tpu_custom_call.1} parent=1 // pred_fallthru
      _
    // Predicated region
    $region18: #{tpu_custom_call.1} parent=1 // pred_check
      _
    $region19: #{tpu_custom_call.1} parent=1 // pred_check_branch
      %52 = sbr.rel (0) target = $region21
    $region20: #{tpu_custom_call.1} parent=1 // pred_region
      _
    $region21: #{tpu_custom_call.1} parent=1 // pred_fallthru
      _
    // Predicated region
    $region22: #{tpu_custom_call.1} parent=1 // pred_check
      _
    $region23: #{tpu_custom_call.1} parent=1 // pred_check_branch
      %54 = sbr.rel (0) target = $region25
    $region24: #{tpu_custom_call.1} parent=1 // pred_region
      %55 = dma.done [#allocation4], 3072
    $region25: #{tpu_custom_call.1} parent=1 // pred_fallthru
      _
    // Predicated region
    $region26: #{tpu_custom_call.1} parent=1 // pred_check
      _
    $region27: #{tpu_custom_call.1} parent=1 // pred_check_branch
      %57 = sbr.rel (0) target = $region29
    $region28: #{tpu_custom_call.1} parent=1 // pred_region
      %58 = dma.done [#allocation7], 6144
    $region29: #{tpu_custom_call.1} parent=1 // pred_fallthru
      _
    // Predicated region
    $region30: #{tpu_custom_call.1} parent=1 // pred_check
      _
    $region31: #{tpu_custom_call.1} parent=1 // pred_check_branch
      %60 = sbr.rel (0) target = $region33
    $region32: #{tpu_custom_call.1} parent=1 // pred_region
      %61 = dma.done [#allocation7], 2048
    $region33: #{tpu_custom_call.1} parent=1 // pred_fallthru
      _
    %p62 = scmp.eq.s32.totalorder 0, 0
    // Predicated region
    $region34: #{tpu_custom_call.1} parent=1 // pred_check
      %p63 = pneg %p62
    $region35: #{tpu_custom_call.1} parent=1 // pred_check_branch
      %65 = sbr.rel (%p63) target = $region37
    $region36: #{tpu_custom_call.1} parent=1 // pred_region
      %66 = vst [vmem:[#allocation2] sm:$0xff] 0.0
    $region37: #{tpu_custom_call.1} parent=1 // pred_fallthru
      _
    %v67 = vld [vmem:[#allocation6] sm:$0xff]
    %v68 = vld [vmem:[#allocation6 + $0x8] sm:$0xff]
    %v69 = vld [vmem:[#allocation6 + $0x10] sm:$0xff]
    %v70 = vld [vmem:[#allocation6 + $0x18] sm:$0xff]
    %v71 = vld [vmem:[#allocation6 + $0x20] sm:$0xff]
    %v72 = vld [vmem:[#allocation6 + $0x28] sm:$0xff]
    %v73 = vld [vmem:[#allocation6 + $0x30] sm:$0xff]
    %v74 = vld [vmem:[#allocation6 + $0x38] sm:$0xff]
    %v75 = vld [vmem:[#allocation6 + $0x40] sm:$0xff]
    %v76 = vld [vmem:[#allocation6 + $0x48] sm:$0xff]
    %v77 = vld [vmem:[#allocation6 + $0x50] sm:$0xff]
    %v78 = vld [vmem:[#allocation6 + $0x58] sm:$0xff]
    %v79 = vld [vmem:[#allocation6 + $0x60] sm:$0xff]
    %v80 = vld [vmem:[#allocation6 + $0x68] sm:$0xff]
    %v81 = vld [vmem:[#allocation6 + $0x70] sm:$0xff]
    %v82 = vld [vmem:[#allocation6 + $0x78] sm:$0xff]
    %v83 = vld [vmem:[#allocation6 + $0x80] sm:$0xff]
    %v84 = vld [vmem:[#allocation6 + $0x88] sm:$0xff]
    %v85 = vld [vmem:[#allocation6 + $0x90] sm:$0xff]
    %v86 = vld [vmem:[#allocation6 + $0x98] sm:$0xff]
    %v87 = vld [vmem:[#allocation6 + $0xa0] sm:$0xff]
    %v88 = vld [vmem:[#allocation6 + $0xa8] sm:$0xff]
    %v89 = vld [vmem:[#allocation6 + $0xb0] sm:$0xff]
    %v90 = vld [vmem:[#allocation6 + $0xb8] sm:$0xff]
    %v91 = vld [vmem:[#allocation6 + $0xc0] sm:$0xff]
    %v92 = vld [vmem:[#allocation6 + $0xc8] sm:$0xff]
    %v93 = vld [vmem:[#allocation6 + $0xd0] sm:$0xff]
    %v94 = vld [vmem:[#allocation6 + $0xd8] sm:$0xff]
    %v95 = vld [vmem:[#allocation6 + $0xe0] sm:$0xff]
    %v96 = vld [vmem:[#allocation6 + $0xe8] sm:$0xff]
    %v97 = vld [vmem:[#allocation6 + $0xf0] sm:$0xff]
    %v98 = vld [vmem:[#allocation6 + $0xf8] sm:$0xff]
    %v99 = vld [vmem:[#allocation6 + $0x100] sm:$0xff]
    %v100 = vld [vmem:[#allocation6 + $0x108] sm:$0xff]
    %v101 = vld [vmem:[#allocation6 + $0x110] sm:$0xff]
    %v102 = vld [vmem:[#allocation6 + $0x118] sm:$0xff]
    %v103 = vld [vmem:[#allocation6 + $0x120] sm:$0xff]
    %v104 = vld [vmem:[#allocation6 + $0x128] sm:$0xff]
    %v105 = vld [vmem:[#allocation6 + $0x130] sm:$0xff]
    %v106 = vld [vmem:[#allocation6 + $0x138] sm:$0xff]
    %v107 = vld [vmem:[#allocation6 + $0x140] sm:$0xff]
    %v108 = vld [vmem:[#allocation6 + $0x148] sm:$0xff]
    %v109 = vld [vmem:[#allocation6 + $0x150] sm:$0xff]
    %v110 = vld [vmem:[#allocation6 + $0x158] sm:$0xff]
    %v111 = vld [vmem:[#allocation6 + $0x160] sm:$0xff]
    %v112 = vld [vmem:[#allocation6 + $0x168] sm:$0xff]
    %v113 = vld [vmem:[#allocation6 + $0x170] sm:$0xff]
    %v114 = vld [vmem:[#allocation6 + $0x178] sm:$0xff]
    %v115 = vld [vmem:[%s2] sm:$0x1]
    %v117 = vlaneseq
    %v118 = vshrl.u32 %v117, 7
    %v119 = vsub.s32 0, %v118
    %v120 = vrot.slane %v115, %v119
    %v122 = vld [vmem:[#allocation2] sm:$0xff]
    %v123 = vld [vmem:[#allocation3] sm:$0xff]
    %v124 = vld [vmem:[#allocation3 + $0x8] sm:$0xff]
    %v125 = vld [vmem:[#allocation3 + $0x10] sm:$0xff]
    %126 = vmatprep.subr.mxu0 %v68
    %127 = vmatpush1.msra.mxu0 %v67
    %128 = vmatprep.subr.mxu0 %v71
    %129 = vmatpush1.msra.mxu0 %v70
    %130 = vmatprep.subr.mxu0 %v74
    %131 = vmatpush1.msra.mxu0 %v73
    %132 = vmatprep.subr.mxu0 %v77
    %133 = vmatpush1.msra.mxu0 %v76
    %134 = vmatprep.subr.mxu0 %v80
    %135 = vmatpush1.msra.mxu0 %v79
    %136 = vmatprep.subr.mxu0 %v83
    %137 = vmatpush1.msra.mxu0 %v82
    %138 = vmatprep.subr.mxu0 %v86
    %139 = vmatpush1.msra.mxu0 %v85
    %140 = vmatprep.subr.mxu0 %v89
    %141 = vmatpush1.msra.mxu0 %v88
    %142 = vmatprep.subr.mxu0 %v92
    %143 = vmatpush1.msra.mxu0 %v91
    %144 = vmatprep.subr.mxu0 %v95
    %145 = vmatpush1.msra.mxu0 %v94
    %146 = vmatprep.subr.mxu0 %v98
    %147 = vmatpush1.msra.mxu0 %v97
    %148 = vmatprep.subr.mxu0 %v101
    %149 = vmatpush1.msra.mxu0 %v100
    %150 = vmatprep.subr.mxu0 %v104
    %151 = vmatpush1.msra.mxu0 %v103
    %152 = vmatprep.subr.mxu0 %v107
    %153 = vmatpush1.msra.mxu0 %v106
    %154 = vmatprep.subr.mxu0 %v110
    %155 = vmatpush1.msra.mxu0 %v109
    %156 = vmatprep.subr.mxu0 %v113
    %157 = vmatpush1.msra.mxu0 %v112
    %158 = vmatprep.subr.mxu0 0.0
    %159 = vmatpush1.msra.mxu0 0.0
    %160 = vmatprep.subr.mxu0 0.0
    %161 = vmatpush1.msra.mxu0 0.0
    %162 = vmatprep.subr.mxu0 0.0
    %163 = vmatpush1.msra.mxu0 0.0
    %164 = vmatprep.subr.mxu0 0.0
    %165 = vmatpush1.msra.mxu0 0.0
    %166 = vmatprep.subr.mxu0 0.0
    %167 = vmatpush1.msra.mxu0 0.0
    %168 = vmatprep.subr.mxu0 0.0
    %169 = vmatpush1.msra.mxu0 0.0
    %170 = vmatprep.subr.mxu0 0.0
    %171 = vmatpush1.msra.mxu0 0.0
    %172 = vmatprep.subr.mxu0 0.0
    %173 = vmatpush1.msra.mxu0 0.0
    %174 = vmatprep.subr.mxu0 0.0
    %175 = vmatpush1.msra.mxu0 0.0
    %176 = vmatprep.subr.mxu0 0.0
    %177 = vmatpush1.msra.mxu0 0.0
    %178 = vmatprep.subr.mxu0 0.0
    %179 = vmatpush1.msra.mxu0 0.0
    %180 = vmatprep.subr.mxu0 0.0
    %181 = vmatpush1.msra.mxu0 0.0
    %182 = vmatprep.subr.mxu0 0.0
    %183 = vmatpush1.msra.mxu0 0.0
    %184 = vmatprep.subr.mxu0 0.0
    %185 = vmatpush1.msra.mxu0 0.0
    %186 = vmatprep.subr.mxu0 0.0
    %187 = vmatpush1.msra.mxu0 0.0
    %188 = vmatprep.subr.mxu0 0.0
    %189 = vmatpush1.msra.mxu0 0.0
    %190 = vmatprep.mubr.f32.mxu0 0.0
    %191 = vmatmul.mubr.f32.gmra.mrb[0].mxu0 %v122
    %v192 = vpop.f32.mrb[0].mxu0
    %v193 = vadd.f32 0.0, %v192
    %v194 = vpop.f32.mrb[0].mxu0
    %v195 = vadd.f32 0.0, %v194
    %196 = vdwg.mxu0
    %197 = vmatprep.subr.mxu0 0.0
    %198 = vmatpush1.msra.mxu0 %v69
    %199 = vmatprep.subr.mxu0 0.0
    %200 = vmatpush1.msra.mxu0 %v72
    %201 = vmatprep.subr.mxu0 0.0
    %202 = vmatpush1.msra.mxu0 %v75
    %203 = vmatprep.subr.mxu0 0.0
    %204 = vmatpush1.msra.mxu0 %v78
    %205 = vmatprep.subr.mxu0 0.0
    %206 = vmatpush1.msra.mxu0 %v81
    %207 = vmatprep.subr.mxu0 0.0
    %208 = vmatpush1.msra.mxu0 %v84
    %209 = vmatprep.subr.mxu0 0.0
    %210 = vmatpush1.msra.mxu0 %v87
    %211 = vmatprep.subr.mxu0 0.0
    %212 = vmatpush1.msra.mxu0 %v90
    %213 = vmatprep.subr.mxu0 0.0
    %214 = vmatpush1.msra.mxu0 %v93
    %215 = vmatprep.subr.mxu0 0.0
    %216 = vmatpush1.msra.mxu0 %v96
    %217 = vmatprep.subr.mxu0 0.0
    %218 = vmatpush1.msra.mxu0 %v99
    %219 = vmatprep.subr.mxu0 0.0
    %220 = vmatpush1.msra.mxu0 %v102
    %221 = vmatprep.subr.mxu0 0.0
    %222 = vmatpush1.msra.mxu0 %v105
    %223 = vmatprep.subr.mxu0 0.0
    %224 = vmatpush1.msra.mxu0 %v108
    %225 = vmatprep.subr.mxu0 0.0
    %226 = vmatpush1.msra.mxu0 %v111
    %227 = vmatprep.subr.mxu0 0.0
    %228 = vmatpush1.msra.mxu0 %v114
    %229 = vmatprep.subr.mxu0 0.0
    %230 = vmatpush1.msra.mxu0 0.0
    %231 = vmatprep.subr.mxu0 0.0
    %232 = vmatpush1.msra.mxu0 0.0
    %233 = vmatprep.subr.mxu0 0.0
    %234 = vmatpush1.msra.mxu0 0.0
    %235 = vmatprep.subr.mxu0 0.0
    %236 = vmatpush1.msra.mxu0 0.0
    %237 = vmatprep.subr.mxu0 0.0
    %238 = vmatpush1.msra.mxu0 0.0
    %239 = vmatprep.subr.mxu0 0.0
    %240 = vmatpush1.msra.mxu0 0.0
    %241 = vmatprep.subr.mxu0 0.0
    %242 = vmatpush1.msra.mxu0 0.0
    %243 = vmatprep.subr.mxu0 0.0
    %244 = vmatpush1.msra.mxu0 0.0
    %245 = vmatprep.subr.mxu0 0.0
    %246 = vmatpush1.msra.mxu0 0.0
    %247 = vmatprep.subr.mxu0 0.0
    %248 = vmatpush1.msra.mxu0 0.0
    %249 = vmatprep.subr.mxu0 0.0
    %250 = vmatpush1.msra.mxu0 0.0
    %251 = vmatprep.subr.mxu0 0.0
    %252 = vmatpush1.msra.mxu0 0.0
    %253 = vmatprep.subr.mxu0 0.0
    %254 = vmatpush1.msra.mxu0 0.0
    %255 = vmatprep.subr.mxu0 0.0
    %256 = vmatpush1.msra.mxu0 0.0
    %257 = vmatprep.subr.mxu0 0.0
    %258 = vmatpush1.msra.mxu0 0.0
    %259 = vmatprep.subr.mxu0 0.0
    %260 = vmatpush1.msra.mxu0 0.0
    %261 = vmatprep.mubr.f32.mxu0 0.0
    %262 = vmatmul.mubr.f32.gmra.mrb[0].mxu0 %v122
    %v263 = vpop.f32.mrb[0].mxu0
    %v264 = vadd.f32 0.0, %v263
    %v265 = vpop.f32.mrb[0].mxu0
    %266 = vdwg.mxu0
    %v267 = vadd.f32 %v123, %v193
    %v268 = vxor.u32 %v267, 2147483648
    %v269 = vmul.f32 %v268, 1.442695
    %v270 = vpow.pop %v269
    %v271 = vadd.f32 %v270, 1.0
    %v272 = vrcp.pop %v271
    %v273 = vmul.f32 1.0, %v272
    %v274 = vadd.f32 %v124, %v195
    %v275 = vxor.u32 %v274, 2147483648
    %v276 = vmul.f32 %v275, 1.442695
    %v277 = vpow.pop %v276
    %v278 = vadd.f32 %v277, 1.0
    %v279 = vrcp.pop %v278
    %v280 = vmul.f32 1.0, %v279
    %v281 = vadd.f32 %v264, %v120
    %v282 = vmul.f32 %v273, %v281
    %v283 = vadd.f32 %v125, %v282
    %v284 = vtanh.pop %v283
    %v285 = vsub.f32 1.0, %v280
    %v286 = vmul.f32 %v285, %v284
    %v287 = vmul.f32 %v280, %v122
    %v288 = vadd.f32 %v286, %v287
    %s289 = scalar_lea.vmem [#allocation3], 24
    %v290 = vld [vmem:[%s289] sm:$0xff]
    %v291 = vld [vmem:[%s289 + $0x8] sm:$0xff]
    %v292 = vld [vmem:[%s289 + $0x10] sm:$0xff]
    %293 = vmatprep.subr.mxu0 %v68
    %294 = vmatpush1.msra.mxu0 %v67
    %295 = vmatprep.subr.mxu0 %v71
    %296 = vmatpush1.msra.mxu0 %v70
    %297 = vmatprep.subr.mxu0 %v74
    %298 = vmatpush1.msra.mxu0 %v73
    %299 = vmatprep.subr.mxu0 %v77
    %300 = vmatpush1.msra.mxu0 %v76
    %301 = vmatprep.subr.mxu0 %v80
    %302 = vmatpush1.msra.mxu0 %v79
    %303 = vmatprep.subr.mxu0 %v83
    %304 = vmatpush1.msra.mxu0 %v82
    %305 = vmatprep.subr.mxu0 %v86
    %306 = vmatpush1.msra.mxu0 %v85
    %307 = vmatprep.subr.mxu0 %v89
    %308 = vmatpush1.msra.mxu0 %v88
    %309 = vmatprep.subr.mxu0 %v92
    %310 = vmatpush1.msra.mxu0 %v91
    %311 = vmatprep.subr.mxu0 %v95
    %312 = vmatpush1.msra.mxu0 %v94
    %313 = vmatprep.subr.mxu0 %v98
    %314 = vmatpush1.msra.mxu0 %v97
    %315 = vmatprep.subr.mxu0 %v101
    %316 = vmatpush1.msra.mxu0 %v100
    %317 = vmatprep.subr.mxu0 %v104
    %318 = vmatpush1.msra.mxu0 %v103
    %319 = vmatprep.subr.mxu0 %v107
    %320 = vmatpush1.msra.mxu0 %v106
    %321 = vmatprep.subr.mxu0 %v110
    %322 = vmatpush1.msra.mxu0 %v109
    %323 = vmatprep.subr.mxu0 %v113
    %324 = vmatpush1.msra.mxu0 %v112
    %325 = vmatprep.subr.mxu0 0.0
    %326 = vmatpush1.msra.mxu0 0.0
    %327 = vmatprep.subr.mxu0 0.0
    %328 = vmatpush1.msra.mxu0 0.0
    %329 = vmatprep.subr.mxu0 0.0
    %330 = vmatpush1.msra.mxu0 0.0
    %331 = vmatprep.subr.mxu0 0.0
    %332 = vmatpush1.msra.mxu0 0.0
    %333 = vmatprep.subr.mxu0 0.0
    %334 = vmatpush1.msra.mxu0 0.0
    %335 = vmatprep.subr.mxu0 0.0
    %336 = vmatpush1.msra.mxu0 0.0
    %337 = vmatprep.subr.mxu0 0.0
    %338 = vmatpush1.msra.mxu0 0.0
    %339 = vmatprep.subr.mxu0 0.0
    %340 = vmatpush1.msra.mxu0 0.0
    %341 = vmatprep.subr.mxu0 0.0
    %342 = vmatpush1.msra.mxu0 0.0
    %343 = vmatprep.subr.mxu0 0.0
    %344 = vmatpush1.msra.mxu0 0.0
    %345 = vmatprep.subr.mxu0 0.0
    %346 = vmatpush1.msra.mxu0 0.0
    %347 = vmatprep.subr.mxu0 0.0
    %348 = vmatpush1.msra.mxu0 0.0
    %349 = vmatprep.subr.mxu0 0.0
    %350 = vmatpush1.msra.mxu0 0.0
    %351 = vmatprep.subr.mxu0 0.0
    %352 = vmatpush1.msra.mxu0 0.0
    %353 = vmatprep.subr.mxu0 0.0
    %354 = vmatpush1.msra.mxu0 0.0
    %355 = vmatprep.subr.mxu0 0.0
    %356 = vmatpush1.msra.mxu0 0.0
    %357 = vmatprep.mubr.f32.mxu0 0.0
    %358 = vmatmul.mubr.f32.gmra.mrb[0].mxu0 %v288
    %v359 = vpop.f32.mrb[0].mxu0
    %v360 = vadd.f32 0.0, %v359
    %v361 = vpop.f32.mrb[0].mxu0
    %v362 = vadd.f32 0.0, %v361
    %363 = vdwg.mxu0
    %364 = vmatprep.subr.mxu0 0.0
    %365 = vmatpush1.msra.mxu0 %v69
    %366 = vmatprep.subr.mxu0 0.0
    %367 = vmatpush1.msra.mxu0 %v72
    %368 = vmatprep.subr.mxu0 0.0
    %369 = vmatpush1.msra.mxu0 %v75
    %370 = vmatprep.subr.mxu0 0.0
    %371 = vmatpush1.msra.mxu0 %v78
    %372 = vmatprep.subr.mxu0 0.0
    %373 = vmatpush1.msra.mxu0 %v81
    %374 = vmatprep.subr.mxu0 0.0
    %375 = vmatpush1.msra.mxu0 %v84
    %376 = vmatprep.subr.mxu0 0.0
    %377 = vmatpush1.msra.mxu0 %v87
    %378 = vmatprep.subr.mxu0 0.0
    %379 = vmatpush1.msra.mxu0 %v90
    %380 = vmatprep.subr.mxu0 0.0
    %381 = vmatpush1.msra.mxu0 %v93
    %382 = vmatprep.subr.mxu0 0.0
    %383 = vmatpush1.msra.mxu0 %v96
    %384 = vmatprep.subr.mxu0 0.0
    %385 = vmatpush1.msra.mxu0 %v99
    %386 = vmatprep.subr.mxu0 0.0
    %387 = vmatpush1.msra.mxu0 %v102
    %388 = vmatprep.subr.mxu0 0.0
    %389 = vmatpush1.msra.mxu0 %v105
    %390 = vmatprep.subr.mxu0 0.0
    %391 = vmatpush1.msra.mxu0 %v108
    %392 = vmatprep.subr.mxu0 0.0
    %393 = vmatpush1.msra.mxu0 %v111
    %394 = vmatprep.subr.mxu0 0.0
    %395 = vmatpush1.msra.mxu0 %v114
    %396 = vmatprep.subr.mxu0 0.0
    %397 = vmatpush1.msra.mxu0 0.0
    %398 = vmatprep.subr.mxu0 0.0
    %399 = vmatpush1.msra.mxu0 0.0
    %400 = vmatprep.subr.mxu0 0.0
    %401 = vmatpush1.msra.mxu0 0.0
    %402 = vmatprep.subr.mxu0 0.0
    %403 = vmatpush1.msra.mxu0 0.0
    %404 = vmatprep.subr.mxu0 0.0
    %405 = vmatpush1.msra.mxu0 0.0
    %406 = vmatprep.subr.mxu0 0.0
    %407 = vmatpush1.msra.mxu0 0.0
    %408 = vmatprep.subr.mxu0 0.0
    %409 = vmatpush1.msra.mxu0 0.0
    %410 = vmatprep.subr.mxu0 0.0
    %411 = vmatpush1.msra.mxu0 0.0
    %412 = vmatprep.subr.mxu0 0.0
    %413 = vmatpush1.msra.mxu0 0.0
    %414 = vmatprep.subr.mxu0 0.0
    %415 = vmatpush1.msra.mxu0 0.0
    %416 = vmatprep.subr.mxu0 0.0
    %417 = vmatpush1.msra.mxu0 0.0
    %418 = vmatprep.subr.mxu0 0.0
    %419 = vmatpush1.msra.mxu0 0.0
    %420 = vmatprep.subr.mxu0 0.0
    %421 = vmatpush1.msra.mxu0 0.0
    %422 = vmatprep.subr.mxu0 0.0
    %423 = vmatpush1.msra.mxu0 0.0
    %424 = vmatprep.subr.mxu0 0.0
    %425 = vmatpush1.msra.mxu0 0.0
    %426 = vmatprep.subr.mxu0 0.0
    %427 = vmatpush1.msra.mxu0 0.0
    %428 = vmatprep.mubr.f32.mxu0 0.0
    %429 = vmatmul.mubr.f32.gmra.mrb[0].mxu0 %v288
    %v430 = vpop.f32.mrb[0].mxu0
    %v431 = vadd.f32 0.0, %v430
    %v432 = vpop.f32.mrb[0].mxu0
    %433 = vdwg.mxu0
    %v434 = vadd.f32 %v290, %v360
    %v435 = vxor.u32 %v434, 2147483648
    %v436 = vmul.f32 %v435, 1.442695
    %v437 = vpow.pop %v436
    %v438 = vadd.f32 %v437, 1.0
    %v439 = vrcp.pop %v438
    %v440 = vmul.f32 1.0, %v439
    %v441 = vadd.f32 %v291, %v362
    %v442 = vxor.u32 %v441, 2147483648
    %v443 = vmul.f32 %v442, 1.442695
    %v444 = vpow.pop %v443
    %v445 = vadd.f32 %v444, 1.0
    %v446 = vrcp.pop %v445
    %v447 = vmul.f32 1.0, %v446
    %v448 = vadd.f32 %v431, %v120
    %v449 = vmul.f32 %v440, %v448
    %v450 = vadd.f32 %v292, %v449
    %v451 = vtanh.pop %v450
    %v452 = vsub.f32 1.0, %v447
    %v453 = vmul.f32 %v452, %v451
    %v454 = vmul.f32 %v447, %v288
    %v455 = vadd.f32 %v453, %v454
    %s456 = scalar_lea.vmem [#allocation3], 48
    %v457 = vld [vmem:[%s456] sm:$0xff]
    %v458 = vld [vmem:[%s456 + $0x8] sm:$0xff]
    %v459 = vld [vmem:[%s456 + $0x10] sm:$0xff]
    %460 = vmatprep.subr.mxu0 %v68
    %461 = vmatpush1.msra.mxu0 %v67
    %462 = vmatprep.subr.mxu0 %v71
    %463 = vmatpush1.msra.mxu0 %v70
    %464 = vmatprep.subr.mxu0 %v74
    %465 = vmatpush1.msra.mxu0 %v73
    %466 = vmatprep.subr.mxu0 %v77
    %467 = vmatpush1.msra.mxu0 %v76
    %468 = vmatprep.subr.mxu0 %v80
    %469 = vmatpush1.msra.mxu0 %v79
    %470 = vmatprep.subr.mxu0 %v83
    %471 = vmatpush1.msra.mxu0 %v82
    %472 = vmatprep.subr.mxu0 %v86
    %473 = vmatpush1.msra.mxu0 %v85
    %474 = vmatprep.subr.mxu0 %v89
    %475 = vmatpush1.msra.mxu0 %v88
    %476 = vmatprep.subr.mxu0 %v92
    %477 = vmatpush1.msra.mxu0 %v91
    %478 = vmatprep.subr.mxu0 %v95
    %479 = vmatpush1.msra.mxu0 %v94
    %480 = vmatprep.subr.mxu0 %v98
    %481 = vmatpush1.msra.mxu0 %v97
    %482 = vmatprep.subr.mxu0 %v101
    %483 = vmatpush1.msra.mxu0 %v100
    %484 = vmatprep.subr.mxu0 %v104
    %485 = vmatpush1.msra.mxu0 %v103
    %486 = vmatprep.subr.mxu0 %v107
    %487 = vmatpush1.msra.mxu0 %v106
    %488 = vmatprep.subr.mxu0 %v110
    %489 = vmatpush1.msra.mxu0 %v109
    %490 = vmatprep.subr.mxu0 %v113
    %491 = vmatpush1.msra.mxu0 %v112
    %492 = vmatprep.subr.mxu0 0.0
    %493 = vmatpush1.msra.mxu0 0.0
    %494 = vmatprep.subr.mxu0 0.0
    %495 = vmatpush1.msra.mxu0 0.0
    %496 = vmatprep.subr.mxu0 0.0
    %497 = vmatpush1.msra.mxu0 0.0
    %498 = vmatprep.subr.mxu0 0.0
    %499 = vmatpush1.msra.mxu0 0.0
    %500 = vmatprep.subr.mxu0 0.0
    %501 = vmatpush1.msra.mxu0 0.0
    %502 = vmatprep.subr.mxu0 0.0
    %503 = vmatpush1.msra.mxu0 0.0
    %504 = vmatprep.subr.mxu0 0.0
    %505 = vmatpush1.msra.mxu0 0.0
    %506 = vmatprep.subr.mxu0 0.0
    %507 = vmatpush1.msra.mxu0 0.0
    %508 = vmatprep.subr.mxu0 0.0
    %509 = vmatpush1.msra.mxu0 0.0
    %510 = vmatprep.subr.mxu0 0.0
    %511 = vmatpush1.msra.mxu0 0.0
    %512 = vmatprep.subr.mxu0 0.0
    %513 = vmatpush1.msra.mxu0 0.0
    %514 = vmatprep.subr.mxu0 0.0
    %515 = vmatpush1.msra.mxu0 0.0
    %516 = vmatprep.subr.mxu0 0.0
    %517 = vmatpush1.msra.mxu0 0.0
    %518 = vmatprep.subr.mxu0 0.0
    %519 = vmatpush1.msra.mxu0 0.0
    %520 = vmatprep.subr.mxu0 0.0
    %521 = vmatpush1.msra.mxu0 0.0
    %522 = vmatprep.subr.mxu0 0.0
    %523 = vmatpush1.msra.mxu0 0.0
    %524 = vmatprep.mubr.f32.mxu0 0.0
    %525 = vmatmul.mubr.f32.gmra.mrb[0].mxu0 %v455
    %v526 = vpop.f32.mrb[0].mxu0
    %v527 = vadd.f32 0.0, %v526
    %v528 = vpop.f32.mrb[0].mxu0
    %v529 = vadd.f32 0.0, %v528
    %530 = vdwg.mxu0
    %531 = vmatprep.subr.mxu0 0.0
    %532 = vmatpush1.msra.mxu0 %v69
    %533 = vmatprep.subr.mxu0 0.0
    %534 = vmatpush1.msra.mxu0 %v72
    %535 = vmatprep.subr.mxu0 0.0
    %536 = vmatpush1.msra.mxu0 %v75
    %537 = vmatprep.subr.mxu0 0.0
    %538 = vmatpush1.msra.mxu0 %v78
    %539 = vmatprep.subr.mxu0 0.0
    %540 = vmatpush1.msra.mxu0 %v81
    %541 = vmatprep.subr.mxu0 0.0
    %542 = vmatpush1.msra.mxu0 %v84
    %543 = vmatprep.subr.mxu0 0.0
    %544 = vmatpush1.msra.mxu0 %v87
    %545 = vmatprep.subr.mxu0 0.0
    %546 = vmatpush1.msra.mxu0 %v90
    %547 = vmatprep.subr.mxu0 0.0
    %548 = vmatpush1.msra.mxu0 %v93
    %549 = vmatprep.subr.mxu0 0.0
    %550 = vmatpush1.msra.mxu0 %v96
    %551 = vmatprep.subr.mxu0 0.0
    %552 = vmatpush1.msra.mxu0 %v99
    %553 = vmatprep.subr.mxu0 0.0
    %554 = vmatpush1.msra.mxu0 %v102
    %555 = vmatprep.subr.mxu0 0.0
    %556 = vmatpush1.msra.mxu0 %v105
    %557 = vmatprep.subr.mxu0 0.0
    %558 = vmatpush1.msra.mxu0 %v108
    %559 = vmatprep.subr.mxu0 0.0
    %560 = vmatpush1.msra.mxu0 %v111
    %561 = vmatprep.subr.mxu0 0.0
    %562 = vmatpush1.msra.mxu0 %v114
    %563 = vmatprep.subr.mxu0 0.0
    %564 = vmatpush1.msra.mxu0 0.0
    %565 = vmatprep.subr.mxu0 0.0
    %566 = vmatpush1.msra.mxu0 0.0
    %567 = vmatprep.subr.mxu0 0.0
    %568 = vmatpush1.msra.mxu0 0.0
    %569 = vmatprep.subr.mxu0 0.0
    %570 = vmatpush1.msra.mxu0 0.0
    %571 = vmatprep.subr.mxu0 0.0
    %572 = vmatpush1.msra.mxu0 0.0
    %573 = vmatprep.subr.mxu0 0.0
    %574 = vmatpush1.msra.mxu0 0.0
    %575 = vmatprep.subr.mxu0 0.0
    %576 = vmatpush1.msra.mxu0 0.0
    %577 = vmatprep.subr.mxu0 0.0
    %578 = vmatpush1.msra.mxu0 0.0
    %579 = vmatprep.subr.mxu0 0.0
    %580 = vmatpush1.msra.mxu0 0.0
    %581 = vmatprep.subr.mxu0 0.0
    %582 = vmatpush1.msra.mxu0 0.0
    %583 = vmatprep.subr.mxu0 0.0
    %584 = vmatpush1.msra.mxu0 0.0
    %585 = vmatprep.subr.mxu0 0.0
    %586 = vmatpush1.msra.mxu0 0.0
    %587 = vmatprep.subr.mxu0 0.0
    %588 = vmatpush1.msra.mxu0 0.0
    %589 = vmatprep.subr.mxu0 0.0
    %590 = vmatpush1.msra.mxu0 0.0
    %591 = vmatprep.subr.mxu0 0.0
    %592 = vmatpush1.msra.mxu0 0.0
    %593 = vmatprep.subr.mxu0 0.0
    %594 = vmatpush1.msra.mxu0 0.0
    %595 = vmatprep.mubr.f32.mxu0 0.0
    %596 = vmatmul.mubr.f32.gmra.mrb[0].mxu0 %v455
    %v597 = vpop.f32.mrb[0].mxu0
    %v598 = vadd.f32 0.0, %v597
    %v599 = vpop.f32.mrb[0].mxu0
    %600 = vdwg.mxu0
    %v601 = vadd.f32 %v457, %v527
    %v602 = vxor.u32 %v601, 2147483648
    %v603 = vmul.f32 %v602, 1.442695
    %v604 = vpow.pop %v603
    %v605 = vadd.f32 %v604, 1.0
    %v606 = vrcp.pop %v605
    %v607 = vmul.f32 1.0, %v606
    %v608 = vadd.f32 %v458, %v529
    %v609 = vxor.u32 %v608, 2147483648
    %v610 = vmul.f32 %v609, 1.442695
    %v611 = vpow.pop %v610
    %v612 = vadd.f32 %v611, 1.0
    %v613 = vrcp.pop %v612
    %v614 = vmul.f32 1.0, %v613
    %v615 = vadd.f32 %v598, %v120
    %v616 = vmul.f32 %v607, %v615
    %v617 = vadd.f32 %v459, %v616
    %v618 = vtanh.pop %v617
    %v619 = vsub.f32 1.0, %v614
    %v620 = vmul.f32 %v619, %v618
    %v621 = vmul.f32 %v614, %v455
    %v622 = vadd.f32 %v620, %v621
    %s623 = scalar_lea.vmem [#allocation3], 72
    %v624 = vld [vmem:[%s623] sm:$0xff]
    %v625 = vld [vmem:[%s623 + $0x8] sm:$0xff]
    %v626 = vld [vmem:[%s623 + $0x10] sm:$0xff]
    %627 = vmatprep.subr.mxu0 %v68
    %628 = vmatpush1.msra.mxu0 %v67
    %629 = vmatprep.subr.mxu0 %v71
    %630 = vmatpush1.msra.mxu0 %v70
    %631 = vmatprep.subr.mxu0 %v74
    %632 = vmatpush1.msra.mxu0 %v73
    %633 = vmatprep.subr.mxu0 %v77
    %634 = vmatpush1.msra.mxu0 %v76
    %635 = vmatprep.subr.mxu0 %v80
    %636 = vmatpush1.msra.mxu0 %v79
    %637 = vmatprep.subr.mxu0 %v83
    %638 = vmatpush1.msra.mxu0 %v82
    %639 = vmatprep.subr.mxu0 %v86
    %640 = vmatpush1.msra.mxu0 %v85
    %641 = vmatprep.subr.mxu0 %v89
    %642 = vmatpush1.msra.mxu0 %v88
    %643 = vmatprep.subr.mxu0 %v92
    %644 = vmatpush1.msra.mxu0 %v91
    %645 = vmatprep.subr.mxu0 %v95
    %646 = vmatpush1.msra.mxu0 %v94
    %647 = vmatprep.subr.mxu0 %v98
    %648 = vmatpush1.msra.mxu0 %v97
    %649 = vmatprep.subr.mxu0 %v101
    %650 = vmatpush1.msra.mxu0 %v100
    %651 = vmatprep.subr.mxu0 %v104
    %652 = vmatpush1.msra.mxu0 %v103
    %653 = vmatprep.subr.mxu0 %v107
    %654 = vmatpush1.msra.mxu0 %v106
    %655 = vmatprep.subr.mxu0 %v110
    %656 = vmatpush1.msra.mxu0 %v109
    %657 = vmatprep.subr.mxu0 %v113
    %658 = vmatpush1.msra.mxu0 %v112
    %659 = vmatprep.subr.mxu0 0.0
    %660 = vmatpush1.msra.mxu0 0.0
    %661 = vmatprep.subr.mxu0 0.0
    %662 = vmatpush1.msra.mxu0 0.0
    %663 = vmatprep.subr.mxu0 0.0
    %664 = vmatpush1.msra.mxu0 0.0
    %665 = vmatprep.subr.mxu0 0.0
    %666 = vmatpush1.msra.mxu0 0.0
    %667 = vmatprep.subr.mxu0 0.0
    %668 = vmatpush1.msra.mxu0 0.0
    %669 = vmatprep.subr.mxu0 0.0
    %670 = vmatpush1.msra.mxu0 0.0
    %671 = vmatprep.subr.mxu0 0.0
    %672 = vmatpush1.msra.mxu0 0.0
    %673 = vmatprep.subr.mxu0 0.0
    %674 = vmatpush1.msra.mxu0 0.0
    %675 = vmatprep.subr.mxu0 0.0
    %676 = vmatpush1.msra.mxu0 0.0
    %677 = vmatprep.subr.mxu0 0.0
    %678 = vmatpush1.msra.mxu0 0.0
    %679 = vmatprep.subr.mxu0 0.0
    %680 = vmatpush1.msra.mxu0 0.0
    %681 = vmatprep.subr.mxu0 0.0
    %682 = vmatpush1.msra.mxu0 0.0
    %683 = vmatprep.subr.mxu0 0.0
    %684 = vmatpush1.msra.mxu0 0.0
    %685 = vmatprep.subr.mxu0 0.0
    %686 = vmatpush1.msra.mxu0 0.0
    %687 = vmatprep.subr.mxu0 0.0
    %688 = vmatpush1.msra.mxu0 0.0
    %689 = vmatprep.subr.mxu0 0.0
    %690 = vmatpush1.msra.mxu0 0.0
    %691 = vmatprep.mubr.f32.mxu0 0.0
    %692 = vmatmul.mubr.f32.gmra.mrb[0].mxu0 %v622
    %v693 = vpop.f32.mrb[0].mxu0
    %v694 = vadd.f32 0.0, %v693
    %v695 = vpop.f32.mrb[0].mxu0
    %v696 = vadd.f32 0.0, %v695
    %697 = vdwg.mxu0
    %698 = vmatprep.subr.mxu0 0.0
    %699 = vmatpush1.msra.mxu0 %v69
    %700 = vmatprep.subr.mxu0 0.0
    %701 = vmatpush1.msra.mxu0 %v72
    %702 = vmatprep.subr.mxu0 0.0
    %703 = vmatpush1.msra.mxu0 %v75
    %704 = vmatprep.subr.mxu0 0.0
    %705 = vmatpush1.msra.mxu0 %v78
    %706 = vmatprep.subr.mxu0 0.0
    %707 = vmatpush1.msra.mxu0 %v81
    %708 = vmatprep.subr.mxu0 0.0
    %709 = vmatpush1.msra.mxu0 %v84
    %710 = vmatprep.subr.mxu0 0.0
    %711 = vmatpush1.msra.mxu0 %v87
    %712 = vmatprep.subr.mxu0 0.0
    %713 = vmatpush1.msra.mxu0 %v90
    %714 = vmatprep.subr.mxu0 0.0
    %715 = vmatpush1.msra.mxu0 %v93
    %716 = vmatprep.subr.mxu0 0.0
    %717 = vmatpush1.msra.mxu0 %v96
    %718 = vmatprep.subr.mxu0 0.0
    %719 = vmatpush1.msra.mxu0 %v99
    %720 = vmatprep.subr.mxu0 0.0
    %721 = vmatpush1.msra.mxu0 %v102
    %722 = vmatprep.subr.mxu0 0.0
    %723 = vmatpush1.msra.mxu0 %v105
    %724 = vmatprep.subr.mxu0 0.0
    %725 = vmatpush1.msra.mxu0 %v108
    %726 = vmatprep.subr.mxu0 0.0
    %727 = vmatpush1.msra.mxu0 %v111
    %728 = vmatprep.subr.mxu0 0.0
    %729 = vmatpush1.msra.mxu0 %v114
    %730 = vmatprep.subr.mxu0 0.0
    %731 = vmatpush1.msra.mxu0 0.0
    %732 = vmatprep.subr.mxu0 0.0
    %733 = vmatpush1.msra.mxu0 0.0
    %734 = vmatprep.subr.mxu0 0.0
    %735 = vmatpush1.msra.mxu0 0.0
    %736 = vmatprep.subr.mxu0 0.0
    %737 = vmatpush1.msra.mxu0 0.0
    %738 = vmatprep.subr.mxu0 0.0
    %739 = vmatpush1.msra.mxu0 0.0
    %740 = vmatprep.subr.mxu0 0.0
    %741 = vmatpush1.msra.mxu0 0.0
    %742 = vmatprep.subr.mxu0 0.0
    %743 = vmatpush1.msra.mxu0 0.0
    %744 = vmatprep.subr.mxu0 0.0
    %745 = vmatpush1.msra.mxu0 0.0
    %746 = vmatprep.subr.mxu0 0.0
    %747 = vmatpush1.msra.mxu0 0.0
    %748 = vmatprep.subr.mxu0 0.0
    %749 = vmatpush1.msra.mxu0 0.0
    %750 = vmatprep.subr.mxu0 0.0
    %751 = vmatpush1.msra.mxu0 0.0
    %752 = vmatprep.subr.mxu0 0.0
    %753 = vmatpush1.msra.mxu0 0.0
    %754 = vmatprep.subr.mxu0 0.0
    %755 = vmatpush1.msra.mxu0 0.0
    %756 = vmatprep.subr.mxu0 0.0
    %757 = vmatpush1.msra.mxu0 0.0
    %758 = vmatprep.subr.mxu0 0.0
    %759 = vmatpush1.msra.mxu0 0.0
    %760 = vmatprep.subr.mxu0 0.0
    %761 = vmatpush1.msra.mxu0 0.0
    %762 = vmatprep.mubr.f32.mxu0 0.0
    %763 = vmatmul.mubr.f32.gmra.mrb[0].mxu0 %v622
    %v764 = vpop.f32.mrb[0].mxu0
    %v765 = vadd.f32 0.0, %v764
    %v766 = vpop.f32.mrb[0].mxu0
    %767 = vdwg.mxu0
    %v768 = vadd.f32 %v624, %v694
    %v769 = vxor.u32 %v768, 2147483648
    %v770 = vmul.f32 %v769, 1.442695
    %v771 = vpow.pop %v770
    %v772 = vadd.f32 %v771, 1.0
    %v773 = vrcp.pop %v772
    %v774 = vmul.f32 1.0, %v773
    %v775 = vadd.f32 %v625, %v696
    %v776 = vxor.u32 %v775, 2147483648
    %v777 = vmul.f32 %v776, 1.442695
    %v778 = vpow.pop %v777
    %v779 = vadd.f32 %v778, 1.0
    %v780 = vrcp.pop %v779
    %v781 = vmul.f32 1.0, %v780
    %v782 = vadd.f32 %v765, %v120
    %v783 = vmul.f32 %v774, %v782
    %v784 = vadd.f32 %v626, %v783
    %v785 = vtanh.pop %v784
    %v786 = vsub.f32 1.0, %v781
    %v787 = vmul.f32 %v786, %v785
    %v788 = vmul.f32 %v781, %v622
    %v789 = vadd.f32 %v787, %v788
    %s790 = scalar_lea.vmem [#allocation3], 96
    %v791 = vld [vmem:[%s790] sm:$0xff]
    %v792 = vld [vmem:[%s790 + $0x8] sm:$0xff]
    %v793 = vld [vmem:[%s790 + $0x10] sm:$0xff]
    %794 = vmatprep.subr.mxu0 %v68
    %795 = vmatpush1.msra.mxu0 %v67
    %796 = vmatprep.subr.mxu0 %v71
    %797 = vmatpush1.msra.mxu0 %v70
    %798 = vmatprep.subr.mxu0 %v74
    %799 = vmatpush1.msra.mxu0 %v73
    %800 = vmatprep.subr.mxu0 %v77
    %801 = vmatpush1.msra.mxu0 %v76
    %802 = vmatprep.subr.mxu0 %v80
    %803 = vmatpush1.msra.mxu0 %v79
    %804 = vmatprep.subr.mxu0 %v83
    %805 = vmatpush1.msra.mxu0 %v82
    %806 = vmatprep.subr.mxu0 %v86
    %807 = vmatpush1.msra.mxu0 %v85
    %808 = vmatprep.subr.mxu0 %v89
    %809 = vmatpush1.msra.mxu0 %v88
    %810 = vmatprep.subr.mxu0 %v92
    %811 = vmatpush1.msra.mxu0 %v91
    %812 = vmatprep.subr.mxu0 %v95
    %813 = vmatpush1.msra.mxu0 %v94
    %814 = vmatprep.subr.mxu0 %v98
    %815 = vmatpush1.msra.mxu0 %v97
    %816 = vmatprep.subr.mxu0 %v101
    %817 = vmatpush1.msra.mxu0 %v100
    %818 = vmatprep.subr.mxu0 %v104
    %819 = vmatpush1.msra.mxu0 %v103
    %820 = vmatprep.subr.mxu0 %v107
    %821 = vmatpush1.msra.mxu0 %v106
    %822 = vmatprep.subr.mxu0 %v110
    %823 = vmatpush1.msra.mxu0 %v109
    %824 = vmatprep.subr.mxu0 %v113
    %825 = vmatpush1.msra.mxu0 %v112
    %826 = vmatprep.subr.mxu0 0.0
    %827 = vmatpush1.msra.mxu0 0.0
    %828 = vmatprep.subr.mxu0 0.0
    %829 = vmatpush1.msra.mxu0 0.0
    %830 = vmatprep.subr.mxu0 0.0
    %831 = vmatpush1.msra.mxu0 0.0
    %832 = vmatprep.subr.mxu0 0.0
    %833 = vmatpush1.msra.mxu0 0.0
    %834 = vmatprep.subr.mxu0 0.0
    %835 = vmatpush1.msra.mxu0 0.0
    %836 = vmatprep.subr.mxu0 0.0
    %837 = vmatpush1.msra.mxu0 0.0
    %838 = vmatprep.subr.mxu0 0.0
    %839 = vmatpush1.msra.mxu0 0.0
    %840 = vmatprep.subr.mxu0 0.0
    %841 = vmatpush1.msra.mxu0 0.0
    %842 = vmatprep.subr.mxu0 0.0
    %843 = vmatpush1.msra.mxu0 0.0
    %844 = vmatprep.subr.mxu0 0.0
    %845 = vmatpush1.msra.mxu0 0.0
    %846 = vmatprep.subr.mxu0 0.0
    %847 = vmatpush1.msra.mxu0 0.0
    %848 = vmatprep.subr.mxu0 0.0
    %849 = vmatpush1.msra.mxu0 0.0
    %850 = vmatprep.subr.mxu0 0.0
    %851 = vmatpush1.msra.mxu0 0.0
    %852 = vmatprep.subr.mxu0 0.0
    %853 = vmatpush1.msra.mxu0 0.0
    %854 = vmatprep.subr.mxu0 0.0
    %855 = vmatpush1.msra.mxu0 0.0
    %856 = vmatprep.subr.mxu0 0.0
    %857 = vmatpush1.msra.mxu0 0.0
    %858 = vmatprep.mubr.f32.mxu0 0.0
    %859 = vmatmul.mubr.f32.gmra.mrb[0].mxu0 %v789
    %v860 = vpop.f32.mrb[0].mxu0
    %v861 = vadd.f32 0.0, %v860
    %v862 = vpop.f32.mrb[0].mxu0
    %v863 = vadd.f32 0.0, %v862
    %864 = vdwg.mxu0
    %865 = vmatprep.subr.mxu0 0.0
    %866 = vmatpush1.msra.mxu0 %v69
    %867 = vmatprep.subr.mxu0 0.0
    %868 = vmatpush1.msra.mxu0 %v72
    %869 = vmatprep.subr.mxu0 0.0
    %870 = vmatpush1.msra.mxu0 %v75
    %871 = vmatprep.subr.mxu0 0.0
    %872 = vmatpush1.msra.mxu0 %v78
    %873 = vmatprep.subr.mxu0 0.0
    %874 = vmatpush1.msra.mxu0 %v81
    %875 = vmatprep.subr.mxu0 0.0
    %876 = vmatpush1.msra.mxu0 %v84
    %877 = vmatprep.subr.mxu0 0.0
    %878 = vmatpush1.msra.mxu0 %v87
    %879 = vmatprep.subr.mxu0 0.0
    %880 = vmatpush1.msra.mxu0 %v90
    %881 = vmatprep.subr.mxu0 0.0
    %882 = vmatpush1.msra.mxu0 %v93
    %883 = vmatprep.subr.mxu0 0.0
    %884 = vmatpush1.msra.mxu0 %v96
    %885 = vmatprep.subr.mxu0 0.0
    %886 = vmatpush1.msra.mxu0 %v99
    %887 = vmatprep.subr.mxu0 0.0
    %888 = vmatpush1.msra.mxu0 %v102
    %889 = vmatprep.subr.mxu0 0.0
    %890 = vmatpush1.msra.mxu0 %v105
    %891 = vmatprep.subr.mxu0 0.0
    %892 = vmatpush1.msra.mxu0 %v108
    %893 = vmatprep.subr.mxu0 0.0
    %894 = vmatpush1.msra.mxu0 %v111
    %895 = vmatprep.subr.mxu0 0.0
    %896 = vmatpush1.msra.mxu0 %v114
    %897 = vmatprep.subr.mxu0 0.0
    %898 = vmatpush1.msra.mxu0 0.0
    %899 = vmatprep.subr.mxu0 0.0
    %900 = vmatpush1.msra.mxu0 0.0
    %901 = vmatprep.subr.mxu0 0.0
    %902 = vmatpush1.msra.mxu0 0.0
    %903 = vmatprep.subr.mxu0 0.0
    %904 = vmatpush1.msra.mxu0 0.0
    %905 = vmatprep.subr.mxu0 0.0
    %906 = vmatpush1.msra.mxu0 0.0
    %907 = vmatprep.subr.mxu0 0.0
    %908 = vmatpush1.msra.mxu0 0.0
    %909 = vmatprep.subr.mxu0 0.0
    %910 = vmatpush1.msra.mxu0 0.0
    %911 = vmatprep.subr.mxu0 0.0
    %912 = vmatpush1.msra.mxu0 0.0
    %913 = vmatprep.subr.mxu0 0.0
    %914 = vmatpush1.msra.mxu0 0.0
    %915 = vmatprep.subr.mxu0 0.0
    %916 = vmatpush1.msra.mxu0 0.0
    %917 = vmatprep.subr.mxu0 0.0
    %918 = vmatpush1.msra.mxu0 0.0
    %919 = vmatprep.subr.mxu0 0.0
    %920 = vmatpush1.msra.mxu0 0.0
    %921 = vmatprep.subr.mxu0 0.0
    %922 = vmatpush1.msra.mxu0 0.0
    %923 = vmatprep.subr.mxu0 0.0
    %924 = vmatpush1.msra.mxu0 0.0
    %925 = vmatprep.subr.mxu0 0.0
    %926 = vmatpush1.msra.mxu0 0.0
    %927 = vmatprep.subr.mxu0 0.0
    %928 = vmatpush1.msra.mxu0 0.0
    %929 = vmatprep.mubr.f32.mxu0 0.0
    %930 = vmatmul.mubr.f32.gmra.mrb[0].mxu0 %v789
    %v931 = vpop.f32.mrb[0].mxu0
    %v932 = vadd.f32 0.0, %v931
    %v933 = vpop.f32.mrb[0].mxu0
    %934 = vdwg.mxu0
    %v935 = vadd.f32 %v791, %v861
    %v936 = vxor.u32 %v935, 2147483648
    %v937 = vmul.f32 %v936, 1.442695
    %v938 = vpow.pop %v937
    %v939 = vadd.f32 %v938, 1.0
    %v940 = vrcp.pop %v939
    %v941 = vmul.f32 1.0, %v940
    %v942 = vadd.f32 %v792, %v863
    %v943 = vxor.u32 %v942, 2147483648
    %v944 = vmul.f32 %v943, 1.442695
    %v945 = vpow.pop %v944
    %v946 = vadd.f32 %v945, 1.0
    %v947 = vrcp.pop %v946
    %v948 = vmul.f32 1.0, %v947
    %v949 = vadd.f32 %v932, %v120
    %v950 = vmul.f32 %v941, %v949
    %v951 = vadd.f32 %v793, %v950
    %v952 = vtanh.pop %v951
    %v953 = vsub.f32 1.0, %v948
    %v954 = vmul.f32 %v953, %v952
    %v955 = vmul.f32 %v948, %v789
    %v956 = vadd.f32 %v954, %v955
    %s957 = scalar_lea.vmem [#allocation3], 120
    %v958 = vld [vmem:[%s957] sm:$0xff]
    %v959 = vld [vmem:[%s957 + $0x8] sm:$0xff]
    %v960 = vld [vmem:[%s957 + $0x10] sm:$0xff]
    %961 = vmatprep.subr.mxu0 %v68
    %962 = vmatpush1.msra.mxu0 %v67
    %963 = vmatprep.subr.mxu0 %v71
    %964 = vmatpush1.msra.mxu0 %v70
    %965 = vmatprep.subr.mxu0 %v74
    %966 = vmatpush1.msra.mxu0 %v73
    %967 = vmatprep.subr.mxu0 %v77
    %968 = vmatpush1.msra.mxu0 %v76
    %969 = vmatprep.subr.mxu0 %v80
    %970 = vmatpush1.msra.mxu0 %v79
    %971 = vmatprep.subr.mxu0 %v83
    %972 = vmatpush1.msra.mxu0 %v82
    %973 = vmatprep.subr.mxu0 %v86
    %974 = vmatpush1.msra.mxu0 %v85
    %975 = vmatprep.subr.mxu0 %v89
    %976 = vmatpush1.msra.mxu0 %v88
    %977 = vmatprep.subr.mxu0 %v92
    %978 = vmatpush1.msra.mxu0 %v91
    %979 = vmatprep.subr.mxu0 %v95
    %980 = vmatpush1.msra.mxu0 %v94
    %981 = vmatprep.subr.mxu0 %v98
    %982 = vmatpush1.msra.mxu0 %v97
    %983 = vmatprep.subr.mxu0 %v101
    %984 = vmatpush1.msra.mxu0 %v100
    %985 = vmatprep.subr.mxu0 %v104
    %986 = vmatpush1.msra.mxu0 %v103
    %987 = vmatprep.subr.mxu0 %v107
    %988 = vmatpush1.msra.mxu0 %v106
    %989 = vmatprep.subr.mxu0 %v110
    %990 = vmatpush1.msra.mxu0 %v109
    %991 = vmatprep.subr.mxu0 %v113
    %992 = vmatpush1.msra.mxu0 %v112
    %993 = vmatprep.subr.mxu0 0.0
    %994 = vmatpush1.msra.mxu0 0.0
    %995 = vmatprep.subr.mxu0 0.0
    %996 = vmatpush1.msra.mxu0 0.0
    %997 = vmatprep.subr.mxu0 0.0
    %998 = vmatpush1.msra.mxu0 0.0
    %999 = vmatprep.subr.mxu0 0.0
    %1000 = vmatpush1.msra.mxu0 0.0
    %1001 = vmatprep.subr.mxu0 0.0
    %1002 = vmatpush1.msra.mxu0 0.0
    %1003 = vmatprep.subr.mxu0 0.0
    %1004 = vmatpush1.msra.mxu0 0.0
    %1005 = vmatprep.subr.mxu0 0.0
    %1006 = vmatpush1.msra.mxu0 0.0
    %1007 = vmatprep.subr.mxu0 0.0
    %1008 = vmatpush1.msra.mxu0 0.0
    %1009 = vmatprep.subr.mxu0 0.0
    %1010 = vmatpush1.msra.mxu0 0.0
    %1011 = vmatprep.subr.mxu0 0.0
    %1012 = vmatpush1.msra.mxu0 0.0
    %1013 = vmatprep.subr.mxu0 0.0
    %1014 = vmatpush1.msra.mxu0 0.0
    %1015 = vmatprep.subr.mxu0 0.0
    %1016 = vmatpush1.msra.mxu0 0.0
    %1017 = vmatprep.subr.mxu0 0.0
    %1018 = vmatpush1.msra.mxu0 0.0
    %1019 = vmatprep.subr.mxu0 0.0
    %1020 = vmatpush1.msra.mxu0 0.0
    %1021 = vmatprep.subr.mxu0 0.0
    %1022 = vmatpush1.msra.mxu0 0.0
    %1023 = vmatprep.subr.mxu0 0.0
    %1024 = vmatpush1.msra.mxu0 0.0
    %1025 = vmatprep.mubr.f32.mxu0 0.0
    %1026 = vmatmul.mubr.f32.gmra.mrb[0].mxu0 %v956
    %v1027 = vpop.f32.mrb[0].mxu0
    %v1028 = vadd.f32 0.0, %v1027
    %v1029 = vpop.f32.mrb[0].mxu0
    %v1030 = vadd.f32 0.0, %v1029
    %1031 = vdwg.mxu0
    %1032 = vmatprep.subr.mxu0 0.0
    %1033 = vmatpush1.msra.mxu0 %v69
    %1034 = vmatprep.subr.mxu0 0.0
    %1035 = vmatpush1.msra.mxu0 %v72
    %1036 = vmatprep.subr.mxu0 0.0
    %1037 = vmatpush1.msra.mxu0 %v75
    %1038 = vmatprep.subr.mxu0 0.0
    %1039 = vmatpush1.msra.mxu0 %v78
    %1040 = vmatprep.subr.mxu0 0.0
    %1041 = vmatpush1.msra.mxu0 %v81
    %1042 = vmatprep.subr.mxu0 0.0
    %1043 = vmatpush1.msra.mxu0 %v84
    %1044 = vmatprep.subr.mxu0 0.0
    %1045 = vmatpush1.msra.mxu0 %v87
    %1046 = vmatprep.subr.mxu0 0.0
    %1047 = vmatpush1.msra.mxu0 %v90
    %1048 = vmatprep.subr.mxu0 0.0
    %1049 = vmatpush1.msra.mxu0 %v93
    %1050 = vmatprep.subr.mxu0 0.0
    %1051 = vmatpush1.msra.mxu0 %v96
    %1052 = vmatprep.subr.mxu0 0.0
    %1053 = vmatpush1.msra.mxu0 %v99
    %1054 = vmatprep.subr.mxu0 0.0
    %1055 = vmatpush1.msra.mxu0 %v102
    %1056 = vmatprep.subr.mxu0 0.0
    %1057 = vmatpush1.msra.mxu0 %v105
    %1058 = vmatprep.subr.mxu0 0.0
    %1059 = vmatpush1.msra.mxu0 %v108
    %1060 = vmatprep.subr.mxu0 0.0
    %1061 = vmatpush1.msra.mxu0 %v111
    %1062 = vmatprep.subr.mxu0 0.0
    %1063 = vmatpush1.msra.mxu0 %v114
    %1064 = vmatprep.subr.mxu0 0.0
    %1065 = vmatpush1.msra.mxu0 0.0
    %1066 = vmatprep.subr.mxu0 0.0
    %1067 = vmatpush1.msra.mxu0 0.0
    %1068 = vmatprep.subr.mxu0 0.0
    %1069 = vmatpush1.msra.mxu0 0.0
    %1070 = vmatprep.subr.mxu0 0.0
    %1071 = vmatpush1.msra.mxu0 0.0
    %1072 = vmatprep.subr.mxu0 0.0
    %1073 = vmatpush1.msra.mxu0 0.0
    %1074 = vmatprep.subr.mxu0 0.0
    %1075 = vmatpush1.msra.mxu0 0.0
    %1076 = vmatprep.subr.mxu0 0.0
    %1077 = vmatpush1.msra.mxu0 0.0
    %1078 = vmatprep.subr.mxu0 0.0
    %1079 = vmatpush1.msra.mxu0 0.0
    %1080 = vmatprep.subr.mxu0 0.0
    %1081 = vmatpush1.msra.mxu0 0.0
    %1082 = vmatprep.subr.mxu0 0.0
    %1083 = vmatpush1.msra.mxu0 0.0
    %1084 = vmatprep.subr.mxu0 0.0
    %1085 = vmatpush1.msra.mxu0 0.0
    %1086 = vmatprep.subr.mxu0 0.0
    %1087 = vmatpush1.msra.mxu0 0.0
    %1088 = vmatprep.subr.mxu0 0.0
    %1089 = vmatpush1.msra.mxu0 0.0
    %1090 = vmatprep.subr.mxu0 0.0
    %1091 = vmatpush1.msra.mxu0 0.0
    %1092 = vmatprep.subr.mxu0 0.0
    %1093 = vmatpush1.msra.mxu0 0.0
    %1094 = vmatprep.subr.mxu0 0.0
    %1095 = vmatpush1.msra.mxu0 0.0
    %1096 = vmatprep.mubr.f32.mxu0 0.0
    %1097 = vmatmul.mubr.f32.gmra.mrb[0].mxu0 %v956
    %v1098 = vpop.f32.mrb[0].mxu0
    %v1099 = vadd.f32 0.0, %v1098
    %v1100 = vpop.f32.mrb[0].mxu0
    %1101 = vdwg.mxu0
    %v1102 = vadd.f32 %v958, %v1028
    %v1103 = vxor.u32 %v1102, 2147483648
    %v1104 = vmul.f32 %v1103, 1.442695
    %v1105 = vpow.pop %v1104
    %v1106 = vadd.f32 %v1105, 1.0
    %v1107 = vrcp.pop %v1106
    %v1108 = vmul.f32 1.0, %v1107
    %v1109 = vadd.f32 %v959, %v1030
    %v1110 = vxor.u32 %v1109, 2147483648
    %v1111 = vmul.f32 %v1110, 1.442695
    %v1112 = vpow.pop %v1111
    %v1113 = vadd.f32 %v1112, 1.0
    %v1114 = vrcp.pop %v1113
    %v1115 = vmul.f32 1.0, %v1114
    %v1116 = vadd.f32 %v1099, %v120
    %v1117 = vmul.f32 %v1108, %v1116
    %v1118 = vadd.f32 %v960, %v1117
    %v1119 = vtanh.pop %v1118
    %v1120 = vsub.f32 1.0, %v1115
    %v1121 = vmul.f32 %v1120, %v1119
    %v1122 = vmul.f32 %v1115, %v956
    %v1123 = vadd.f32 %v1121, %v1122
    %s1124 = scalar_lea.vmem [#allocation3], 144
    %v1125 = vld [vmem:[%s1124] sm:$0xff]
    %v1126 = vld [vmem:[%s1124 + $0x8] sm:$0xff]
    %v1127 = vld [vmem:[%s1124 + $0x10] sm:$0xff]
    %1128 = vmatprep.subr.mxu0 %v68
    %1129 = vmatpush1.msra.mxu0 %v67
    %1130 = vmatprep.subr.mxu0 %v71
    %1131 = vmatpush1.msra.mxu0 %v70
    %1132 = vmatprep.subr.mxu0 %v74
    %1133 = vmatpush1.msra.mxu0 %v73
    %1134 = vmatprep.subr.mxu0 %v77
    %1135 = vmatpush1.msra.mxu0 %v76
    %1136 = vmatprep.subr.mxu0 %v80
    %1137 = vmatpush1.msra.mxu0 %v79
    %1138 = vmatprep.subr.mxu0 %v83
    %1139 = vmatpush1.msra.mxu0 %v82
    %1140 = vmatprep.subr.mxu0 %v86
    %1141 = vmatpush1.msra.mxu0 %v85
    %1142 = vmatprep.subr.mxu0 %v89
    %1143 = vmatpush1.msra.mxu0 %v88
    %1144 = vmatprep.subr.mxu0 %v92
    %1145 = vmatpush1.msra.mxu0 %v91
    %1146 = vmatprep.subr.mxu0 %v95
    %1147 = vmatpush1.msra.mxu0 %v94
    %1148 = vmatprep.subr.mxu0 %v98
    %1149 = vmatpush1.msra.mxu0 %v97
    %1150 = vmatprep.subr.mxu0 %v101
    %1151 = vmatpush1.msra.mxu0 %v100
    %1152 = vmatprep.subr.mxu0 %v104
    %1153 = vmatpush1.msra.mxu0 %v103
    %1154 = vmatprep.subr.mxu0 %v107
    %1155 = vmatpush1.msra.mxu0 %v106
    %1156 = vmatprep.subr.mxu0 %v110
    %1157 = vmatpush1.msra.mxu0 %v109
    %1158 = vmatprep.subr.mxu0 %v113
    %1159 = vmatpush1.msra.mxu0 %v112
    %1160 = vmatprep.subr.mxu0 0.0
    %1161 = vmatpush1.msra.mxu0 0.0
    %1162 = vmatprep.subr.mxu0 0.0
    %1163 = vmatpush1.msra.mxu0 0.0
    %1164 = vmatprep.subr.mxu0 0.0
    %1165 = vmatpush1.msra.mxu0 0.0
    %1166 = vmatprep.subr.mxu0 0.0
    %1167 = vmatpush1.msra.mxu0 0.0
    %1168 = vmatprep.subr.mxu0 0.0
    %1169 = vmatpush1.msra.mxu0 0.0
    %1170 = vmatprep.subr.mxu0 0.0
    %1171 = vmatpush1.msra.mxu0 0.0
    %1172 = vmatprep.subr.mxu0 0.0
    %1173 = vmatpush1.msra.mxu0 0.0
    %1174 = vmatprep.subr.mxu0 0.0
    %1175 = vmatpush1.msra.mxu0 0.0
    %1176 = vmatprep.subr.mxu0 0.0
    %1177 = vmatpush1.msra.mxu0 0.0
    %1178 = vmatprep.subr.mxu0 0.0
    %1179 = vmatpush1.msra.mxu0 0.0
    %1180 = vmatprep.subr.mxu0 0.0
    %1181 = vmatpush1.msra.mxu0 0.0
    %1182 = vmatprep.subr.mxu0 0.0
    %1183 = vmatpush1.msra.mxu0 0.0
    %1184 = vmatprep.subr.mxu0 0.0
    %1185 = vmatpush1.msra.mxu0 0.0
    %1186 = vmatprep.subr.mxu0 0.0
    %1187 = vmatpush1.msra.mxu0 0.0
    %1188 = vmatprep.subr.mxu0 0.0
    %1189 = vmatpush1.msra.mxu0 0.0
    %1190 = vmatprep.subr.mxu0 0.0
    %1191 = vmatpush1.msra.mxu0 0.0
    %1192 = vmatprep.mubr.f32.mxu0 0.0
    %1193 = vmatmul.mubr.f32.gmra.mrb[0].mxu0 %v1123
    %v1194 = vpop.f32.mrb[0].mxu0
    %v1195 = vadd.f32 0.0, %v1194
    %v1196 = vpop.f32.mrb[0].mxu0
    %v1197 = vadd.f32 0.0, %v1196
    %1198 = vdwg.mxu0
    %1199 = vmatprep.subr.mxu0 0.0
    %1200 = vmatpush1.msra.mxu0 %v69
    %1201 = vmatprep.subr.mxu0 0.0
    %1202 = vmatpush1.msra.mxu0 %v72
    %1203 = vmatprep.subr.mxu0 0.0
    %1204 = vmatpush1.msra.mxu0 %v75
    %1205 = vmatprep.subr.mxu0 0.0
    %1206 = vmatpush1.msra.mxu0 %v78
    %1207 = vmatprep.subr.mxu0 0.0
    %1208 = vmatpush1.msra.mxu0 %v81
    %1209 = vmatprep.subr.mxu0 0.0
    %1210 = vmatpush1.msra.mxu0 %v84
    %1211 = vmatprep.subr.mxu0 0.0
    %1212 = vmatpush1.msra.mxu0 %v87
    %1213 = vmatprep.subr.mxu0 0.0
    %1214 = vmatpush1.msra.mxu0 %v90
    %1215 = vmatprep.subr.mxu0 0.0
    %1216 = vmatpush1.msra.mxu0 %v93
    %1217 = vmatprep.subr.mxu0 0.0
    %1218 = vmatpush1.msra.mxu0 %v96
    %1219 = vmatprep.subr.mxu0 0.0
    %1220 = vmatpush1.msra.mxu0 %v99
    %1221 = vmatprep.subr.mxu0 0.0
    %1222 = vmatpush1.msra.mxu0 %v102
    %1223 = vmatprep.subr.mxu0 0.0
    %1224 = vmatpush1.msra.mxu0 %v105
    %1225 = vmatprep.subr.mxu0 0.0
    %1226 = vmatpush1.msra.mxu0 %v108
    %1227 = vmatprep.subr.mxu0 0.0
    %1228 = vmatpush1.msra.mxu0 %v111
    %1229 = vmatprep.subr.mxu0 0.0
    %1230 = vmatpush1.msra.mxu0 %v114
    %1231 = vmatprep.subr.mxu0 0.0
    %1232 = vmatpush1.msra.mxu0 0.0
    %1233 = vmatprep.subr.mxu0 0.0
    %1234 = vmatpush1.msra.mxu0 0.0
    %1235 = vmatprep.subr.mxu0 0.0
    %1236 = vmatpush1.msra.mxu0 0.0
    %1237 = vmatprep.subr.mxu0 0.0
    %1238 = vmatpush1.msra.mxu0 0.0
    %1239 = vmatprep.subr.mxu0 0.0
    %1240 = vmatpush1.msra.mxu0 0.0
    %1241 = vmatprep.subr.mxu0 0.0
    %1242 = vmatpush1.msra.mxu0 0.0
    %1243 = vmatprep.subr.mxu0 0.0
    %1244 = vmatpush1.msra.mxu0 0.0
    %1245 = vmatprep.subr.mxu0 0.0
    %1246 = vmatpush1.msra.mxu0 0.0
    %1247 = vmatprep.subr.mxu0 0.0
    %1248 = vmatpush1.msra.mxu0 0.0
    %1249 = vmatprep.subr.mxu0 0.0
    %1250 = vmatpush1.msra.mxu0 0.0
    %1251 = vmatprep.subr.mxu0 0.0
    %1252 = vmatpush1.msra.mxu0 0.0
    %1253 = vmatprep.subr.mxu0 0.0
    %1254 = vmatpush1.msra.mxu0 0.0
    %1255 = vmatprep.subr.mxu0 0.0
    %1256 = vmatpush1.msra.mxu0 0.0
    %1257 = vmatprep.subr.mxu0 0.0
    %1258 = vmatpush1.msra.mxu0 0.0
    %1259 = vmatprep.subr.mxu0 0.0
    %1260 = vmatpush1.msra.mxu0 0.0
    %1261 = vmatprep.subr.mxu0 0.0
    %1262 = vmatpush1.msra.mxu0 0.0
    %1263 = vmatprep.mubr.f32.mxu0 0.0
    %1264 = vmatmul.mubr.f32.gmra.mrb[0].mxu0 %v1123
    %v1265 = vpop.f32.mrb[0].mxu0
    %v1266 = vadd.f32 0.0, %v1265
    %v1267 = vpop.f32.mrb[0].mxu0
    %1268 = vdwg.mxu0
    %v1269 = vadd.f32 %v1125, %v1195
    %v1270 = vxor.u32 %v1269, 2147483648
    %v1271 = vmul.f32 %v1270, 1.442695
    %v1272 = vpow.pop %v1271
    %v1273 = vadd.f32 %v1272, 1.0
    %v1274 = vrcp.pop %v1273
    %v1275 = vmul.f32 1.0, %v1274
    %v1276 = vadd.f32 %v1126, %v1197
    %v1277 = vxor.u32 %v1276, 2147483648
    %v1278 = vmul.f32 %v1277, 1.442695
    %v1279 = vpow.pop %v1278
    %v1280 = vadd.f32 %v1279, 1.0
    %v1281 = vrcp.pop %v1280
    %v1282 = vmul.f32 1.0, %v1281
    %v1283 = vadd.f32 %v1266, %v120
    %v1284 = vmul.f32 %v1275, %v1283
    %v1285 = vadd.f32 %v1127, %v1284
    %v1286 = vtanh.pop %v1285
    %v1287 = vsub.f32 1.0, %v1282
    %v1288 = vmul.f32 %v1287, %v1286
    %v1289 = vmul.f32 %v1282, %v1123
    %v1290 = vadd.f32 %v1288, %v1289
    %s1291 = scalar_lea.vmem [#allocation3], 168
    %v1292 = vld [vmem:[%s1291] sm:$0xff]
    %v1293 = vld [vmem:[%s1291 + $0x8] sm:$0xff]
    %v1294 = vld [vmem:[%s1291 + $0x10] sm:$0xff]
    %1295 = vmatprep.subr.mxu0 %v68
    %1296 = vmatpush1.msra.mxu0 %v67
    %1297 = vmatprep.subr.mxu0 %v71
    %1298 = vmatpush1.msra.mxu0 %v70
    %1299 = vmatprep.subr.mxu0 %v74
    %1300 = vmatpush1.msra.mxu0 %v73
    %1301 = vmatprep.subr.mxu0 %v77
    %1302 = vmatpush1.msra.mxu0 %v76
    %1303 = vmatprep.subr.mxu0 %v80
    %1304 = vmatpush1.msra.mxu0 %v79
    %1305 = vmatprep.subr.mxu0 %v83
    %1306 = vmatpush1.msra.mxu0 %v82
    %1307 = vmatprep.subr.mxu0 %v86
    %1308 = vmatpush1.msra.mxu0 %v85
    %1309 = vmatprep.subr.mxu0 %v89
    %1310 = vmatpush1.msra.mxu0 %v88
    %1311 = vmatprep.subr.mxu0 %v92
    %1312 = vmatpush1.msra.mxu0 %v91
    %1313 = vmatprep.subr.mxu0 %v95
    %1314 = vmatpush1.msra.mxu0 %v94
    %1315 = vmatprep.subr.mxu0 %v98
    %1316 = vmatpush1.msra.mxu0 %v97
    %1317 = vmatprep.subr.mxu0 %v101
    %1318 = vmatpush1.msra.mxu0 %v100
    %1319 = vmatprep.subr.mxu0 %v104
    %1320 = vmatpush1.msra.mxu0 %v103
    %1321 = vmatprep.subr.mxu0 %v107
    %1322 = vmatpush1.msra.mxu0 %v106
    %1323 = vmatprep.subr.mxu0 %v110
    %1324 = vmatpush1.msra.mxu0 %v109
    %1325 = vmatprep.subr.mxu0 %v113
    %1326 = vmatpush1.msra.mxu0 %v112
    %1327 = vmatprep.subr.mxu0 0.0
    %1328 = vmatpush1.msra.mxu0 0.0
    %1329 = vmatprep.subr.mxu0 0.0
    %1330 = vmatpush1.msra.mxu0 0.0
    %1331 = vmatprep.subr.mxu0 0.0
    %1332 = vmatpush1.msra.mxu0 0.0
    %1333 = vmatprep.subr.mxu0 0.0
    %1334 = vmatpush1.msra.mxu0 0.0
    %1335 = vmatprep.subr.mxu0 0.0
    %1336 = vmatpush1.msra.mxu0 0.0
    %1337 = vmatprep.subr.mxu0 0.0
    %1338 = vmatpush1.msra.mxu0 0.0
    %1339 = vmatprep.subr.mxu0 0.0
    %1340 = vmatpush1.msra.mxu0 0.0
    %1341 = vmatprep.subr.mxu0 0.0
    %1342 = vmatpush1.msra.mxu0 0.0
    %1343 = vmatprep.subr.mxu0 0.0
    %1344 = vmatpush1.msra.mxu0 0.0
    %1345 = vmatprep.subr.mxu0 0.0
    %1346 = vmatpush1.msra.mxu0 0.0
    %1347 = vmatprep.subr.mxu0 0.0
    %1348 = vmatpush1.msra.mxu0 0.0
    %1349 = vmatprep.subr.mxu0 0.0
    %1350 = vmatpush1.msra.mxu0 0.0
    %1351 = vmatprep.subr.mxu0 0.0
    %1352 = vmatpush1.msra.mxu0 0.0
    %1353 = vmatprep.subr.mxu0 0.0
    %1354 = vmatpush1.msra.mxu0 0.0
    %1355 = vmatprep.subr.mxu0 0.0
    %1356 = vmatpush1.msra.mxu0 0.0
    %1357 = vmatprep.subr.mxu0 0.0
    %1358 = vmatpush1.msra.mxu0 0.0
    %1359 = vmatprep.mubr.f32.mxu0 0.0
    %1360 = vmatmul.mubr.f32.gmra.mrb[0].mxu0 %v1290
    %v1361 = vpop.f32.mrb[0].mxu0
    %v1362 = vadd.f32 0.0, %v1361
    %v1363 = vpop.f32.mrb[0].mxu0
    %v1364 = vadd.f32 0.0, %v1363
    %1365 = vdwg.mxu0
    %1366 = vmatprep.subr.mxu0 0.0
    %1367 = vmatpush1.msra.mxu0 %v69
    %1368 = vmatprep.subr.mxu0 0.0
    %1369 = vmatpush1.msra.mxu0 %v72
    %1370 = vmatprep.subr.mxu0 0.0
    %1371 = vmatpush1.msra.mxu0 %v75
    %1372 = vmatprep.subr.mxu0 0.0
    %1373 = vmatpush1.msra.mxu0 %v78
    %1374 = vmatprep.subr.mxu0 0.0
    %1375 = vmatpush1.msra.mxu0 %v81
    %1376 = vmatprep.subr.mxu0 0.0
    %1377 = vmatpush1.msra.mxu0 %v84
    %1378 = vmatprep.subr.mxu0 0.0
    %1379 = vmatpush1.msra.mxu0 %v87
    %1380 = vmatprep.subr.mxu0 0.0
    %1381 = vmatpush1.msra.mxu0 %v90
    %1382 = vmatprep.subr.mxu0 0.0
    %1383 = vmatpush1.msra.mxu0 %v93
    %1384 = vmatprep.subr.mxu0 0.0
    %1385 = vmatpush1.msra.mxu0 %v96
    %1386 = vmatprep.subr.mxu0 0.0
    %1387 = vmatpush1.msra.mxu0 %v99
    %1388 = vmatprep.subr.mxu0 0.0
    %1389 = vmatpush1.msra.mxu0 %v102
    %1390 = vmatprep.subr.mxu0 0.0
    %1391 = vmatpush1.msra.mxu0 %v105
    %1392 = vmatprep.subr.mxu0 0.0
    %1393 = vmatpush1.msra.mxu0 %v108
    %1394 = vmatprep.subr.mxu0 0.0
    %1395 = vmatpush1.msra.mxu0 %v111
    %1396 = vmatprep.subr.mxu0 0.0
    %1397 = vmatpush1.msra.mxu0 %v114
    %1398 = vmatprep.subr.mxu0 0.0
    %1399 = vmatpush1.msra.mxu0 0.0
    %1400 = vmatprep.subr.mxu0 0.0
    %1401 = vmatpush1.msra.mxu0 0.0
    %1402 = vmatprep.subr.mxu0 0.0
    %1403 = vmatpush1.msra.mxu0 0.0
    %1404 = vmatprep.subr.mxu0 0.0
    %1405 = vmatpush1.msra.mxu0 0.0
    %1406 = vmatprep.subr.mxu0 0.0
    %1407 = vmatpush1.msra.mxu0 0.0
    %1408 = vmatprep.subr.mxu0 0.0
    %1409 = vmatpush1.msra.mxu0 0.0
    %1410 = vmatprep.subr.mxu0 0.0
    %1411 = vmatpush1.msra.mxu0 0.0
    %1412 = vmatprep.subr.mxu0 0.0
    %1413 = vmatpush1.msra.mxu0 0.0
    %1414 = vmatprep.subr.mxu0 0.0
    %1415 = vmatpush1.msra.mxu0 0.0
    %1416 = vmatprep.subr.mxu0 0.0
    %1417 = vmatpush1.msra.mxu0 0.0
    %1418 = vmatprep.subr.mxu0 0.0
    %1419 = vmatpush1.msra.mxu0 0.0
    %1420 = vmatprep.subr.mxu0 0.0
    %1421 = vmatpush1.msra.mxu0 0.0
    %1422 = vmatprep.subr.mxu0 0.0
    %1423 = vmatpush1.msra.mxu0 0.0
    %1424 = vmatprep.subr.mxu0 0.0
    %1425 = vmatpush1.msra.mxu0 0.0
    %1426 = vmatprep.subr.mxu0 0.0
    %1427 = vmatpush1.msra.mxu0 0.0
    %1428 = vmatprep.subr.mxu0 0.0
    %1429 = vmatpush1.msra.mxu0 0.0
    %1430 = vmatprep.mubr.f32.mxu0 0.0
    %1431 = vmatmul.mubr.f32.gmra.mrb[0].mxu0 %v1290
    %v1432 = vpop.f32.mrb[0].mxu0
    %v1433 = vadd.f32 0.0, %v1432
    %v1434 = vpop.f32.mrb[0].mxu0
    %1435 = vdwg.mxu0
    %v1436 = vadd.f32 %v1292, %v1362
    %v1437 = vxor.u32 %v1436, 2147483648
    %v1438 = vmul.f32 %v1437, 1.442695
    %v1439 = vpow.pop %v1438
    %v1440 = vadd.f32 %v1439, 1.0
    %v1441 = vrcp.pop %v1440
    %v1442 = vmul.f32 1.0, %v1441
    %v1443 = vadd.f32 %v1293, %v1364
    %v1444 = vxor.u32 %v1443, 2147483648
    %v1445 = vmul.f32 %v1444, 1.442695
    %v1446 = vpow.pop %v1445
    %v1447 = vadd.f32 %v1446, 1.0
    %v1448 = vrcp.pop %v1447
    %v1449 = vmul.f32 1.0, %v1448
    %v1450 = vadd.f32 %v1433, %v120
    %v1451 = vmul.f32 %v1442, %v1450
    %v1452 = vadd.f32 %v1294, %v1451
    %v1453 = vtanh.pop %v1452
    %v1454 = vsub.f32 1.0, %v1449
    %v1455 = vmul.f32 %v1454, %v1453
    %v1456 = vmul.f32 %v1449, %v1290
    %v1457 = vadd.f32 %v1455, %v1456
    %1458 = vst [vmem:[#allocation2] sm:$0xff] %v1457
    // Predicated region
    $region38: #{tpu_custom_call.1} parent=1 // pred_check
      %p1459 = pneg %p62
    $region39: #{tpu_custom_call.1} parent=1 // pred_check_branch
      %1461 = sbr.rel (%p1459) target = $region41
    $region40: #{tpu_custom_call.1} parent=1 // pred_region
      %v1462 = vld [vmem:[#allocation8] sm:$0xff]
      %v1463 = vld [vmem:[#allocation8 + $0x8] sm:$0xff]
      %v1464 = vld [vmem:[#allocation8 + $0x10] sm:$0xff]
      %v1465 = vld [vmem:[#allocation8 + $0x18] sm:$0xff]
      %v1466 = vld [vmem:[#allocation8 + $0x20] sm:$0xff]
      %v1467 = vld [vmem:[#allocation8 + $0x28] sm:$0xff]
      %v1468 = vld [vmem:[#allocation8 + $0x30] sm:$0xff]
      %v1469 = vld [vmem:[#allocation8 + $0x38] sm:$0xff]
      %v1470 = vld [vmem:[#allocation8 + $0x40] sm:$0xff]
      %v1471 = vld [vmem:[#allocation8 + $0x48] sm:$0xff]
      %v1472 = vld [vmem:[#allocation8 + $0x50] sm:$0xff]
      %v1473 = vld [vmem:[#allocation8 + $0x58] sm:$0xff]
      %v1474 = vld [vmem:[#allocation8 + $0x60] sm:$0xff]
      %v1475 = vld [vmem:[#allocation8 + $0x68] sm:$0xff]
      %v1476 = vld [vmem:[#allocation8 + $0x70] sm:$0xff]
      %v1477 = vld [vmem:[#allocation8 + $0x78] sm:$0xff]
      %v1478 = vld [vmem:[%s4] sm:$0x1]
      %v1480 = vlaneseq
      %v1481 = vshrl.u32 %v1480, 7
      %v1482 = vsub.s32 0, %v1481
      %v1483 = vrot.slane %v1478, %v1482
      %1485 = vmatprep.subr.mxu0 0.0
      %1486 = vmatpush1.msra.mxu0 %v1462
      %1487 = vmatprep.subr.mxu0 0.0
      %1488 = vmatpush1.msra.mxu0 %v1463
      %1489 = vmatprep.subr.mxu0 0.0
      %1490 = vmatpush1.msra.mxu0 %v1464
      %1491 = vmatprep.subr.mxu0 0.0
      %1492 = vmatpush1.msra.mxu0 %v1465
      %1493 = vmatprep.subr.mxu0 0.0
      %1494 = vmatpush1.msra.mxu0 %v1466
      %1495 = vmatprep.subr.mxu0 0.0
      %1496 = vmatpush1.msra.mxu0 %v1467
      %1497 = vmatprep.subr.mxu0 0.0
      %1498 = vmatpush1.msra.mxu0 %v1468
      %1499 = vmatprep.subr.mxu0 0.0
      %1500 = vmatpush1.msra.mxu0 %v1469
      %1501 = vmatprep.subr.mxu0 0.0
      %1502 = vmatpush1.msra.mxu0 %v1470
      %1503 = vmatprep.subr.mxu0 0.0
      %1504 = vmatpush1.msra.mxu0 %v1471
      %1505 = vmatprep.subr.mxu0 0.0
      %1506 = vmatpush1.msra.mxu0 %v1472
      %1507 = vmatprep.subr.mxu0 0.0
      %1508 = vmatpush1.msra.mxu0 %v1473
      %1509 = vmatprep.subr.mxu0 0.0
      %1510 = vmatpush1.msra.mxu0 %v1474
      %1511 = vmatprep.subr.mxu0 0.0
      %1512 = vmatpush1.msra.mxu0 %v1475
      %1513 = vmatprep.subr.mxu0 0.0
      %1514 = vmatpush1.msra.mxu0 %v1476
      %1515 = vmatprep.subr.mxu0 0.0
      %1516 = vmatpush1.msra.mxu0 %v1477
      %1517 = vmatprep.subr.mxu0 0.0
      %1518 = vmatpush1.msra.mxu0 0.0
      %1519 = vmatprep.subr.mxu0 0.0
      %1520 = vmatpush1.msra.mxu0 0.0
      %1521 = vmatprep.subr.mxu0 0.0
      %1522 = vmatpush1.msra.mxu0 0.0
      %1523 = vmatprep.subr.mxu0 0.0
      %1524 = vmatpush1.msra.mxu0 0.0
      %1525 = vmatprep.subr.mxu0 0.0
      %1526 = vmatpush1.msra.mxu0 0.0
      %1527 = vmatprep.subr.mxu0 0.0
      %1528 = vmatpush1.msra.mxu0 0.0
      %1529 = vmatprep.subr.mxu0 0.0
      %1530 = vmatpush1.msra.mxu0 0.0
      %1531 = vmatprep.subr.mxu0 0.0
      %1532 = vmatpush1.msra.mxu0 0.0
      %1533 = vmatprep.subr.mxu0 0.0
      %1534 = vmatpush1.msra.mxu0 0.0
      %1535 = vmatprep.subr.mxu0 0.0
      %1536 = vmatpush1.msra.mxu0 0.0
      %1537 = vmatprep.subr.mxu0 0.0
      %1538 = vmatpush1.msra.mxu0 0.0
      %1539 = vmatprep.subr.mxu0 0.0
      %1540 = vmatpush1.msra.mxu0 0.0
      %1541 = vmatprep.subr.mxu0 0.0
      %1542 = vmatpush1.msra.mxu0 0.0
      %1543 = vmatprep.subr.mxu0 0.0
      %1544 = vmatpush1.msra.mxu0 0.0
      %1545 = vmatprep.subr.mxu0 0.0
      %1546 = vmatpush1.msra.mxu0 0.0
      %1547 = vmatprep.subr.mxu0 0.0
      %1548 = vmatpush1.msra.mxu0 0.0
      %1549 = vmatprep.mubr.f32.mxu0 0.0
      %1550 = vmatmul.mubr.f32.gmra.mrb[0].mxu0 %v1457
      %v1551 = vpop.f32.mrb[0].mxu0
      %v1552 = vadd.f32 %v1483, %v1551
      %v1553 = vpop.f32.mrb[0].mxu0
      %1554 = vdwg.mxu0
      %1555 = vst [vmem:[#allocation9] sm:$0xff] %v1552
    $region41: #{tpu_custom_call.1} parent=1 // pred_fallthru
      _
    // Predicated region
    $region42: #{tpu_custom_call.1} parent=1 // pred_check
      _
    $region43: #{tpu_custom_call.1} parent=1 // pred_check_branch
      %1557 = sbr.rel (0) target = $region45
    $region44: #{tpu_custom_call.1} parent=1 // pred_region
      %s1559 = ssub.s32 128, 128
      %1560 = vsyncadd [#allocation5], %s1559
      %s1562 = sshll.u32 [#allocation9], 4
      %s1563 = int_to_ptr.vmem [resolvable:$true] %s1562
      %1565 = dma.vmem_to_hbm [thread:$0]  %s1563, 128, %s5, [#allocation5]
    $region45: #{tpu_custom_call.1} parent=1 // pred_fallthru
      _
    // Predicated region
    $region46: #{tpu_custom_call.1} parent=1 // pred_check
      _
    $region47: #{tpu_custom_call.1} parent=1 // pred_check_branch
      %1567 = sbr.rel (0) target = $region49
    $region48: #{tpu_custom_call.1} parent=1 // pred_region
      %1568 = dma.done [#allocation5], 128
    $region49: #{tpu_custom_call.1} parent=1 // pred_fallthru
      _
    %1569 = vsyncpa [#allocation4], 1
    %1570 = vsyncpa [#allocation7], 1
    %1571 = vsyncpa [#allocation5], 1

// kernel: tpu_custom_call.1
$region0: #{tpu_custom_call.1}
  #allocation0 [shape = 'u32[]', space=smem, size = 0x4, offset = 0x4, fixed_abs, tag = 'smem constant byte address 0x4 - core index']
  #allocation1 [shape = 'u32[144,128]{1,0:T(1,128)}', space=vmem, size = 0x12000, scoped, tag = 'internal scratch']
  #allocation2 [shape = 'f32[8,128]{1,0:T(8,128)}', space=vmem, size = 0x1000, scoped, tag = 'scratch operand']
  %s0 = inlined_call_operand.hbm [shape: f32[1,8,8,384], index: 0, kind: input, shape index: {}]
  %s1 = inlined_call_operand.hbm [shape: f32[128,384], index: 1, kind: input, shape index: {}]
  %s2 = inlined_call_operand.vmem [shape: f32[1,128], index: 2, kind: input, shape index: {}]
  %s3 = inlined_call_operand.hbm [shape: f32[128,128], index: 3, kind: input, shape index: {}]
  %s4 = inlined_call_operand.vmem [shape: f32[1,128], index: 4, kind: input, shape index: {}]
  %s5 = inlined_call_operand.hbm [shape: f32[8,128], index: 5, kind: output, shape index: {}]
  %s6 = sld [smem:[#allocation0]]
  $region50: #{tpu_custom_call.1} parent=0
    _
  %s8 = ssub.s32 1, %s6
  %s9 = scalar_select 0, %s8, %s6
  $region1: #{tpu_custom_call.1} parent=0
    #allocation3 [shape = 'u8[98304]{0}', space=vmem, size = 0x18000, scoped, tag = 'input window, operand 0, single buffered']
    #allocation4 [shape = 's32[1]{0}', space=sflag, size = 0x4, scoped, tag = 'scoped memory for tpu_custom_call.1']
    #allocation5 [shape = 's32[1]{0}', space=sflag, size = 0x4, scoped, tag = 'scoped memory for tpu_custom_call.1']
    #allocation6 [shape = 'u8[196608]{0}', space=vmem, size = 0x30000, scoped, tag = 'input window, operand 1, single buffered']
    #allocation7 [shape = 's32[1]{0}', space=sflag, size = 0x4, scoped, tag = 'scoped memory for tpu_custom_call.1']
    #allocation8 [shape = 'u8[65536]{0}', space=vmem, size = 0x10000, scoped, tag = 'input window, operand 3, single buffered']
    #allocation9 [shape = 'u8[4096]{0}', space=vmem, size = 0x1000, scoped, tag = 'output window, operand 0, single buffered']
    %10 = vsyncpa [#allocation4], 0
    %11 = vsyncpa [#allocation7], 0
    %12 = vsyncpa [#allocation5], 0
    // Predicated region
    $region2: #{tpu_custom_call.1} parent=1 // pred_check
      _
    $region3: #{tpu_custom_call.1} parent=1 // pred_check_branch
      %14 = sbr.rel (0) target = $region5
    $region4: #{tpu_custom_call.1} parent=1 // pred_region
      %s16 = ssub.s32 3072, 3072
      %17 = vsyncadd [#allocation4], %s16
      %s18 = sshll.u32 [#allocation3], 4
      %s19 = int_to_ptr.vmem [resolvable:$true] %s18
      %24 = dma.hbm_to_vmem [thread:$0]  %s0, 3072, %s19, [#allocation4], 384, 384, 24
    $region5: #{tpu_custom_call.1} parent=1 // pred_fallthru
      _
    // Predicated region
    $region6: #{tpu_custom_call.1} parent=1 // pred_check
      _
    $region7: #{tpu_custom_call.1} parent=1 // pred_check_branch
      %26 = sbr.rel (0) target = $region9
    $region8: #{tpu_custom_call.1} parent=1 // pred_region
      %s28 = ssub.s32 6144, 6144
      %29 = vsyncadd [#allocation7], %s28
      %s30 = sshll.u32 [#allocation6], 4
      %s31 = int_to_ptr.vmem [resolvable:$true] %s30
      %36 = dma.hbm_to_vmem [thread:$0]  %s1, 6144, %s31, [#allocation7], 384, 384, 24
    $region9: #{tpu_custom_call.1} parent=1 // pred_fallthru
      _
    // Predicated region
    $region10: #{tpu_custom_call.1} parent=1 // pred_check
      _
    $region11: #{tpu_custom_call.1} parent=1 // pred_check_branch
      %38 = sbr.rel (0) target = $region13
    $region12: #{tpu_custom_call.1} parent=1 // pred_region
      _
    $region13: #{tpu_custom_call.1} parent=1 // pred_fallthru
      _
    // Predicated region
    $region14: #{tpu_custom_call.1} parent=1 // pred_check
      _
    $region15: #{tpu_custom_call.1} parent=1 // pred_check_branch
      %40 = sbr.rel (0) target = $region17
    $region16: #{tpu_custom_call.1} parent=1 // pred_region
      %s42 = ssub.s32 2048, 2048
      %43 = vsyncadd [#allocation7], %s42
      %s44 = sshll.u32 [#allocation8], 4
      %s45 = int_to_ptr.vmem [resolvable:$true] %s44
      %50 = dma.hbm_to_vmem [thread:$0]  %s3, 2048, %s45, [#allocation7], 128, 128, 8
    $region17: #{tpu_custom_call.1} parent=1 // pred_fallthru
      _
    // Predicated region
    $region18: #{tpu_custom_call.1} parent=1 // pred_check
      _
    $region19: #{tpu_custom_call.1} parent=1 // pred_check_branch
      %52 = sbr.rel (0) target = $region21
    $region20: #{tpu_custom_call.1} parent=1 // pred_region
      _
    $region21: #{tpu_custom_call.1} parent=1 // pred_fallthru
      _
    // Predicated region
    $region22: #{tpu_custom_call.1} parent=1 // pred_check
      _
    $region23: #{tpu_custom_call.1} parent=1 // pred_check_branch
      %54 = sbr.rel (0) target = $region25
    $region24: #{tpu_custom_call.1} parent=1 // pred_region
      %55 = dma.done [#allocation4], 3072
    $region25: #{tpu_custom_call.1} parent=1 // pred_fallthru
      _
    // Predicated region
    $region26: #{tpu_custom_call.1} parent=1 // pred_check
      _
    $region27: #{tpu_custom_call.1} parent=1 // pred_check_branch
      %57 = sbr.rel (0) target = $region29
    $region28: #{tpu_custom_call.1} parent=1 // pred_region
      %58 = dma.done [#allocation7], 6144
    $region29: #{tpu_custom_call.1} parent=1 // pred_fallthru
      _
    // Predicated region
    $region30: #{tpu_custom_call.1} parent=1 // pred_check
      _
    $region31: #{tpu_custom_call.1} parent=1 // pred_check_branch
      %60 = sbr.rel (0) target = $region33
    $region32: #{tpu_custom_call.1} parent=1 // pred_region
      %61 = dma.done [#allocation7], 2048
    $region33: #{tpu_custom_call.1} parent=1 // pred_fallthru
      _
    %p62 = scmp.eq.s32.totalorder 0, 0
    // Predicated region
    $region34: #{tpu_custom_call.1} parent=1 // pred_check
      %p63 = pneg %p62
    $region35: #{tpu_custom_call.1} parent=1 // pred_check_branch
      %65 = sbr.rel (%p63) target = $region37
    $region36: #{tpu_custom_call.1} parent=1 // pred_region
      %66 = vst [vmem:[#allocation2] sm:$0xff] 0.0
    $region37: #{tpu_custom_call.1} parent=1 // pred_fallthru
      _
    %v67 = vld [vmem:[#allocation6] sm:$0xff]
    %v68 = vld [vmem:[#allocation6 + $0x8] sm:$0xff]
    %v69 = vld [vmem:[#allocation6 + $0x10] sm:$0xff]
    %v70 = vld [vmem:[#allocation6 + $0x18] sm:$0xff]
    %v71 = vld [vmem:[#allocation6 + $0x20] sm:$0xff]
    %v72 = vld [vmem:[#allocation6 + $0x28] sm:$0xff]
    %v73 = vld [vmem:[#allocation6 + $0x30] sm:$0xff]
    %v74 = vld [vmem:[#allocation6 + $0x38] sm:$0xff]
    %v75 = vld [vmem:[#allocation6 + $0x40] sm:$0xff]
    %v76 = vld [vmem:[#allocation6 + $0x48] sm:$0xff]
    %v77 = vld [vmem:[#allocation6 + $0x50] sm:$0xff]
    %v78 = vld [vmem:[#allocation6 + $0x58] sm:$0xff]
    %v79 = vld [vmem:[#allocation6 + $0x60] sm:$0xff]
    %v80 = vld [vmem:[#allocation6 + $0x68] sm:$0xff]
    %v81 = vld [vmem:[#allocation6 + $0x70] sm:$0xff]
    %v82 = vld [vmem:[#allocation6 + $0x78] sm:$0xff]
    %v83 = vld [vmem:[#allocation6 + $0x80] sm:$0xff]
    %v84 = vld [vmem:[#allocation6 + $0x88] sm:$0xff]
    %v85 = vld [vmem:[#allocation6 + $0x90] sm:$0xff]
    %v86 = vld [vmem:[#allocation6 + $0x98] sm:$0xff]
    %v87 = vld [vmem:[#allocation6 + $0xa0] sm:$0xff]
    %v88 = vld [vmem:[#allocation6 + $0xa8] sm:$0xff]
    %v89 = vld [vmem:[#allocation6 + $0xb0] sm:$0xff]
    %v90 = vld [vmem:[#allocation6 + $0xb8] sm:$0xff]
    %v91 = vld [vmem:[#allocation6 + $0xc0] sm:$0xff]
    %v92 = vld [vmem:[#allocation6 + $0xc8] sm:$0xff]
    %v93 = vld [vmem:[#allocation6 + $0xd0] sm:$0xff]
    %v94 = vld [vmem:[#allocation6 + $0xd8] sm:$0xff]
    %v95 = vld [vmem:[#allocation6 + $0xe0] sm:$0xff]
    %v96 = vld [vmem:[#allocation6 + $0xe8] sm:$0xff]
    %v97 = vld [vmem:[#allocation6 + $0xf0] sm:$0xff]
    %v98 = vld [vmem:[#allocation6 + $0xf8] sm:$0xff]
    %v99 = vld [vmem:[#allocation6 + $0x100] sm:$0xff]
    %v100 = vld [vmem:[#allocation6 + $0x108] sm:$0xff]
    %v101 = vld [vmem:[#allocation6 + $0x110] sm:$0xff]
    %v102 = vld [vmem:[#allocation6 + $0x118] sm:$0xff]
    %v103 = vld [vmem:[#allocation6 + $0x120] sm:$0xff]
    %v104 = vld [vmem:[#allocation6 + $0x128] sm:$0xff]
    %v105 = vld [vmem:[#allocation6 + $0x130] sm:$0xff]
    %v106 = vld [vmem:[#allocation6 + $0x138] sm:$0xff]
    %v107 = vld [vmem:[#allocation6 + $0x140] sm:$0xff]
    %v108 = vld [vmem:[#allocation6 + $0x148] sm:$0xff]
    %v109 = vld [vmem:[#allocation6 + $0x150] sm:$0xff]
    %v110 = vld [vmem:[#allocation6 + $0x158] sm:$0xff]
    %v111 = vld [vmem:[#allocation6 + $0x160] sm:$0xff]
    %v112 = vld [vmem:[#allocation6 + $0x168] sm:$0xff]
    %v113 = vld [vmem:[#allocation6 + $0x170] sm:$0xff]
    %v114 = vld [vmem:[#allocation6 + $0x178] sm:$0xff]
    %v115 = vld [vmem:[%s2] sm:$0x1]
    %v117 = vlaneseq
    %v118 = vshrl.u32 %v117, 7
    %v119 = vsub.s32 0, %v118
    %v120 = vrot.slane %v115, %v119
    %v122 = vld [vmem:[#allocation2] sm:$0xff]
    %v123 = vld [vmem:[#allocation3] sm:$0xff]
    %v124 = vld [vmem:[#allocation3 + $0x8] sm:$0xff]
    %v125 = vld [vmem:[#allocation3 + $0x10] sm:$0xff]
    %126 = vmatprep.subr.mxu0 %v68
    %127 = vmatpush1.msra.mxu0 %v67
    %128 = vmatprep.subr.mxu0 %v71
    %129 = vmatpush1.msra.mxu0 %v70
    %130 = vmatprep.subr.mxu0 %v74
    %131 = vmatpush1.msra.mxu0 %v73
    %132 = vmatprep.subr.mxu0 %v77
    %133 = vmatpush1.msra.mxu0 %v76
    %134 = vmatprep.subr.mxu0 %v80
    %135 = vmatpush1.msra.mxu0 %v79
    %136 = vmatprep.subr.mxu0 %v83
    %137 = vmatpush1.msra.mxu0 %v82
    %138 = vmatprep.subr.mxu0 %v86
    %139 = vmatpush1.msra.mxu0 %v85
    %140 = vmatprep.subr.mxu0 %v89
    %141 = vmatpush1.msra.mxu0 %v88
    %142 = vmatprep.subr.mxu0 %v92
    %143 = vmatpush1.msra.mxu0 %v91
    %144 = vmatprep.subr.mxu0 %v95
    %145 = vmatpush1.msra.mxu0 %v94
    %146 = vmatprep.subr.mxu0 %v98
    %147 = vmatpush1.msra.mxu0 %v97
    %148 = vmatprep.subr.mxu0 %v101
    %149 = vmatpush1.msra.mxu0 %v100
    %150 = vmatprep.subr.mxu0 %v104
    %151 = vmatpush1.msra.mxu0 %v103
    %152 = vmatprep.subr.mxu0 %v107
    %153 = vmatpush1.msra.mxu0 %v106
    %154 = vmatprep.subr.mxu0 %v110
    %155 = vmatpush1.msra.mxu0 %v109
    %156 = vmatprep.subr.mxu0 %v113
    %157 = vmatpush1.msra.mxu0 %v112
    %158 = vmatprep.subr.mxu0 0.0
    %159 = vmatpush1.msra.mxu0 0.0
    %160 = vmatprep.subr.mxu0 0.0
    %161 = vmatpush1.msra.mxu0 0.0
    %162 = vmatprep.subr.mxu0 0.0
    %163 = vmatpush1.msra.mxu0 0.0
    %164 = vmatprep.subr.mxu0 0.0
    %165 = vmatpush1.msra.mxu0 0.0
    %166 = vmatprep.subr.mxu0 0.0
    %167 = vmatpush1.msra.mxu0 0.0
    %168 = vmatprep.subr.mxu0 0.0
    %169 = vmatpush1.msra.mxu0 0.0
    %170 = vmatprep.subr.mxu0 0.0
    %171 = vmatpush1.msra.mxu0 0.0
    %172 = vmatprep.subr.mxu0 0.0
    %173 = vmatpush1.msra.mxu0 0.0
    %174 = vmatprep.subr.mxu0 0.0
    %175 = vmatpush1.msra.mxu0 0.0
    %176 = vmatprep.subr.mxu0 0.0
    %177 = vmatpush1.msra.mxu0 0.0
    %178 = vmatprep.subr.mxu0 0.0
    %179 = vmatpush1.msra.mxu0 0.0
    %180 = vmatprep.subr.mxu0 0.0
    %181 = vmatpush1.msra.mxu0 0.0
    %182 = vmatprep.subr.mxu0 0.0
    %183 = vmatpush1.msra.mxu0 0.0
    %184 = vmatprep.subr.mxu0 0.0
    %185 = vmatpush1.msra.mxu0 0.0
    %186 = vmatprep.subr.mxu0 0.0
    %187 = vmatpush1.msra.mxu0 0.0
    %188 = vmatprep.subr.mxu0 0.0
    %189 = vmatpush1.msra.mxu0 0.0
    %190 = vmatprep.mubr.f32.mxu0 0.0
    %191 = vmatmul.mubr.f32.gmra.mrb[0].mxu0 %v122
    %v192 = vpop.f32.mrb[0].mxu0
    %v193 = vadd.f32 0.0, %v192
    %v194 = vpop.f32.mrb[0].mxu0
    %v195 = vadd.f32 0.0, %v194
    %196 = vdwg.mxu0
    %197 = vmatprep.subr.mxu0 0.0
    %198 = vmatpush1.msra.mxu0 %v69
    %199 = vmatprep.subr.mxu0 0.0
    %200 = vmatpush1.msra.mxu0 %v72
    %201 = vmatprep.subr.mxu0 0.0
    %202 = vmatpush1.msra.mxu0 %v75
    %203 = vmatprep.subr.mxu0 0.0
    %204 = vmatpush1.msra.mxu0 %v78
    %205 = vmatprep.subr.mxu0 0.0
    %206 = vmatpush1.msra.mxu0 %v81
    %207 = vmatprep.subr.mxu0 0.0
    %208 = vmatpush1.msra.mxu0 %v84
    %209 = vmatprep.subr.mxu0 0.0
    %210 = vmatpush1.msra.mxu0 %v87
    %211 = vmatprep.subr.mxu0 0.0
    %212 = vmatpush1.msra.mxu0 %v90
    %213 = vmatprep.subr.mxu0 0.0
    %214 = vmatpush1.msra.mxu0 %v93
    %215 = vmatprep.subr.mxu0 0.0
    %216 = vmatpush1.msra.mxu0 %v96
    %217 = vmatprep.subr.mxu0 0.0
    %218 = vmatpush1.msra.mxu0 %v99
    %219 = vmatprep.subr.mxu0 0.0
    %220 = vmatpush1.msra.mxu0 %v102
    %221 = vmatprep.subr.mxu0 0.0
    %222 = vmatpush1.msra.mxu0 %v105
    %223 = vmatprep.subr.mxu0 0.0
    %224 = vmatpush1.msra.mxu0 %v108
    %225 = vmatprep.subr.mxu0 0.0
    %226 = vmatpush1.msra.mxu0 %v111
    %227 = vmatprep.subr.mxu0 0.0
    %228 = vmatpush1.msra.mxu0 %v114
    %229 = vmatprep.subr.mxu0 0.0
    %230 = vmatpush1.msra.mxu0 0.0
    %231 = vmatprep.subr.mxu0 0.0
    %232 = vmatpush1.msra.mxu0 0.0
    %233 = vmatprep.subr.mxu0 0.0
    %234 = vmatpush1.msra.mxu0 0.0
    %235 = vmatprep.subr.mxu0 0.0
    %236 = vmatpush1.msra.mxu0 0.0
    %237 = vmatprep.subr.mxu0 0.0
    %238 = vmatpush1.msra.mxu0 0.0
    %239 = vmatprep.subr.mxu0 0.0
    %240 = vmatpush1.msra.mxu0 0.0
    %241 = vmatprep.subr.mxu0 0.0
    %242 = vmatpush1.msra.mxu0 0.0
    %243 = vmatprep.subr.mxu0 0.0
    %244 = vmatpush1.msra.mxu0 0.0
    %245 = vmatprep.subr.mxu0 0.0
    %246 = vmatpush1.msra.mxu0 0.0
    %247 = vmatprep.subr.mxu0 0.0
    %248 = vmatpush1.msra.mxu0 0.0
    %249 = vmatprep.subr.mxu0 0.0
    %250 = vmatpush1.msra.mxu0 0.0
    %251 = vmatprep.subr.mxu0 0.0
    %252 = vmatpush1.msra.mxu0 0.0
    %253 = vmatprep.subr.mxu0 0.0
    %254 = vmatpush1.msra.mxu0 0.0
    %255 = vmatprep.subr.mxu0 0.0
    %256 = vmatpush1.msra.mxu0 0.0
    %257 = vmatprep.subr.mxu0 0.0
    %258 = vmatpush1.msra.mxu0 0.0
    %259 = vmatprep.subr.mxu0 0.0
    %260 = vmatpush1.msra.mxu0 0.0
    %261 = vmatprep.mubr.f32.mxu0 0.0
    %262 = vmatmul.mubr.f32.gmra.mrb[0].mxu0 %v122
    %v263 = vpop.f32.mrb[0].mxu0
    %v264 = vadd.f32 0.0, %v263
    %v265 = vpop.f32.mrb[0].mxu0
    %266 = vdwg.mxu0
    %v267 = vadd.f32 %v123, %v193
    %v268 = vxor.u32 %v267, 2147483648
    %v269 = vmul.f32 %v268, 1.442695
    %v270 = vpow.pop %v269
    %v271 = vadd.f32 %v270, 1.0
    %v272 = vrcp.pop %v271
    %v273 = vmul.f32 1.0, %v272
    %v274 = vadd.f32 %v124, %v195
    %v275 = vxor.u32 %v274, 2147483648
    %v276 = vmul.f32 %v275, 1.442695
    %v277 = vpow.pop %v276
    %v278 = vadd.f32 %v277, 1.0
    %v279 = vrcp.pop %v278
    %v280 = vmul.f32 1.0, %v279
    %v281 = vadd.f32 %v264, %v120
    %v282 = vmul.f32 %v273, %v281
    %v283 = vadd.f32 %v125, %v282
    %v284 = vtanh.pop %v283
    %v285 = vsub.f32 1.0, %v280
    %v286 = vmul.f32 %v285, %v284
    %v287 = vmul.f32 %v280, %v122
    %v288 = vadd.f32 %v286, %v287
    %s289 = scalar_lea.vmem [#allocation3], 24
    %v290 = vld [vmem:[%s289] sm:$0xff]
    %v291 = vld [vmem:[%s289 + $0x8] sm:$0xff]
    %v292 = vld [vmem:[%s289 + $0x10] sm:$0xff]
    %293 = vmatprep.subr.mxu0 %v68
    %294 = vmatpush1.msra.mxu0 %v67
    %295 = vmatprep.subr.mxu0 %v71
    %296 = vmatpush1.msra.mxu0 %v70
    %297 = vmatprep.subr.mxu0 %v74
    %298 = vmatpush1.msra.mxu0 %v73
    %299 = vmatprep.subr.mxu0 %v77
    %300 = vmatpush1.msra.mxu0 %v76
    %301 = vmatprep.subr.mxu0 %v80
    %302 = vmatpush1.msra.mxu0 %v79
    %303 = vmatprep.subr.mxu0 %v83
    %304 = vmatpush1.msra.mxu0 %v82
    %305 = vmatprep.subr.mxu0 %v86
    %306 = vmatpush1.msra.mxu0 %v85
    %307 = vmatprep.subr.mxu0 %v89
    %308 = vmatpush1.msra.mxu0 %v88
    %309 = vmatprep.subr.mxu0 %v92
    %310 = vmatpush1.msra.mxu0 %v91
    %311 = vmatprep.subr.mxu0 %v95
    %312 = vmatpush1.msra.mxu0 %v94
    %313 = vmatprep.subr.mxu0 %v98
    %314 = vmatpush1.msra.mxu0 %v97
    %315 = vmatprep.subr.mxu0 %v101
    %316 = vmatpush1.msra.mxu0 %v100
    %317 = vmatprep.subr.mxu0 %v104
    %318 = vmatpush1.msra.mxu0 %v103
    %319 = vmatprep.subr.mxu0 %v107
    %320 = vmatpush1.msra.mxu0 %v106
    %321 = vmatprep.subr.mxu0 %v110
    %322 = vmatpush1.msra.mxu0 %v109
    %323 = vmatprep.subr.mxu0 %v113
    %324 = vmatpush1.msra.mxu0 %v112
    %325 = vmatprep.subr.mxu0 0.0
    %326 = vmatpush1.msra.mxu0 0.0
    %327 = vmatprep.subr.mxu0 0.0
    %328 = vmatpush1.msra.mxu0 0.0
    %329 = vmatprep.subr.mxu0 0.0
    %330 = vmatpush1.msra.mxu0 0.0
    %331 = vmatprep.subr.mxu0 0.0
    %332 = vmatpush1.msra.mxu0 0.0
    %333 = vmatprep.subr.mxu0 0.0
    %334 = vmatpush1.msra.mxu0 0.0
    %335 = vmatprep.subr.mxu0 0.0
    %336 = vmatpush1.msra.mxu0 0.0
    %337 = vmatprep.subr.mxu0 0.0
    %338 = vmatpush1.msra.mxu0 0.0
    %339 = vmatprep.subr.mxu0 0.0
    %340 = vmatpush1.msra.mxu0 0.0
    %341 = vmatprep.subr.mxu0 0.0
    %342 = vmatpush1.msra.mxu0 0.0
    %343 = vmatprep.subr.mxu0 0.0
    %344 = vmatpush1.msra.mxu0 0.0
    %345 = vmatprep.subr.mxu0 0.0
    %346 = vmatpush1.msra.mxu0 0.0
    %347 = vmatprep.subr.mxu0 0.0
    %348 = vmatpush1.msra.mxu0 0.0
    %349 = vmatprep.subr.mxu0 0.0
    %350 = vmatpush1.msra.mxu0 0.0
    %351 = vmatprep.subr.mxu0 0.0
    %352 = vmatpush1.msra.mxu0 0.0
    %353 = vmatprep.subr.mxu0 0.0
    %354 = vmatpush1.msra.mxu0 0.0
    %355 = vmatprep.subr.mxu0 0.0
    %356 = vmatpush1.msra.mxu0 0.0
    %357 = vmatprep.mubr.f32.mxu0 0.0
    %358 = vmatmul.mubr.f32.gmra.mrb[0].mxu0 %v288
    %v359 = vpop.f32.mrb[0].mxu0
    %v360 = vadd.f32 0.0, %v359
    %v361 = vpop.f32.mrb[0].mxu0
    %v362 = vadd.f32 0.0, %v361
    %363 = vdwg.mxu0
    %364 = vmatprep.subr.mxu0 0.0
    %365 = vmatpush1.msra.mxu0 %v69
    %366 = vmatprep.subr.mxu0 0.0
    %367 = vmatpush1.msra.mxu0 %v72
    %368 = vmatprep.subr.mxu0 0.0
    %369 = vmatpush1.msra.mxu0 %v75
    %370 = vmatprep.subr.mxu0 0.0
    %371 = vmatpush1.msra.mxu0 %v78
    %372 = vmatprep.subr.mxu0 0.0
    %373 = vmatpush1.msra.mxu0 %v81
    %374 = vmatprep.subr.mxu0 0.0
    %375 = vmatpush1.msra.mxu0 %v84
    %376 = vmatprep.subr.mxu0 0.0
    %377 = vmatpush1.msra.mxu0 %v87
    %378 = vmatprep.subr.mxu0 0.0
    %379 = vmatpush1.msra.mxu0 %v90
    %380 = vmatprep.subr.mxu0 0.0
    %381 = vmatpush1.msra.mxu0 %v93
    %382 = vmatprep.subr.mxu0 0.0
    %383 = vmatpush1.msra.mxu0 %v96
    %384 = vmatprep.subr.mxu0 0.0
    %385 = vmatpush1.msra.mxu0 %v99
    %386 = vmatprep.subr.mxu0 0.0
    %387 = vmatpush1.msra.mxu0 %v102
    %388 = vmatprep.subr.mxu0 0.0
    %389 = vmatpush1.msra.mxu0 %v105
    %390 = vmatprep.subr.mxu0 0.0
    %391 = vmatpush1.msra.mxu0 %v108
    %392 = vmatprep.subr.mxu0 0.0
    %393 = vmatpush1.msra.mxu0 %v111
    %394 = vmatprep.subr.mxu0 0.0
    %395 = vmatpush1.msra.mxu0 %v114
    %396 = vmatprep.subr.mxu0 0.0
    %397 = vmatpush1.msra.mxu0 0.0
    %398 = vmatprep.subr.mxu0 0.0
    %399 = vmatpush1.msra.mxu0 0.0
    %400 = vmatprep.subr.mxu0 0.0
    %401 = vmatpush1.msra.mxu0 0.0
    %402 = vmatprep.subr.mxu0 0.0
    %403 = vmatpush1.msra.mxu0 0.0
    %404 = vmatprep.subr.mxu0 0.0
    %405 = vmatpush1.msra.mxu0 0.0
    %406 = vmatprep.subr.mxu0 0.0
    %407 = vmatpush1.msra.mxu0 0.0
    %408 = vmatprep.subr.mxu0 0.0
    %409 = vmatpush1.msra.mxu0 0.0
    %410 = vmatprep.subr.mxu0 0.0
    %411 = vmatpush1.msra.mxu0 0.0
    %412 = vmatprep.subr.mxu0 0.0
    %413 = vmatpush1.msra.mxu0 0.0
    %414 = vmatprep.subr.mxu0 0.0
    %415 = vmatpush1.msra.mxu0 0.0
    %416 = vmatprep.subr.mxu0 0.0
    %417 = vmatpush1.msra.mxu0 0.0
    %418 = vmatprep.subr.mxu0 0.0
    %419 = vmatpush1.msra.mxu0 0.0
    %420 = vmatprep.subr.mxu0 0.0
    %421 = vmatpush1.msra.mxu0 0.0
    %422 = vmatprep.subr.mxu0 0.0
    %423 = vmatpush1.msra.mxu0 0.0
    %424 = vmatprep.subr.mxu0 0.0
    %425 = vmatpush1.msra.mxu0 0.0
    %426 = vmatprep.subr.mxu0 0.0
    %427 = vmatpush1.msra.mxu0 0.0
    %428 = vmatprep.mubr.f32.mxu0 0.0
    %429 = vmatmul.mubr.f32.gmra.mrb[0].mxu0 %v288
    %v430 = vpop.f32.mrb[0].mxu0
    %v431 = vadd.f32 0.0, %v430
    %v432 = vpop.f32.mrb[0].mxu0
    %433 = vdwg.mxu0
    %v434 = vadd.f32 %v290, %v360
    %v435 = vxor.u32 %v434, 2147483648
    %v436 = vmul.f32 %v435, 1.442695
    %v437 = vpow.pop %v436
    %v438 = vadd.f32 %v437, 1.0
    %v439 = vrcp.pop %v438
    %v440 = vmul.f32 1.0, %v439
    %v441 = vadd.f32 %v291, %v362
    %v442 = vxor.u32 %v441, 2147483648
    %v443 = vmul.f32 %v442, 1.442695
    %v444 = vpow.pop %v443
    %v445 = vadd.f32 %v444, 1.0
    %v446 = vrcp.pop %v445
    %v447 = vmul.f32 1.0, %v446
    %v448 = vadd.f32 %v431, %v120
    %v449 = vmul.f32 %v440, %v448
    %v450 = vadd.f32 %v292, %v449
    %v451 = vtanh.pop %v450
    %v452 = vsub.f32 1.0, %v447
    %v453 = vmul.f32 %v452, %v451
    %v454 = vmul.f32 %v447, %v288
    %v455 = vadd.f32 %v453, %v454
    %s456 = scalar_lea.vmem [#allocation3], 48
    %v457 = vld [vmem:[%s456] sm:$0xff]
    %v458 = vld [vmem:[%s456 + $0x8] sm:$0xff]
    %v459 = vld [vmem:[%s456 + $0x10] sm:$0xff]
    %460 = vmatprep.subr.mxu0 %v68
    %461 = vmatpush1.msra.mxu0 %v67
    %462 = vmatprep.subr.mxu0 %v71
    %463 = vmatpush1.msra.mxu0 %v70
    %464 = vmatprep.subr.mxu0 %v74
    %465 = vmatpush1.msra.mxu0 %v73
    %466 = vmatprep.subr.mxu0 %v77
    %467 = vmatpush1.msra.mxu0 %v76
    %468 = vmatprep.subr.mxu0 %v80
    %469 = vmatpush1.msra.mxu0 %v79
    %470 = vmatprep.subr.mxu0 %v83
    %471 = vmatpush1.msra.mxu0 %v82
    %472 = vmatprep.subr.mxu0 %v86
    %473 = vmatpush1.msra.mxu0 %v85
    %474 = vmatprep.subr.mxu0 %v89
    %475 = vmatpush1.msra.mxu0 %v88
    %476 = vmatprep.subr.mxu0 %v92
    %477 = vmatpush1.msra.mxu0 %v91
    %478 = vmatprep.subr.mxu0 %v95
    %479 = vmatpush1.msra.mxu0 %v94
    %480 = vmatprep.subr.mxu0 %v98
    %481 = vmatpush1.msra.mxu0 %v97
    %482 = vmatprep.subr.mxu0 %v101
    %483 = vmatpush1.msra.mxu0 %v100
    %484 = vmatprep.subr.mxu0 %v104
    %485 = vmatpush1.msra.mxu0 %v103
    %486 = vmatprep.subr.mxu0 %v107
    %487 = vmatpush1.msra.mxu0 %v106
    %488 = vmatprep.subr.mxu0 %v110
    %489 = vmatpush1.msra.mxu0 %v109
    %490 = vmatprep.subr.mxu0 %v113
    %491 = vmatpush1.msra.mxu0 %v112
    %492 = vmatprep.subr.mxu0 0.0
    %493 = vmatpush1.msra.mxu0 0.0
    %494 = vmatprep.subr.mxu0 0.0
    %495 = vmatpush1.msra.mxu0 0.0
    %496 = vmatprep.subr.mxu0 0.0
    %497 = vmatpush1.msra.mxu0 0.0
    %498 = vmatprep.subr.mxu0 0.0
    %499 = vmatpush1.msra.mxu0 0.0
    %500 = vmatprep.subr.mxu0 0.0
    %501 = vmatpush1.msra.mxu0 0.0
    %502 = vmatprep.subr.mxu0 0.0
    %503 = vmatpush1.msra.mxu0 0.0
    %504 = vmatprep.subr.mxu0 0.0
    %505 = vmatpush1.msra.mxu0 0.0
    %506 = vmatprep.subr.mxu0 0.0
    %507 = vmatpush1.msra.mxu0 0.0
    %508 = vmatprep.subr.mxu0 0.0
    %509 = vmatpush1.msra.mxu0 0.0
    %510 = vmatprep.subr.mxu0 0.0
    %511 = vmatpush1.msra.mxu0 0.0
    %512 = vmatprep.subr.mxu0 0.0
    %513 = vmatpush1.msra.mxu0 0.0
    %514 = vmatprep.subr.mxu0 0.0
    %515 = vmatpush1.msra.mxu0 0.0
    %516 = vmatprep.subr.mxu0 0.0
    %517 = vmatpush1.msra.mxu0 0.0
    %518 = vmatprep.subr.mxu0 0.0
    %519 = vmatpush1.msra.mxu0 0.0
    %520 = vmatprep.subr.mxu0 0.0
    %521 = vmatpush1.msra.mxu0 0.0
    %522 = vmatprep.subr.mxu0 0.0
    %523 = vmatpush1.msra.mxu0 0.0
    %524 = vmatprep.mubr.f32.mxu0 0.0
    %525 = vmatmul.mubr.f32.gmra.mrb[0].mxu0 %v455
    %v526 = vpop.f32.mrb[0].mxu0
    %v527 = vadd.f32 0.0, %v526
    %v528 = vpop.f32.mrb[0].mxu0
    %v529 = vadd.f32 0.0, %v528
    %530 = vdwg.mxu0
    %531 = vmatprep.subr.mxu0 0.0
    %532 = vmatpush1.msra.mxu0 %v69
    %533 = vmatprep.subr.mxu0 0.0
    %534 = vmatpush1.msra.mxu0 %v72
    %535 = vmatprep.subr.mxu0 0.0
    %536 = vmatpush1.msra.mxu0 %v75
    %537 = vmatprep.subr.mxu0 0.0
    %538 = vmatpush1.msra.mxu0 %v78
    %539 = vmatprep.subr.mxu0 0.0
    %540 = vmatpush1.msra.mxu0 %v81
    %541 = vmatprep.subr.mxu0 0.0
    %542 = vmatpush1.msra.mxu0 %v84
    %543 = vmatprep.subr.mxu0 0.0
    %544 = vmatpush1.msra.mxu0 %v87
    %545 = vmatprep.subr.mxu0 0.0
    %546 = vmatpush1.msra.mxu0 %v90
    %547 = vmatprep.subr.mxu0 0.0
    %548 = vmatpush1.msra.mxu0 %v93
    %549 = vmatprep.subr.mxu0 0.0
    %550 = vmatpush1.msra.mxu0 %v96
    %551 = vmatprep.subr.mxu0 0.0
    %552 = vmatpush1.msra.mxu0 %v99
    %553 = vmatprep.subr.mxu0 0.0
    %554 = vmatpush1.msra.mxu0 %v102
    %555 = vmatprep.subr.mxu0 0.0
    %556 = vmatpush1.msra.mxu0 %v105
    %557 = vmatprep.subr.mxu0 0.0
    %558 = vmatpush1.msra.mxu0 %v108
    %559 = vmatprep.subr.mxu0 0.0
    %560 = vmatpush1.msra.mxu0 %v111
    %561 = vmatprep.subr.mxu0 0.0
    %562 = vmatpush1.msra.mxu0 %v114
    %563 = vmatprep.subr.mxu0 0.0
    %564 = vmatpush1.msra.mxu0 0.0
    %565 = vmatprep.subr.mxu0 0.0
    %566 = vmatpush1.msra.mxu0 0.0
    %567 = vmatprep.subr.mxu0 0.0
    %568 = vmatpush1.msra.mxu0 0.0
    %569 = vmatprep.subr.mxu0 0.0
    %570 = vmatpush1.msra.mxu0 0.0
    %571 = vmatprep.subr.mxu0 0.0
    %572 = vmatpush1.msra.mxu0 0.0
    %573 = vmatprep.subr.mxu0 0.0
    %574 = vmatpush1.msra.mxu0 0.0
    %575 = vmatprep.subr.mxu0 0.0
    %576 = vmatpush1.msra.mxu0 0.0
    %577 = vmatprep.subr.mxu0 0.0
    %578 = vmatpush1.msra.mxu0 0.0
    %579 = vmatprep.subr.mxu0 0.0
    %580 = vmatpush1.msra.mxu0 0.0
    %581 = vmatprep.subr.mxu0 0.0
    %582 = vmatpush1.msra.mxu0 0.0
    %583 = vmatprep.subr.mxu0 0.0
    %584 = vmatpush1.msra.mxu0 0.0
    %585 = vmatprep.subr.mxu0 0.0
    %586 = vmatpush1.msra.mxu0 0.0
    %587 = vmatprep.subr.mxu0 0.0
    %588 = vmatpush1.msra.mxu0 0.0
    %589 = vmatprep.subr.mxu0 0.0
    %590 = vmatpush1.msra.mxu0 0.0
    %591 = vmatprep.subr.mxu0 0.0
    %592 = vmatpush1.msra.mxu0 0.0
    %593 = vmatprep.subr.mxu0 0.0
    %594 = vmatpush1.msra.mxu0 0.0
    %595 = vmatprep.mubr.f32.mxu0 0.0
    %596 = vmatmul.mubr.f32.gmra.mrb[0].mxu0 %v455
    %v597 = vpop.f32.mrb[0].mxu0
    %v598 = vadd.f32 0.0, %v597
    %v599 = vpop.f32.mrb[0].mxu0
    %600 = vdwg.mxu0
    %v601 = vadd.f32 %v457, %v527
    %v602 = vxor.u32 %v601, 2147483648
    %v603 = vmul.f32 %v602, 1.442695
    %v604 = vpow.pop %v603
    %v605 = vadd.f32 %v604, 1.0
    %v606 = vrcp.pop %v605
    %v607 = vmul.f32 1.0, %v606
    %v608 = vadd.f32 %v458, %v529
    %v609 = vxor.u32 %v608, 2147483648
    %v610 = vmul.f32 %v609, 1.442695
    %v611 = vpow.pop %v610
    %v612 = vadd.f32 %v611, 1.0
    %v613 = vrcp.pop %v612
    %v614 = vmul.f32 1.0, %v613
    %v615 = vadd.f32 %v598, %v120
    %v616 = vmul.f32 %v607, %v615
    %v617 = vadd.f32 %v459, %v616
    %v618 = vtanh.pop %v617
    %v619 = vsub.f32 1.0, %v614
    %v620 = vmul.f32 %v619, %v618
    %v621 = vmul.f32 %v614, %v455
    %v622 = vadd.f32 %v620, %v621
    %s623 = scalar_lea.vmem [#allocation3], 72
    %v624 = vld [vmem:[%s623] sm:$0xff]
    %v625 = vld [vmem:[%s623 + $0x8] sm:$0xff]
    %v626 = vld [vmem:[%s623 + $0x10] sm:$0xff]
    %627 = vmatprep.subr.mxu0 %v68
    %628 = vmatpush1.msra.mxu0 %v67
    %629 = vmatprep.subr.mxu0 %v71
    %630 = vmatpush1.msra.mxu0 %v70
    %631 = vmatprep.subr.mxu0 %v74
    %632 = vmatpush1.msra.mxu0 %v73
    %633 = vmatprep.subr.mxu0 %v77
    %634 = vmatpush1.msra.mxu0 %v76
    %635 = vmatprep.subr.mxu0 %v80
    %636 = vmatpush1.msra.mxu0 %v79
    %637 = vmatprep.subr.mxu0 %v83
    %638 = vmatpush1.msra.mxu0 %v82
    %639 = vmatprep.subr.mxu0 %v86
    %640 = vmatpush1.msra.mxu0 %v85
    %641 = vmatprep.subr.mxu0 %v89
    %642 = vmatpush1.msra.mxu0 %v88
    %643 = vmatprep.subr.mxu0 %v92
    %644 = vmatpush1.msra.mxu0 %v91
    %645 = vmatprep.subr.mxu0 %v95
    %646 = vmatpush1.msra.mxu0 %v94
    %647 = vmatprep.subr.mxu0 %v98
    %648 = vmatpush1.msra.mxu0 %v97
    %649 = vmatprep.subr.mxu0 %v101
    %650 = vmatpush1.msra.mxu0 %v100
    %651 = vmatprep.subr.mxu0 %v104
    %652 = vmatpush1.msra.mxu0 %v103
    %653 = vmatprep.subr.mxu0 %v107
    %654 = vmatpush1.msra.mxu0 %v106
    %655 = vmatprep.subr.mxu0 %v110
    %656 = vmatpush1.msra.mxu0 %v109
    %657 = vmatprep.subr.mxu0 %v113
    %658 = vmatpush1.msra.mxu0 %v112
    %659 = vmatprep.subr.mxu0 0.0
    %660 = vmatpush1.msra.mxu0 0.0
    %661 = vmatprep.subr.mxu0 0.0
    %662 = vmatpush1.msra.mxu0 0.0
    %663 = vmatprep.subr.mxu0 0.0
    %664 = vmatpush1.msra.mxu0 0.0
    %665 = vmatprep.subr.mxu0 0.0
    %666 = vmatpush1.msra.mxu0 0.0
    %667 = vmatprep.subr.mxu0 0.0
    %668 = vmatpush1.msra.mxu0 0.0
    %669 = vmatprep.subr.mxu0 0.0
    %670 = vmatpush1.msra.mxu0 0.0
    %671 = vmatprep.subr.mxu0 0.0
    %672 = vmatpush1.msra.mxu0 0.0
    %673 = vmatprep.subr.mxu0 0.0
    %674 = vmatpush1.msra.mxu0 0.0
    %675 = vmatprep.subr.mxu0 0.0
    %676 = vmatpush1.msra.mxu0 0.0
    %677 = vmatprep.subr.mxu0 0.0
    %678 = vmatpush1.msra.mxu0 0.0
    %679 = vmatprep.subr.mxu0 0.0
    %680 = vmatpush1.msra.mxu0 0.0
    %681 = vmatprep.subr.mxu0 0.0
    %682 = vmatpush1.msra.mxu0 0.0
    %683 = vmatprep.subr.mxu0 0.0
    %684 = vmatpush1.msra.mxu0 0.0
    %685 = vmatprep.subr.mxu0 0.0
    %686 = vmatpush1.msra.mxu0 0.0
    %687 = vmatprep.subr.mxu0 0.0
    %688 = vmatpush1.msra.mxu0 0.0
    %689 = vmatprep.subr.mxu0 0.0
    %690 = vmatpush1.msra.mxu0 0.0
    %691 = vmatprep.mubr.f32.mxu0 0.0
    %692 = vmatmul.mubr.f32.gmra.mrb[0].mxu0 %v622
    %v693 = vpop.f32.mrb[0].mxu0
    %v694 = vadd.f32 0.0, %v693
    %v695 = vpop.f32.mrb[0].mxu0
    %v696 = vadd.f32 0.0, %v695
    %697 = vdwg.mxu0
    %698 = vmatprep.subr.mxu0 0.0
    %699 = vmatpush1.msra.mxu0 %v69
    %700 = vmatprep.subr.mxu0 0.0
    %701 = vmatpush1.msra.mxu0 %v72
    %702 = vmatprep.subr.mxu0 0.0
    %703 = vmatpush1.msra.mxu0 %v75
    %704 = vmatprep.subr.mxu0 0.0
    %705 = vmatpush1.msra.mxu0 %v78
    %706 = vmatprep.subr.mxu0 0.0
    %707 = vmatpush1.msra.mxu0 %v81
    %708 = vmatprep.subr.mxu0 0.0
    %709 = vmatpush1.msra.mxu0 %v84
    %710 = vmatprep.subr.mxu0 0.0
    %711 = vmatpush1.msra.mxu0 %v87
    %712 = vmatprep.subr.mxu0 0.0
    %713 = vmatpush1.msra.mxu0 %v90
    %714 = vmatprep.subr.mxu0 0.0
    %715 = vmatpush1.msra.mxu0 %v93
    %716 = vmatprep.subr.mxu0 0.0
    %717 = vmatpush1.msra.mxu0 %v96
    %718 = vmatprep.subr.mxu0 0.0
    %719 = vmatpush1.msra.mxu0 %v99
    %720 = vmatprep.subr.mxu0 0.0
    %721 = vmatpush1.msra.mxu0 %v102
    %722 = vmatprep.subr.mxu0 0.0
    %723 = vmatpush1.msra.mxu0 %v105
    %724 = vmatprep.subr.mxu0 0.0
    %725 = vmatpush1.msra.mxu0 %v108
    %726 = vmatprep.subr.mxu0 0.0
    %727 = vmatpush1.msra.mxu0 %v111
    %728 = vmatprep.subr.mxu0 0.0
    %729 = vmatpush1.msra.mxu0 %v114
    %730 = vmatprep.subr.mxu0 0.0
    %731 = vmatpush1.msra.mxu0 0.0
    %732 = vmatprep.subr.mxu0 0.0
    %733 = vmatpush1.msra.mxu0 0.0
    %734 = vmatprep.subr.mxu0 0.0
    %735 = vmatpush1.msra.mxu0 0.0
    %736 = vmatprep.subr.mxu0 0.0
    %737 = vmatpush1.msra.mxu0 0.0
    %738 = vmatprep.subr.mxu0 0.0
    %739 = vmatpush1.msra.mxu0 0.0
    %740 = vmatprep.subr.mxu0 0.0
    %741 = vmatpush1.msra.mxu0 0.0
    %742 = vmatprep.subr.mxu0 0.0
    %743 = vmatpush1.msra.mxu0 0.0
    %744 = vmatprep.subr.mxu0 0.0
    %745 = vmatpush1.msra.mxu0 0.0
    %746 = vmatprep.subr.mxu0 0.0
    %747 = vmatpush1.msra.mxu0 0.0
    %748 = vmatprep.subr.mxu0 0.0
    %749 = vmatpush1.msra.mxu0 0.0
    %750 = vmatprep.subr.mxu0 0.0
    %751 = vmatpush1.msra.mxu0 0.0
    %752 = vmatprep.subr.mxu0 0.0
    %753 = vmatpush1.msra.mxu0 0.0
    %754 = vmatprep.subr.mxu0 0.0
    %755 = vmatpush1.msra.mxu0 0.0
    %756 = vmatprep.subr.mxu0 0.0
    %757 = vmatpush1.msra.mxu0 0.0
    %758 = vmatprep.subr.mxu0 0.0
    %759 = vmatpush1.msra.mxu0 0.0
    %760 = vmatprep.subr.mxu0 0.0
    %761 = vmatpush1.msra.mxu0 0.0
    %762 = vmatprep.mubr.f32.mxu0 0.0
    %763 = vmatmul.mubr.f32.gmra.mrb[0].mxu0 %v622
    %v764 = vpop.f32.mrb[0].mxu0
    %v765 = vadd.f32 0.0, %v764
    %v766 = vpop.f32.mrb[0].mxu0
    %767 = vdwg.mxu0
    %v768 = vadd.f32 %v624, %v694
    %v769 = vxor.u32 %v768, 2147483648
    %v770 = vmul.f32 %v769, 1.442695
    %v771 = vpow.pop %v770
    %v772 = vadd.f32 %v771, 1.0
    %v773 = vrcp.pop %v772
    %v774 = vmul.f32 1.0, %v773
    %v775 = vadd.f32 %v625, %v696
    %v776 = vxor.u32 %v775, 2147483648
    %v777 = vmul.f32 %v776, 1.442695
    %v778 = vpow.pop %v777
    %v779 = vadd.f32 %v778, 1.0
    %v780 = vrcp.pop %v779
    %v781 = vmul.f32 1.0, %v780
    %v782 = vadd.f32 %v765, %v120
    %v783 = vmul.f32 %v774, %v782
    %v784 = vadd.f32 %v626, %v783
    %v785 = vtanh.pop %v784
    %v786 = vsub.f32 1.0, %v781
    %v787 = vmul.f32 %v786, %v785
    %v788 = vmul.f32 %v781, %v622
    %v789 = vadd.f32 %v787, %v788
    %s790 = scalar_lea.vmem [#allocation3], 96
    %v791 = vld [vmem:[%s790] sm:$0xff]
    %v792 = vld [vmem:[%s790 + $0x8] sm:$0xff]
    %v793 = vld [vmem:[%s790 + $0x10] sm:$0xff]
    %794 = vmatprep.subr.mxu0 %v68
    %795 = vmatpush1.msra.mxu0 %v67
    %796 = vmatprep.subr.mxu0 %v71
    %797 = vmatpush1.msra.mxu0 %v70
    %798 = vmatprep.subr.mxu0 %v74
    %799 = vmatpush1.msra.mxu0 %v73
    %800 = vmatprep.subr.mxu0 %v77
    %801 = vmatpush1.msra.mxu0 %v76
    %802 = vmatprep.subr.mxu0 %v80
    %803 = vmatpush1.msra.mxu0 %v79
    %804 = vmatprep.subr.mxu0 %v83
    %805 = vmatpush1.msra.mxu0 %v82
    %806 = vmatprep.subr.mxu0 %v86
    %807 = vmatpush1.msra.mxu0 %v85
    %808 = vmatprep.subr.mxu0 %v89
    %809 = vmatpush1.msra.mxu0 %v88
    %810 = vmatprep.subr.mxu0 %v92
    %811 = vmatpush1.msra.mxu0 %v91
    %812 = vmatprep.subr.mxu0 %v95
    %813 = vmatpush1.msra.mxu0 %v94
    %814 = vmatprep.subr.mxu0 %v98
    %815 = vmatpush1.msra.mxu0 %v97
    %816 = vmatprep.subr.mxu0 %v101
    %817 = vmatpush1.msra.mxu0 %v100
    %818 = vmatprep.subr.mxu0 %v104
    %819 = vmatpush1.msra.mxu0 %v103
    %820 = vmatprep.subr.mxu0 %v107
    %821 = vmatpush1.msra.mxu0 %v106
    %822 = vmatprep.subr.mxu0 %v110
    %823 = vmatpush1.msra.mxu0 %v109
    %824 = vmatprep.subr.mxu0 %v113
    %825 = vmatpush1.msra.mxu0 %v112
    %826 = vmatprep.subr.mxu0 0.0
    %827 = vmatpush1.msra.mxu0 0.0
    %828 = vmatprep.subr.mxu0 0.0
    %829 = vmatpush1.msra.mxu0 0.0
    %830 = vmatprep.subr.mxu0 0.0
    %831 = vmatpush1.msra.mxu0 0.0
    %832 = vmatprep.subr.mxu0 0.0
    %833 = vmatpush1.msra.mxu0 0.0
    %834 = vmatprep.subr.mxu0 0.0
    %835 = vmatpush1.msra.mxu0 0.0
    %836 = vmatprep.subr.mxu0 0.0
    %837 = vmatpush1.msra.mxu0 0.0
    %838 = vmatprep.subr.mxu0 0.0
    %839 = vmatpush1.msra.mxu0 0.0
    %840 = vmatprep.subr.mxu0 0.0
    %841 = vmatpush1.msra.mxu0 0.0
    %842 = vmatprep.subr.mxu0 0.0
    %843 = vmatpush1.msra.mxu0 0.0
    %844 = vmatprep.subr.mxu0 0.0
    %845 = vmatpush1.msra.mxu0 0.0
    %846 = vmatprep.subr.mxu0 0.0
    %847 = vmatpush1.msra.mxu0 0.0
    %848 = vmatprep.subr.mxu0 0.0
    %849 = vmatpush1.msra.mxu0 0.0
    %850 = vmatprep.subr.mxu0 0.0
    %851 = vmatpush1.msra.mxu0 0.0
    %852 = vmatprep.subr.mxu0 0.0
    %853 = vmatpush1.msra.mxu0 0.0
    %854 = vmatprep.subr.mxu0 0.0
    %855 = vmatpush1.msra.mxu0 0.0
    %856 = vmatprep.subr.mxu0 0.0
    %857 = vmatpush1.msra.mxu0 0.0
    %858 = vmatprep.mubr.f32.mxu0 0.0
    %859 = vmatmul.mubr.f32.gmra.mrb[0].mxu0 %v789
    %v860 = vpop.f32.mrb[0].mxu0
    %v861 = vadd.f32 0.0, %v860
    %v862 = vpop.f32.mrb[0].mxu0
    %v863 = vadd.f32 0.0, %v862
    %864 = vdwg.mxu0
    %865 = vmatprep.subr.mxu0 0.0
    %866 = vmatpush1.msra.mxu0 %v69
    %867 = vmatprep.subr.mxu0 0.0
    %868 = vmatpush1.msra.mxu0 %v72
    %869 = vmatprep.subr.mxu0 0.0
    %870 = vmatpush1.msra.mxu0 %v75
    %871 = vmatprep.subr.mxu0 0.0
    %872 = vmatpush1.msra.mxu0 %v78
    %873 = vmatprep.subr.mxu0 0.0
    %874 = vmatpush1.msra.mxu0 %v81
    %875 = vmatprep.subr.mxu0 0.0
    %876 = vmatpush1.msra.mxu0 %v84
    %877 = vmatprep.subr.mxu0 0.0
    %878 = vmatpush1.msra.mxu0 %v87
    %879 = vmatprep.subr.mxu0 0.0
    %880 = vmatpush1.msra.mxu0 %v90
    %881 = vmatprep.subr.mxu0 0.0
    %882 = vmatpush1.msra.mxu0 %v93
    %883 = vmatprep.subr.mxu0 0.0
    %884 = vmatpush1.msra.mxu0 %v96
    %885 = vmatprep.subr.mxu0 0.0
    %886 = vmatpush1.msra.mxu0 %v99
    %887 = vmatprep.subr.mxu0 0.0
    %888 = vmatpush1.msra.mxu0 %v102
    %889 = vmatprep.subr.mxu0 0.0
    %890 = vmatpush1.msra.mxu0 %v105
    %891 = vmatprep.subr.mxu0 0.0
    %892 = vmatpush1.msra.mxu0 %v108
    %893 = vmatprep.subr.mxu0 0.0
    %894 = vmatpush1.msra.mxu0 %v111
    %895 = vmatprep.subr.mxu0 0.0
    %896 = vmatpush1.msra.mxu0 %v114
    %897 = vmatprep.subr.mxu0 0.0
    %898 = vmatpush1.msra.mxu0 0.0
    %899 = vmatprep.subr.mxu0 0.0
    %900 = vmatpush1.msra.mxu0 0.0
    %901 = vmatprep.subr.mxu0 0.0
    %902 = vmatpush1.msra.mxu0 0.0
    %903 = vmatprep.subr.mxu0 0.0
    %904 = vmatpush1.msra.mxu0 0.0
    %905 = vmatprep.subr.mxu0 0.0
    %906 = vmatpush1.msra.mxu0 0.0
    %907 = vmatprep.subr.mxu0 0.0
    %908 = vmatpush1.msra.mxu0 0.0
    %909 = vmatprep.subr.mxu0 0.0
    %910 = vmatpush1.msra.mxu0 0.0
    %911 = vmatprep.subr.mxu0 0.0
    %912 = vmatpush1.msra.mxu0 0.0
    %913 = vmatprep.subr.mxu0 0.0
    %914 = vmatpush1.msra.mxu0 0.0
    %915 = vmatprep.subr.mxu0 0.0
    %916 = vmatpush1.msra.mxu0 0.0
    %917 = vmatprep.subr.mxu0 0.0
    %918 = vmatpush1.msra.mxu0 0.0
    %919 = vmatprep.subr.mxu0 0.0
    %920 = vmatpush1.msra.mxu0 0.0
    %921 = vmatprep.subr.mxu0 0.0
    %922 = vmatpush1.msra.mxu0 0.0
    %923 = vmatprep.subr.mxu0 0.0
    %924 = vmatpush1.msra.mxu0 0.0
    %925 = vmatprep.subr.mxu0 0.0
    %926 = vmatpush1.msra.mxu0 0.0
    %927 = vmatprep.subr.mxu0 0.0
    %928 = vmatpush1.msra.mxu0 0.0
    %929 = vmatprep.mubr.f32.mxu0 0.0
    %930 = vmatmul.mubr.f32.gmra.mrb[0].mxu0 %v789
    %v931 = vpop.f32.mrb[0].mxu0
    %v932 = vadd.f32 0.0, %v931
    %v933 = vpop.f32.mrb[0].mxu0
    %934 = vdwg.mxu0
    %v935 = vadd.f32 %v791, %v861
    %v936 = vxor.u32 %v935, 2147483648
    %v937 = vmul.f32 %v936, 1.442695
    %v938 = vpow.pop %v937
    %v939 = vadd.f32 %v938, 1.0
    %v940 = vrcp.pop %v939
    %v941 = vmul.f32 1.0, %v940
    %v942 = vadd.f32 %v792, %v863
    %v943 = vxor.u32 %v942, 2147483648
    %v944 = vmul.f32 %v943, 1.442695
    %v945 = vpow.pop %v944
    %v946 = vadd.f32 %v945, 1.0
    %v947 = vrcp.pop %v946
    %v948 = vmul.f32 1.0, %v947
    %v949 = vadd.f32 %v932, %v120
    %v950 = vmul.f32 %v941, %v949
    %v951 = vadd.f32 %v793, %v950
    %v952 = vtanh.pop %v951
    %v953 = vsub.f32 1.0, %v948
    %v954 = vmul.f32 %v953, %v952
    %v955 = vmul.f32 %v948, %v789
    %v956 = vadd.f32 %v954, %v955
    %s957 = scalar_lea.vmem [#allocation3], 120
    %v958 = vld [vmem:[%s957] sm:$0xff]
    %v959 = vld [vmem:[%s957 + $0x8] sm:$0xff]
    %v960 = vld [vmem:[%s957 + $0x10] sm:$0xff]
    %961 = vmatprep.subr.mxu0 %v68
    %962 = vmatpush1.msra.mxu0 %v67
    %963 = vmatprep.subr.mxu0 %v71
    %964 = vmatpush1.msra.mxu0 %v70
    %965 = vmatprep.subr.mxu0 %v74
    %966 = vmatpush1.msra.mxu0 %v73
    %967 = vmatprep.subr.mxu0 %v77
    %968 = vmatpush1.msra.mxu0 %v76
    %969 = vmatprep.subr.mxu0 %v80
    %970 = vmatpush1.msra.mxu0 %v79
    %971 = vmatprep.subr.mxu0 %v83
    %972 = vmatpush1.msra.mxu0 %v82
    %973 = vmatprep.subr.mxu0 %v86
    %974 = vmatpush1.msra.mxu0 %v85
    %975 = vmatprep.subr.mxu0 %v89
    %976 = vmatpush1.msra.mxu0 %v88
    %977 = vmatprep.subr.mxu0 %v92
    %978 = vmatpush1.msra.mxu0 %v91
    %979 = vmatprep.subr.mxu0 %v95
    %980 = vmatpush1.msra.mxu0 %v94
    %981 = vmatprep.subr.mxu0 %v98
    %982 = vmatpush1.msra.mxu0 %v97
    %983 = vmatprep.subr.mxu0 %v101
    %984 = vmatpush1.msra.mxu0 %v100
    %985 = vmatprep.subr.mxu0 %v104
    %986 = vmatpush1.msra.mxu0 %v103
    %987 = vmatprep.subr.mxu0 %v107
    %988 = vmatpush1.msra.mxu0 %v106
    %989 = vmatprep.subr.mxu0 %v110
    %990 = vmatpush1.msra.mxu0 %v109
    %991 = vmatprep.subr.mxu0 %v113
    %992 = vmatpush1.msra.mxu0 %v112
    %993 = vmatprep.subr.mxu0 0.0
    %994 = vmatpush1.msra.mxu0 0.0
    %995 = vmatprep.subr.mxu0 0.0
    %996 = vmatpush1.msra.mxu0 0.0
    %997 = vmatprep.subr.mxu0 0.0
    %998 = vmatpush1.msra.mxu0 0.0
    %999 = vmatprep.subr.mxu0 0.0
    %1000 = vmatpush1.msra.mxu0 0.0
    %1001 = vmatprep.subr.mxu0 0.0
    %1002 = vmatpush1.msra.mxu0 0.0
    %1003 = vmatprep.subr.mxu0 0.0
    %1004 = vmatpush1.msra.mxu0 0.0
    %1005 = vmatprep.subr.mxu0 0.0
    %1006 = vmatpush1.msra.mxu0 0.0
    %1007 = vmatprep.subr.mxu0 0.0
    %1008 = vmatpush1.msra.mxu0 0.0
    %1009 = vmatprep.subr.mxu0 0.0
    %1010 = vmatpush1.msra.mxu0 0.0
    %1011 = vmatprep.subr.mxu0 0.0
    %1012 = vmatpush1.msra.mxu0 0.0
    %1013 = vmatprep.subr.mxu0 0.0
    %1014 = vmatpush1.msra.mxu0 0.0
    %1015 = vmatprep.subr.mxu0 0.0
    %1016 = vmatpush1.msra.mxu0 0.0
    %1017 = vmatprep.subr.mxu0 0.0
    %1018 = vmatpush1.msra.mxu0 0.0
    %1019 = vmatprep.subr.mxu0 0.0
    %1020 = vmatpush1.msra.mxu0 0.0
    %1021 = vmatprep.subr.mxu0 0.0
    %1022 = vmatpush1.msra.mxu0 0.0
    %1023 = vmatprep.subr.mxu0 0.0
    %1024 = vmatpush1.msra.mxu0 0.0
    %1025 = vmatprep.mubr.f32.mxu0 0.0
    %1026 = vmatmul.mubr.f32.gmra.mrb[0].mxu0 %v956
    %v1027 = vpop.f32.mrb[0].mxu0
    %v1028 = vadd.f32 0.0, %v1027
    %v1029 = vpop.f32.mrb[0].mxu0
    %v1030 = vadd.f32 0.0, %v1029
    %1031 = vdwg.mxu0
    %1032 = vmatprep.subr.mxu0 0.0
    %1033 = vmatpush1.msra.mxu0 %v69
    %1034 = vmatprep.subr.mxu0 0.0
    %1035 = vmatpush1.msra.mxu0 %v72
    %1036 = vmatprep.subr.mxu0 0.0
    %1037 = vmatpush1.msra.mxu0 %v75
    %1038 = vmatprep.subr.mxu0 0.0
    %1039 = vmatpush1.msra.mxu0 %v78
    %1040 = vmatprep.subr.mxu0 0.0
    %1041 = vmatpush1.msra.mxu0 %v81
    %1042 = vmatprep.subr.mxu0 0.0
    %1043 = vmatpush1.msra.mxu0 %v84
    %1044 = vmatprep.subr.mxu0 0.0
    %1045 = vmatpush1.msra.mxu0 %v87
    %1046 = vmatprep.subr.mxu0 0.0
    %1047 = vmatpush1.msra.mxu0 %v90
    %1048 = vmatprep.subr.mxu0 0.0
    %1049 = vmatpush1.msra.mxu0 %v93
    %1050 = vmatprep.subr.mxu0 0.0
    %1051 = vmatpush1.msra.mxu0 %v96
    %1052 = vmatprep.subr.mxu0 0.0
    %1053 = vmatpush1.msra.mxu0 %v99
    %1054 = vmatprep.subr.mxu0 0.0
    %1055 = vmatpush1.msra.mxu0 %v102
    %1056 = vmatprep.subr.mxu0 0.0
    %1057 = vmatpush1.msra.mxu0 %v105
    %1058 = vmatprep.subr.mxu0 0.0
    %1059 = vmatpush1.msra.mxu0 %v108
    %1060 = vmatprep.subr.mxu0 0.0
    %1061 = vmatpush1.msra.mxu0 %v111
    %1062 = vmatprep.subr.mxu0 0.0
    %1063 = vmatpush1.msra.mxu0 %v114
    %1064 = vmatprep.subr.mxu0 0.0
    %1065 = vmatpush1.msra.mxu0 0.0
    %1066 = vmatprep.subr.mxu0 0.0
    %1067 = vmatpush1.msra.mxu0 0.0
    %1068 = vmatprep.subr.mxu0 0.0
    %1069 = vmatpush1.msra.mxu0 0.0
    %1070 = vmatprep.subr.mxu0 0.0
    %1071 = vmatpush1.msra.mxu0 0.0
    %1072 = vmatprep.subr.mxu0 0.0
    %1073 = vmatpush1.msra.mxu0 0.0
    %1074 = vmatprep.subr.mxu0 0.0
    %1075 = vmatpush1.msra.mxu0 0.0
    %1076 = vmatprep.subr.mxu0 0.0
    %1077 = vmatpush1.msra.mxu0 0.0
    %1078 = vmatprep.subr.mxu0 0.0
    %1079 = vmatpush1.msra.mxu0 0.0
    %1080 = vmatprep.subr.mxu0 0.0
    %1081 = vmatpush1.msra.mxu0 0.0
    %1082 = vmatprep.subr.mxu0 0.0
    %1083 = vmatpush1.msra.mxu0 0.0
    %1084 = vmatprep.subr.mxu0 0.0
    %1085 = vmatpush1.msra.mxu0 0.0
    %1086 = vmatprep.subr.mxu0 0.0
    %1087 = vmatpush1.msra.mxu0 0.0
    %1088 = vmatprep.subr.mxu0 0.0
    %1089 = vmatpush1.msra.mxu0 0.0
    %1090 = vmatprep.subr.mxu0 0.0
    %1091 = vmatpush1.msra.mxu0 0.0
    %1092 = vmatprep.subr.mxu0 0.0
    %1093 = vmatpush1.msra.mxu0 0.0
    %1094 = vmatprep.subr.mxu0 0.0
    %1095 = vmatpush1.msra.mxu0 0.0
    %1096 = vmatprep.mubr.f32.mxu0 0.0
    %1097 = vmatmul.mubr.f32.gmra.mrb[0].mxu0 %v956
    %v1098 = vpop.f32.mrb[0].mxu0
    %v1099 = vadd.f32 0.0, %v1098
    %v1100 = vpop.f32.mrb[0].mxu0
    %1101 = vdwg.mxu0
    %v1102 = vadd.f32 %v958, %v1028
    %v1103 = vxor.u32 %v1102, 2147483648
    %v1104 = vmul.f32 %v1103, 1.442695
    %v1105 = vpow.pop %v1104
    %v1106 = vadd.f32 %v1105, 1.0
    %v1107 = vrcp.pop %v1106
    %v1108 = vmul.f32 1.0, %v1107
    %v1109 = vadd.f32 %v959, %v1030
    %v1110 = vxor.u32 %v1109, 2147483648
    %v1111 = vmul.f32 %v1110, 1.442695
    %v1112 = vpow.pop %v1111
    %v1113 = vadd.f32 %v1112, 1.0
    %v1114 = vrcp.pop %v1113
    %v1115 = vmul.f32 1.0, %v1114
    %v1116 = vadd.f32 %v1099, %v120
    %v1117 = vmul.f32 %v1108, %v1116
    %v1118 = vadd.f32 %v960, %v1117
    %v1119 = vtanh.pop %v1118
    %v1120 = vsub.f32 1.0, %v1115
    %v1121 = vmul.f32 %v1120, %v1119
    %v1122 = vmul.f32 %v1115, %v956
    %v1123 = vadd.f32 %v1121, %v1122
    %s1124 = scalar_lea.vmem [#allocation3], 144
    %v1125 = vld [vmem:[%s1124] sm:$0xff]
    %v1126 = vld [vmem:[%s1124 + $0x8] sm:$0xff]
    %v1127 = vld [vmem:[%s1124 + $0x10] sm:$0xff]
    %1128 = vmatprep.subr.mxu0 %v68
    %1129 = vmatpush1.msra.mxu0 %v67
    %1130 = vmatprep.subr.mxu0 %v71
    %1131 = vmatpush1.msra.mxu0 %v70
    %1132 = vmatprep.subr.mxu0 %v74
    %1133 = vmatpush1.msra.mxu0 %v73
    %1134 = vmatprep.subr.mxu0 %v77
    %1135 = vmatpush1.msra.mxu0 %v76
    %1136 = vmatprep.subr.mxu0 %v80
    %1137 = vmatpush1.msra.mxu0 %v79
    %1138 = vmatprep.subr.mxu0 %v83
    %1139 = vmatpush1.msra.mxu0 %v82
    %1140 = vmatprep.subr.mxu0 %v86
    %1141 = vmatpush1.msra.mxu0 %v85
    %1142 = vmatprep.subr.mxu0 %v89
    %1143 = vmatpush1.msra.mxu0 %v88
    %1144 = vmatprep.subr.mxu0 %v92
    %1145 = vmatpush1.msra.mxu0 %v91
    %1146 = vmatprep.subr.mxu0 %v95
    %1147 = vmatpush1.msra.mxu0 %v94
    %1148 = vmatprep.subr.mxu0 %v98
    %1149 = vmatpush1.msra.mxu0 %v97
    %1150 = vmatprep.subr.mxu0 %v101
    %1151 = vmatpush1.msra.mxu0 %v100
    %1152 = vmatprep.subr.mxu0 %v104
    %1153 = vmatpush1.msra.mxu0 %v103
    %1154 = vmatprep.subr.mxu0 %v107
    %1155 = vmatpush1.msra.mxu0 %v106
    %1156 = vmatprep.subr.mxu0 %v110
    %1157 = vmatpush1.msra.mxu0 %v109
    %1158 = vmatprep.subr.mxu0 %v113
    %1159 = vmatpush1.msra.mxu0 %v112
    %1160 = vmatprep.subr.mxu0 0.0
    %1161 = vmatpush1.msra.mxu0 0.0
    %1162 = vmatprep.subr.mxu0 0.0
    %1163 = vmatpush1.msra.mxu0 0.0
    %1164 = vmatprep.subr.mxu0 0.0
    %1165 = vmatpush1.msra.mxu0 0.0
    %1166 = vmatprep.subr.mxu0 0.0
    %1167 = vmatpush1.msra.mxu0 0.0
    %1168 = vmatprep.subr.mxu0 0.0
    %1169 = vmatpush1.msra.mxu0 0.0
    %1170 = vmatprep.subr.mxu0 0.0
    %1171 = vmatpush1.msra.mxu0 0.0
    %1172 = vmatprep.subr.mxu0 0.0
    %1173 = vmatpush1.msra.mxu0 0.0
    %1174 = vmatprep.subr.mxu0 0.0
    %1175 = vmatpush1.msra.mxu0 0.0
    %1176 = vmatprep.subr.mxu0 0.0
    %1177 = vmatpush1.msra.mxu0 0.0
    %1178 = vmatprep.subr.mxu0 0.0
    %1179 = vmatpush1.msra.mxu0 0.0
    %1180 = vmatprep.subr.mxu0 0.0
    %1181 = vmatpush1.msra.mxu0 0.0
    %1182 = vmatprep.subr.mxu0 0.0
    %1183 = vmatpush1.msra.mxu0 0.0
    %1184 = vmatprep.subr.mxu0 0.0
    %1185 = vmatpush1.msra.mxu0 0.0
    %1186 = vmatprep.subr.mxu0 0.0
    %1187 = vmatpush1.msra.mxu0 0.0
    %1188 = vmatprep.subr.mxu0 0.0
    %1189 = vmatpush1.msra.mxu0 0.0
    %1190 = vmatprep.subr.mxu0 0.0
    %1191 = vmatpush1.msra.mxu0 0.0
    %1192 = vmatprep.mubr.f32.mxu0 0.0
    %1193 = vmatmul.mubr.f32.gmra.mrb[0].mxu0 %v1123
    %v1194 = vpop.f32.mrb[0].mxu0
    %v1195 = vadd.f32 0.0, %v1194
    %v1196 = vpop.f32.mrb[0].mxu0
    %v1197 = vadd.f32 0.0, %v1196
    %1198 = vdwg.mxu0
    %1199 = vmatprep.subr.mxu0 0.0
    %1200 = vmatpush1.msra.mxu0 %v69
    %1201 = vmatprep.subr.mxu0 0.0
    %1202 = vmatpush1.msra.mxu0 %v72
    %1203 = vmatprep.subr.mxu0 0.0
    %1204 = vmatpush1.msra.mxu0 %v75
    %1205 = vmatprep.subr.mxu0 0.0
    %1206 = vmatpush1.msra.mxu0 %v78
    %1207 = vmatprep.subr.mxu0 0.0
    %1208 = vmatpush1.msra.mxu0 %v81
    %1209 = vmatprep.subr.mxu0 0.0
    %1210 = vmatpush1.msra.mxu0 %v84
    %1211 = vmatprep.subr.mxu0 0.0
    %1212 = vmatpush1.msra.mxu0 %v87
    %1213 = vmatprep.subr.mxu0 0.0
    %1214 = vmatpush1.msra.mxu0 %v90
    %1215 = vmatprep.subr.mxu0 0.0
    %1216 = vmatpush1.msra.mxu0 %v93
    %1217 = vmatprep.subr.mxu0 0.0
    %1218 = vmatpush1.msra.mxu0 %v96
    %1219 = vmatprep.subr.mxu0 0.0
    %1220 = vmatpush1.msra.mxu0 %v99
    %1221 = vmatprep.subr.mxu0 0.0
    %1222 = vmatpush1.msra.mxu0 %v102
    %1223 = vmatprep.subr.mxu0 0.0
    %1224 = vmatpush1.msra.mxu0 %v105
    %1225 = vmatprep.subr.mxu0 0.0
    %1226 = vmatpush1.msra.mxu0 %v108
    %1227 = vmatprep.subr.mxu0 0.0
    %1228 = vmatpush1.msra.mxu0 %v111
    %1229 = vmatprep.subr.mxu0 0.0
    %1230 = vmatpush1.msra.mxu0 %v114
    %1231 = vmatprep.subr.mxu0 0.0
    %1232 = vmatpush1.msra.mxu0 0.0
    %1233 = vmatprep.subr.mxu0 0.0
    %1234 = vmatpush1.msra.mxu0 0.0
    %1235 = vmatprep.subr.mxu0 0.0
    %1236 = vmatpush1.msra.mxu0 0.0
    %1237 = vmatprep.subr.mxu0 0.0
    %1238 = vmatpush1.msra.mxu0 0.0
    %1239 = vmatprep.subr.mxu0 0.0
    %1240 = vmatpush1.msra.mxu0 0.0
    %1241 = vmatprep.subr.mxu0 0.0
    %1242 = vmatpush1.msra.mxu0 0.0
    %1243 = vmatprep.subr.mxu0 0.0
    %1244 = vmatpush1.msra.mxu0 0.0
    %1245 = vmatprep.subr.mxu0 0.0
    %1246 = vmatpush1.msra.mxu0 0.0
    %1247 = vmatprep.subr.mxu0 0.0
    %1248 = vmatpush1.msra.mxu0 0.0
    %1249 = vmatprep.subr.mxu0 0.0
    %1250 = vmatpush1.msra.mxu0 0.0
    %1251 = vmatprep.subr.mxu0 0.0
    %1252 = vmatpush1.msra.mxu0 0.0
    %1253 = vmatprep.subr.mxu0 0.0
    %1254 = vmatpush1.msra.mxu0 0.0
    %1255 = vmatprep.subr.mxu0 0.0
    %1256 = vmatpush1.msra.mxu0 0.0
    %1257 = vmatprep.subr.mxu0 0.0
    %1258 = vmatpush1.msra.mxu0 0.0
    %1259 = vmatprep.subr.mxu0 0.0
    %1260 = vmatpush1.msra.mxu0 0.0
    %1261 = vmatprep.subr.mxu0 0.0
    %1262 = vmatpush1.msra.mxu0 0.0
    %1263 = vmatprep.mubr.f32.mxu0 0.0
    %1264 = vmatmul.mubr.f32.gmra.mrb[0].mxu0 %v1123
    %v1265 = vpop.f32.mrb[0].mxu0
    %v1266 = vadd.f32 0.0, %v1265
    %v1267 = vpop.f32.mrb[0].mxu0
    %1268 = vdwg.mxu0
    %v1269 = vadd.f32 %v1125, %v1195
    %v1270 = vxor.u32 %v1269, 2147483648
    %v1271 = vmul.f32 %v1270, 1.442695
    %v1272 = vpow.pop %v1271
    %v1273 = vadd.f32 %v1272, 1.0
    %v1274 = vrcp.pop %v1273
    %v1275 = vmul.f32 1.0, %v1274
    %v1276 = vadd.f32 %v1126, %v1197
    %v1277 = vxor.u32 %v1276, 2147483648
    %v1278 = vmul.f32 %v1277, 1.442695
    %v1279 = vpow.pop %v1278
    %v1280 = vadd.f32 %v1279, 1.0
    %v1281 = vrcp.pop %v1280
    %v1282 = vmul.f32 1.0, %v1281
    %v1283 = vadd.f32 %v1266, %v120
    %v1284 = vmul.f32 %v1275, %v1283
    %v1285 = vadd.f32 %v1127, %v1284
    %v1286 = vtanh.pop %v1285
    %v1287 = vsub.f32 1.0, %v1282
    %v1288 = vmul.f32 %v1287, %v1286
    %v1289 = vmul.f32 %v1282, %v1123
    %v1290 = vadd.f32 %v1288, %v1289
    %s1291 = scalar_lea.vmem [#allocation3], 168
    %v1292 = vld [vmem:[%s1291] sm:$0xff]
    %v1293 = vld [vmem:[%s1291 + $0x8] sm:$0xff]
    %v1294 = vld [vmem:[%s1291 + $0x10] sm:$0xff]
    %1295 = vmatprep.subr.mxu0 %v68
    %1296 = vmatpush1.msra.mxu0 %v67
    %1297 = vmatprep.subr.mxu0 %v71
    %1298 = vmatpush1.msra.mxu0 %v70
    %1299 = vmatprep.subr.mxu0 %v74
    %1300 = vmatpush1.msra.mxu0 %v73
    %1301 = vmatprep.subr.mxu0 %v77
    %1302 = vmatpush1.msra.mxu0 %v76
    %1303 = vmatprep.subr.mxu0 %v80
    %1304 = vmatpush1.msra.mxu0 %v79
    %1305 = vmatprep.subr.mxu0 %v83
    %1306 = vmatpush1.msra.mxu0 %v82
    %1307 = vmatprep.subr.mxu0 %v86
    %1308 = vmatpush1.msra.mxu0 %v85
    %1309 = vmatprep.subr.mxu0 %v89
    %1310 = vmatpush1.msra.mxu0 %v88
    %1311 = vmatprep.subr.mxu0 %v92
    %1312 = vmatpush1.msra.mxu0 %v91
    %1313 = vmatprep.subr.mxu0 %v95
    %1314 = vmatpush1.msra.mxu0 %v94
    %1315 = vmatprep.subr.mxu0 %v98
    %1316 = vmatpush1.msra.mxu0 %v97
    %1317 = vmatprep.subr.mxu0 %v101
    %1318 = vmatpush1.msra.mxu0 %v100
    %1319 = vmatprep.subr.mxu0 %v104
    %1320 = vmatpush1.msra.mxu0 %v103
    %1321 = vmatprep.subr.mxu0 %v107
    %1322 = vmatpush1.msra.mxu0 %v106
    %1323 = vmatprep.subr.mxu0 %v110
    %1324 = vmatpush1.msra.mxu0 %v109
    %1325 = vmatprep.subr.mxu0 %v113
    %1326 = vmatpush1.msra.mxu0 %v112
    %1327 = vmatprep.subr.mxu0 0.0
    %1328 = vmatpush1.msra.mxu0 0.0
    %1329 = vmatprep.subr.mxu0 0.0
    %1330 = vmatpush1.msra.mxu0 0.0
    %1331 = vmatprep.subr.mxu0 0.0
    %1332 = vmatpush1.msra.mxu0 0.0
    %1333 = vmatprep.subr.mxu0 0.0
    %1334 = vmatpush1.msra.mxu0 0.0
    %1335 = vmatprep.subr.mxu0 0.0
    %1336 = vmatpush1.msra.mxu0 0.0
    %1337 = vmatprep.subr.mxu0 0.0
    %1338 = vmatpush1.msra.mxu0 0.0
    %1339 = vmatprep.subr.mxu0 0.0
    %1340 = vmatpush1.msra.mxu0 0.0
    %1341 = vmatprep.subr.mxu0 0.0
    %1342 = vmatpush1.msra.mxu0 0.0
    %1343 = vmatprep.subr.mxu0 0.0
    %1344 = vmatpush1.msra.mxu0 0.0
    %1345 = vmatprep.subr.mxu0 0.0
    %1346 = vmatpush1.msra.mxu0 0.0
    %1347 = vmatprep.subr.mxu0 0.0
    %1348 = vmatpush1.msra.mxu0 0.0
    %1349 = vmatprep.subr.mxu0 0.0
    %1350 = vmatpush1.msra.mxu0 0.0
    %1351 = vmatprep.subr.mxu0 0.0
    %1352 = vmatpush1.msra.mxu0 0.0
    %1353 = vmatprep.subr.mxu0 0.0
    %1354 = vmatpush1.msra.mxu0 0.0
    %1355 = vmatprep.subr.mxu0 0.0
    %1356 = vmatpush1.msra.mxu0 0.0
    %1357 = vmatprep.subr.mxu0 0.0
    %1358 = vmatpush1.msra.mxu0 0.0
    %1359 = vmatprep.mubr.f32.mxu0 0.0
    %1360 = vmatmul.mubr.f32.gmra.mrb[0].mxu0 %v1290
    %v1361 = vpop.f32.mrb[0].mxu0
    %v1362 = vadd.f32 0.0, %v1361
    %v1363 = vpop.f32.mrb[0].mxu0
    %v1364 = vadd.f32 0.0, %v1363
    %1365 = vdwg.mxu0
    %1366 = vmatprep.subr.mxu0 0.0
    %1367 = vmatpush1.msra.mxu0 %v69
    %1368 = vmatprep.subr.mxu0 0.0
    %1369 = vmatpush1.msra.mxu0 %v72
    %1370 = vmatprep.subr.mxu0 0.0
    %1371 = vmatpush1.msra.mxu0 %v75
    %1372 = vmatprep.subr.mxu0 0.0
    %1373 = vmatpush1.msra.mxu0 %v78
    %1374 = vmatprep.subr.mxu0 0.0
    %1375 = vmatpush1.msra.mxu0 %v81
    %1376 = vmatprep.subr.mxu0 0.0
    %1377 = vmatpush1.msra.mxu0 %v84
    %1378 = vmatprep.subr.mxu0 0.0
    %1379 = vmatpush1.msra.mxu0 %v87
    %1380 = vmatprep.subr.mxu0 0.0
    %1381 = vmatpush1.msra.mxu0 %v90
    %1382 = vmatprep.subr.mxu0 0.0
    %1383 = vmatpush1.msra.mxu0 %v93
    %1384 = vmatprep.subr.mxu0 0.0
    %1385 = vmatpush1.msra.mxu0 %v96
    %1386 = vmatprep.subr.mxu0 0.0
    %1387 = vmatpush1.msra.mxu0 %v99
    %1388 = vmatprep.subr.mxu0 0.0
    %1389 = vmatpush1.msra.mxu0 %v102
    %1390 = vmatprep.subr.mxu0 0.0
    %1391 = vmatpush1.msra.mxu0 %v105
    %1392 = vmatprep.subr.mxu0 0.0
    %1393 = vmatpush1.msra.mxu0 %v108
    %1394 = vmatprep.subr.mxu0 0.0
    %1395 = vmatpush1.msra.mxu0 %v111
    %1396 = vmatprep.subr.mxu0 0.0
    %1397 = vmatpush1.msra.mxu0 %v114
    %1398 = vmatprep.subr.mxu0 0.0
    %1399 = vmatpush1.msra.mxu0 0.0
    %1400 = vmatprep.subr.mxu0 0.0
    %1401 = vmatpush1.msra.mxu0 0.0
    %1402 = vmatprep.subr.mxu0 0.0
    %1403 = vmatpush1.msra.mxu0 0.0
    %1404 = vmatprep.subr.mxu0 0.0
    %1405 = vmatpush1.msra.mxu0 0.0
    %1406 = vmatprep.subr.mxu0 0.0
    %1407 = vmatpush1.msra.mxu0 0.0
    %1408 = vmatprep.subr.mxu0 0.0
    %1409 = vmatpush1.msra.mxu0 0.0
    %1410 = vmatprep.subr.mxu0 0.0
    %1411 = vmatpush1.msra.mxu0 0.0
    %1412 = vmatprep.subr.mxu0 0.0
    %1413 = vmatpush1.msra.mxu0 0.0
    %1414 = vmatprep.subr.mxu0 0.0
    %1415 = vmatpush1.msra.mxu0 0.0
    %1416 = vmatprep.subr.mxu0 0.0
    %1417 = vmatpush1.msra.mxu0 0.0
    %1418 = vmatprep.subr.mxu0 0.0
    %1419 = vmatpush1.msra.mxu0 0.0
    %1420 = vmatprep.subr.mxu0 0.0
    %1421 = vmatpush1.msra.mxu0 0.0
    %1422 = vmatprep.subr.mxu0 0.0
    %1423 = vmatpush1.msra.mxu0 0.0
    %1424 = vmatprep.subr.mxu0 0.0
    %1425 = vmatpush1.msra.mxu0 0.0
    %1426 = vmatprep.subr.mxu0 0.0
    %1427 = vmatpush1.msra.mxu0 0.0
    %1428 = vmatprep.subr.mxu0 0.0
    %1429 = vmatpush1.msra.mxu0 0.0
    %1430 = vmatprep.mubr.f32.mxu0 0.0
    %1431 = vmatmul.mubr.f32.gmra.mrb[0].mxu0 %v1290
    %v1432 = vpop.f32.mrb[0].mxu0
    %v1433 = vadd.f32 0.0, %v1432
    %v1434 = vpop.f32.mrb[0].mxu0
    %1435 = vdwg.mxu0
    %v1436 = vadd.f32 %v1292, %v1362
    %v1437 = vxor.u32 %v1436, 2147483648
    %v1438 = vmul.f32 %v1437, 1.442695
    %v1439 = vpow.pop %v1438
    %v1440 = vadd.f32 %v1439, 1.0
    %v1441 = vrcp.pop %v1440
    %v1442 = vmul.f32 1.0, %v1441
    %v1443 = vadd.f32 %v1293, %v1364
    %v1444 = vxor.u32 %v1443, 2147483648
    %v1445 = vmul.f32 %v1444, 1.442695
    %v1446 = vpow.pop %v1445
    %v1447 = vadd.f32 %v1446, 1.0
    %v1448 = vrcp.pop %v1447
    %v1449 = vmul.f32 1.0, %v1448
    %v1450 = vadd.f32 %v1433, %v120
    %v1451 = vmul.f32 %v1442, %v1450
    %v1452 = vadd.f32 %v1294, %v1451
    %v1453 = vtanh.pop %v1452
    %v1454 = vsub.f32 1.0, %v1449
    %v1455 = vmul.f32 %v1454, %v1453
    %v1456 = vmul.f32 %v1449, %v1290
    %v1457 = vadd.f32 %v1455, %v1456
    %1458 = vst [vmem:[#allocation2] sm:$0xff] %v1457
    // Predicated region
    $region38: #{tpu_custom_call.1} parent=1 // pred_check
      %p1459 = pneg %p62
    $region39: #{tpu_custom_call.1} parent=1 // pred_check_branch
      %1461 = sbr.rel (%p1459) target = $region41
    $region40: #{tpu_custom_call.1} parent=1 // pred_region
      %v1462 = vld [vmem:[#allocation8] sm:$0xff]
      %v1463 = vld [vmem:[#allocation8 + $0x8] sm:$0xff]
      %v1464 = vld [vmem:[#allocation8 + $0x10] sm:$0xff]
      %v1465 = vld [vmem:[#allocation8 + $0x18] sm:$0xff]
      %v1466 = vld [vmem:[#allocation8 + $0x20] sm:$0xff]
      %v1467 = vld [vmem:[#allocation8 + $0x28] sm:$0xff]
      %v1468 = vld [vmem:[#allocation8 + $0x30] sm:$0xff]
      %v1469 = vld [vmem:[#allocation8 + $0x38] sm:$0xff]
      %v1470 = vld [vmem:[#allocation8 + $0x40] sm:$0xff]
      %v1471 = vld [vmem:[#allocation8 + $0x48] sm:$0xff]
      %v1472 = vld [vmem:[#allocation8 + $0x50] sm:$0xff]
      %v1473 = vld [vmem:[#allocation8 + $0x58] sm:$0xff]
      %v1474 = vld [vmem:[#allocation8 + $0x60] sm:$0xff]
      %v1475 = vld [vmem:[#allocation8 + $0x68] sm:$0xff]
      %v1476 = vld [vmem:[#allocation8 + $0x70] sm:$0xff]
      %v1477 = vld [vmem:[#allocation8 + $0x78] sm:$0xff]
      %v1478 = vld [vmem:[%s4] sm:$0x1]
      %v1480 = vlaneseq
      %v1481 = vshrl.u32 %v1480, 7
      %v1482 = vsub.s32 0, %v1481
      %v1483 = vrot.slane %v1478, %v1482
      %1485 = vmatprep.subr.mxu0 0.0
      %1486 = vmatpush1.msra.mxu0 %v1462
      %1487 = vmatprep.subr.mxu0 0.0
      %1488 = vmatpush1.msra.mxu0 %v1463
      %1489 = vmatprep.subr.mxu0 0.0
      %1490 = vmatpush1.msra.mxu0 %v1464
      %1491 = vmatprep.subr.mxu0 0.0
      %1492 = vmatpush1.msra.mxu0 %v1465
      %1493 = vmatprep.subr.mxu0 0.0
      %1494 = vmatpush1.msra.mxu0 %v1466
      %1495 = vmatprep.subr.mxu0 0.0
      %1496 = vmatpush1.msra.mxu0 %v1467
      %1497 = vmatprep.subr.mxu0 0.0
      %1498 = vmatpush1.msra.mxu0 %v1468
      %1499 = vmatprep.subr.mxu0 0.0
      %1500 = vmatpush1.msra.mxu0 %v1469
      %1501 = vmatprep.subr.mxu0 0.0
      %1502 = vmatpush1.msra.mxu0 %v1470
      %1503 = vmatprep.subr.mxu0 0.0
      %1504 = vmatpush1.msra.mxu0 %v1471
      %1505 = vmatprep.subr.mxu0 0.0
      %1506 = vmatpush1.msra.mxu0 %v1472
      %1507 = vmatprep.subr.mxu0 0.0
      %1508 = vmatpush1.msra.mxu0 %v1473
      %1509 = vmatprep.subr.mxu0 0.0
      %1510 = vmatpush1.msra.mxu0 %v1474
      %1511 = vmatprep.subr.mxu0 0.0
      %1512 = vmatpush1.msra.mxu0 %v1475
      %1513 = vmatprep.subr.mxu0 0.0
      %1514 = vmatpush1.msra.mxu0 %v1476
      %1515 = vmatprep.subr.mxu0 0.0
      %1516 = vmatpush1.msra.mxu0 %v1477
      %1517 = vmatprep.subr.mxu0 0.0
      %1518 = vmatpush1.msra.mxu0 0.0
      %1519 = vmatprep.subr.mxu0 0.0
      %1520 = vmatpush1.msra.mxu0 0.0
      %1521 = vmatprep.subr.mxu0 0.0
      %1522 = vmatpush1.msra.mxu0 0.0
      %1523 = vmatprep.subr.mxu0 0.0
      %1524 = vmatpush1.msra.mxu0 0.0
      %1525 = vmatprep.subr.mxu0 0.0
      %1526 = vmatpush1.msra.mxu0 0.0
      %1527 = vmatprep.subr.mxu0 0.0
      %1528 = vmatpush1.msra.mxu0 0.0
      %1529 = vmatprep.subr.mxu0 0.0
      %1530 = vmatpush1.msra.mxu0 0.0
      %1531 = vmatprep.subr.mxu0 0.0
      %1532 = vmatpush1.msra.mxu0 0.0
      %1533 = vmatprep.subr.mxu0 0.0
      %1534 = vmatpush1.msra.mxu0 0.0
      %1535 = vmatprep.subr.mxu0 0.0
      %1536 = vmatpush1.msra.mxu0 0.0
      %1537 = vmatprep.subr.mxu0 0.0
      %1538 = vmatpush1.msra.mxu0 0.0
      %1539 = vmatprep.subr.mxu0 0.0
      %1540 = vmatpush1.msra.mxu0 0.0
      %1541 = vmatprep.subr.mxu0 0.0
      %1542 = vmatpush1.msra.mxu0 0.0
      %1543 = vmatprep.subr.mxu0 0.0
      %1544 = vmatpush1.msra.mxu0 0.0
      %1545 = vmatprep.subr.mxu0 0.0
      %1546 = vmatpush1.msra.mxu0 0.0
      %1547 = vmatprep.subr.mxu0 0.0
      %1548 = vmatpush1.msra.mxu0 0.0
      %1549 = vmatprep.mubr.f32.mxu0 0.0
      %1550 = vmatmul.mubr.f32.gmra.mrb[0].mxu0 %v1457
      %v1551 = vpop.f32.mrb[0].mxu0
      %v1552 = vadd.f32 %v1483, %v1551
      %v1553 = vpop.f32.mrb[0].mxu0
      %1554 = vdwg.mxu0
      %1555 = vst [vmem:[#allocation9] sm:$0xff] %v1552
    $region41: #{tpu_custom_call.1} parent=1 // pred_fallthru
      _
    // Predicated region
    $region42: #{tpu_custom_call.1} parent=1 // pred_check
      _
    $region43: #{tpu_custom_call.1} parent=1 // pred_check_branch
      %1557 = sbr.rel (0) target = $region45
    $region44: #{tpu_custom_call.1} parent=1 // pred_region
      %s1559 = ssub.s32 128, 128
      %1560 = vsyncadd [#allocation5], %s1559
      %s1562 = sshll.u32 [#allocation9], 4
      %s1563 = int_to_ptr.vmem [resolvable:$true] %s1562
      %1565 = dma.vmem_to_hbm [thread:$0]  %s1563, 128, %s5, [#allocation5]
    $region45: #{tpu_custom_call.1} parent=1 // pred_fallthru
      _
    // Predicated region
    $region46: #{tpu_custom_call.1} parent=1 // pred_check
      _
    $region47: #{tpu_custom_call.1} parent=1 // pred_check_branch
      %1567 = sbr.rel (0) target = $region49
    $region48: #{tpu_custom_call.1} parent=1 // pred_region
      %1568 = dma.done [#allocation5], 128
    $region49: #{tpu_custom_call.1} parent=1 // pred_fallthru
      _
    %1569 = vsyncpa [#allocation4], 1
    %1570 = vsyncpa [#allocation7], 1
    %1571 = vsyncpa [#allocation5], 1

</llo_original>
